<compile_context>
chip_gen: v6e
topology: v6e:2x2x1
jax: 0.10.0
libtpu: 0.0.40
codegen_flags: <defaults>
</compile_context>

<pallas_src>
import functools

import jax
import jax.numpy as jnp
from jax.experimental import pallas as pl
from jax.experimental.pallas import tpu as pltpu

_IN = 784
_IN_PAD = 896    # 784 rounded up to a multiple of 128 -> lane-aligned x tiles / K dim
_HID = 512
_OUT = 10
_OUT_PAD = 128   # pad last layer to 128 lanes -> unmasked vst, full MXU columns


def _round_up(x, m):
    return (x + m - 1) // m * m


def _cdiv(a, b):
    return (a + b - 1) // b


def _mlp_kernel(x_ref,
                w1_ref, b1_ref,
                w2_ref, b2_ref,
                w3_ref, b3_ref,
                w4_ref, b4_ref,
                o_ref):
    # x_ref: (TB, 896) f32 (feature-padded with zeros). Weights pre-transposed to
    # (in, out) bf16 (W1 zero-padded on its input dim). Biases (1, out) f32.
    # Cast to bf16 on the VPU in-kernel; MXU runs bf16 x bf16 -> f32 accumulate.
    x = x_ref[...].astype(jnp.bfloat16)

    h = jnp.dot(x, w1_ref[...], preferred_element_type=jnp.float32) + b1_ref[...]
    h = jnp.maximum(h, 0.0).astype(jnp.bfloat16)

    h = jnp.dot(h, w2_ref[...], preferred_element_type=jnp.float32) + b2_ref[...]
    h = jnp.maximum(h, 0.0).astype(jnp.bfloat16)

    h = jnp.dot(h, w3_ref[...], preferred_element_type=jnp.float32) + b3_ref[...]
    h = jnp.maximum(h, 0.0).astype(jnp.bfloat16)

    out = jnp.dot(h, w4_ref[...], preferred_element_type=jnp.float32) + b4_ref[...]
    o_ref[...] = out.astype(o_ref.dtype)


def prepare_params(params):
    """One-time (outside the per-call path) param preparation.

    nn.Linear weights are (out, in); transpose to (in, out), cast to bf16,
    zero-pad W1's input dim 784->896 and the last layer's outputs 10->128,
    and reshape biases to (1, out) f32.
    """
    (w1, b1), (w2, b2), (w3, b3), (w4, b4) = params
    w1p = jnp.pad(w1, ((0, 0), (0, _IN_PAD - _IN)))       # (512, 896)  zero K-pad
    w4p = jnp.pad(w4, ((0, _OUT_PAD - _OUT), (0, 0)))     # (128, 512)
    b4p = jnp.pad(b4, (0, _OUT_PAD - _OUT))                # (128,)
    prepared = (
        w1p.T.astype(jnp.bfloat16), b1[None, :].astype(jnp.float32),
        w2.T.astype(jnp.bfloat16), b2[None, :].astype(jnp.float32),
        w3.T.astype(jnp.bfloat16), b3[None, :].astype(jnp.float32),
        w4p.T.astype(jnp.bfloat16), b4p[None, :].astype(jnp.float32),
    )
    # Materialize now so nothing is re-done per forward call.
    return jax.tree_util.tree_map(jnp.asarray, prepared)


@functools.partial(jax.jit, static_argnames=("tb",))
def mnist_mlp_forward(x_nchw, prepared, tb=512):
    """x_nchw: (B, 1, 28, 28) float32. prepared: output of prepare_params.

    Returns logits (B, 10) float32.  tb is the max batch tile (v6e/v7x can use 1024).
    """
    B = x_nchw.shape[0]
    x = x_nchw.reshape(B, -1)                      # (B, 784), same as torch .view
    if x.dtype != jnp.float32:
        x = x.astype(jnp.float32)                  # bf16 cast happens inside the kernel

    # Tile selection:
    #   * round the batch to 16 (bf16 packs 16 rows per vreg),
    #   * balance tiles: round_up(cdiv(Bp, n_tiles), 16) instead of hard tb,
    #   * force >= 2 grid steps whenever the batch supports two 16-row tiles so the
    #     "parallel" axis shards across v7x's 2 TensorCores.
    B16 = _round_up(B, 16)
    n_tiles = _cdiv(B16, tb)
    if n_tiles < 2 and B16 >= 32:
        n_tiles = 2
    tbe = _round_up(_cdiv(B16, n_tiles), 16)
    Bp = n_tiles * tbe

    # Single fused pad: batch remainder rows + feature pad 784 -> 896 (zeros).
    x = jnp.pad(x, ((0, Bp - B), (0, _IN_PAD - _IN)))
    grid = (n_tiles,)

    # Weights/biases: constant index_map (never re-DMA'd across the batch grid) and
    # single-buffered to halve their VMEM footprint.
    def resident(shape):
        return pl.BlockSpec(shape, lambda i: (0, 0), pipeline_mode=pl.Buffered(1))

    flops = 2 * Bp * (_IN_PAD * _HID + _HID * _HID + _HID * _HID + _HID * _OUT_PAD)
    w_elems = _IN_PAD * _HID + 2 * _HID * _HID + _HID * _OUT_PAD
    bytes_accessed = (w_elems * 2                        # bf16 weights
                      + (3 * _HID + _OUT_PAD) * 4        # f32 biases
                      + Bp * _IN_PAD * 4                 # f32 activations in
                      + Bp * _OUT_PAD * 4)               # f32 logits out

    out = pl.pallas_call(
        _mlp_kernel,
        out_shape=jax.ShapeDtypeStruct((Bp, _OUT_PAD), jnp.float32),
        grid_spec=pltpu.PrefetchScalarGridSpec(
            num_scalar_prefetch=0,
            grid=grid,
            in_specs=[
                pl.BlockSpec((tbe, _IN_PAD), lambda i: (i, 0)),       # x tile (f32)
                resident((_IN_PAD, _HID)), resident((1, _HID)),       # layer 1
                resident((_HID, _HID)), resident((1, _HID)),          # layer 2
                resident((_HID, _HID)), resident((1, _HID)),          # layer 3
                resident((_HID, _OUT_PAD)), resident((1, _OUT_PAD)),  # layer 4 (padded)
            ],
            out_specs=pl.BlockSpec((tbe, _OUT_PAD), lambda i: (i, 0)),
        ),
        compiler_params=pltpu.CompilerParams(
            dimension_semantics=("parallel",),
            vmem_limit_bytes=32 << 20,
        ),
        cost_estimate=pl.CostEstimate(
            flops=flops, transcendentals=0, bytes_accessed=bytes_accessed),
    )(x, *prepared)

    # Lane-dense 128-wide store is kept in the kernel; slice the logical logits here.
    return out[:B, :_OUT]


def init_params(key):
    """Deterministic init matching nn.Linear shapes: W (out, in), b (out,)."""
    dims = [(_HID, _IN), (_HID, _HID), (_HID, _HID), (_OUT, _HID)]
    params = []
    for i, (fout, fin) in enumerate(dims):
        kw, kb = jax.random.split(jax.random.fold_in(key, i))
        bound = 1.0 / jnp.sqrt(fin)
        w = jax.random.uniform(kw, (fout, fin), jnp.float32, -bound, bound)
        b = jax.random.uniform(kb, (fout,), jnp.float32, -bound, bound)
        params.append((w, b))
    return params


def _reference_bf16(x_nchw, params):
    """Pure-JAX reference with the same bf16-operand / f32-accumulate quantization."""
    x = x_nchw.reshape(x_nchw.shape[0], -1)

    def lin(h, w, b):
        return jnp.dot(h.astype(jnp.bfloat16), w.T.astype(jnp.bfloat16),
                       preferred_element_type=jnp.float32) + b

    (w1, b1), (w2, b2), (w3, b3), (w4, b4) = params
    h = jnp.maximum(lin(x, w1, b1), 0.0)
    h = jnp.maximum(lin(h, w2, b2), 0.0)
    h = jnp.maximum(lin(h, w3, b3), 0.0)
    return lin(h, w4, b4)


def _reference_f32(x_nchw, params):
    x = x_nchw.reshape(x_nchw.shape[0], -1)
    (w1, b1), (w2, b2), (w3, b3), (w4, b4) = params
    h = jnp.maximum(x @ w1.T + b1, 0.0)
    h = jnp.maximum(h @ w2.T + b2, 0.0)
    h = jnp.maximum(h @ w3.T + b3, 0.0)
    return h @ w4.T + b4


if __name__ == "__main__":
    key = jax.random.PRNGKey(0)
    k_x, k_p = jax.random.split(key)

    B = 8
    x = jax.random.normal(k_x, (B, 1, 28, 28), jnp.float32)  # NCHW like PyTorch
    params = init_params(k_p)
    prepared = prepare_params(params)   # one-time: transpose / pad / bf16-cast

    out = mnist_mlp_forward(x, prepared)
    out = jax.block_until_ready(out)
    assert out.shape == (B, _OUT)

    # Tight check vs. a reference using the same bf16-operand / f32-accumulate math.
    ref_bf16 = _reference_bf16(x, params)
    assert jnp.allclose(out, ref_bf16, atol=1e-3, rtol=1e-3), "mismatch vs bf16 reference"

    # Loose check vs. the exact-f32 PyTorch-equivalent forward (bf16 quantization noise).
    ref_f32 = _reference_f32(x, params)
    assert jnp.allclose(out, ref_f32, atol=3e-2, rtol=3e-2), "mismatch vs f32 reference"

    print("KERNEL_OK")
</pallas_src>

<mosaic_0001>
module attributes {stable_mosaic.version = 11 : i64} {
  func.func @_mlp_kernel(%arg0: i32, %arg1: memref<16x896xf32, #tpu.memory_space<vmem>>, %arg2: memref<896x512xbf16, #tpu.memory_space<vmem>>, %arg3: memref<1x512xf32, #tpu.memory_space<vmem>>, %arg4: memref<512x512xbf16, #tpu.memory_space<vmem>>, %arg5: memref<1x512xf32, #tpu.memory_space<vmem>>, %arg6: memref<512x512xbf16, #tpu.memory_space<vmem>>, %arg7: memref<1x512xf32, #tpu.memory_space<vmem>>, %arg8: memref<512x128xbf16, #tpu.memory_space<vmem>>, %arg9: memref<1x128xf32, #tpu.memory_space<vmem>>, %arg10: memref<16x128xf32, #tpu.memory_space<vmem>>) attributes {dimension_semantics = [#tpu.dimension_semantics<parallel>], iteration_bounds = array<i64: 1>, scalar_prefetch = 0 : i64, scratch_operands = 0 : i64, tpu.core_type = #tpu.core_type<tc>, window_params = [{transform_indices = @transform_0, window_bounds = array<i64: 16, 896>}, {pipeline_mode = #tpu.pipeline_mode<synchronous>, transform_indices = @transform_1, window_bounds = array<i64: 896, 512>}, {pipeline_mode = #tpu.pipeline_mode<synchronous>, transform_indices = @transform_2, window_bounds = array<i64: 1, 512>}, {pipeline_mode = #tpu.pipeline_mode<synchronous>, transform_indices = @transform_3, window_bounds = array<i64: 512, 512>}, {pipeline_mode = #tpu.pipeline_mode<synchronous>, transform_indices = @transform_4, window_bounds = array<i64: 1, 512>}, {pipeline_mode = #tpu.pipeline_mode<synchronous>, transform_indices = @transform_5, window_bounds = array<i64: 512, 512>}, {pipeline_mode = #tpu.pipeline_mode<synchronous>, transform_indices = @transform_6, window_bounds = array<i64: 1, 512>}, {pipeline_mode = #tpu.pipeline_mode<synchronous>, transform_indices = @transform_7, window_bounds = array<i64: 512, 128>}, {pipeline_mode = #tpu.pipeline_mode<synchronous>, transform_indices = @transform_8, window_bounds = array<i64: 1, 128>}, {transform_indices = @transform_9, window_bounds = array<i64: 16, 128>}]} {
    %c0 = arith.constant 0 : index
    %c0_0 = arith.constant 0 : index
    %0 = vector.load %arg1[%c0, %c0_0] : memref<16x896xf32, #tpu.memory_space<vmem>>, vector<16x896xf32>
    %1 = arith.truncf %0 : vector<16x896xf32> to vector<16x896xbf16>
    %c0_1 = arith.constant 0 : index
    %c0_2 = arith.constant 0 : index
    %2 = vector.load %arg2[%c0_1, %c0_2] : memref<896x512xbf16, #tpu.memory_space<vmem>>, vector<896x512xbf16>
    %cst = arith.constant dense<0.000000e+00> : vector<16x512xf32>
    %3 = tpu.matmul %1, %2, %cst {dimension_numbers = #tpu.dot_dimension_numbers<[1], [0], [0], [1], [0, 0, 1, 1], [], []>} : vector<16x896xbf16>, vector<896x512xbf16>, vector<16x512xf32> -> vector<16x512xf32>
    %c0_3 = arith.constant 0 : index
    %c0_4 = arith.constant 0 : index
    %4 = vector.load %arg3[%c0_3, %c0_4] : memref<1x512xf32, #tpu.memory_space<vmem>>, vector<1x512xf32>
    %5 = vector.broadcast %4 : vector<1x512xf32> to vector<16x512xf32>
    %6 = arith.addf %3, %5 : vector<16x512xf32>
    %cst_5 = arith.constant 0.000000e+00 : f32
    %7 = vector.broadcast %cst_5 : f32 to vector<16x512xf32>
    %8 = arith.maximumf %6, %7 : vector<16x512xf32>
    %9 = arith.truncf %8 : vector<16x512xf32> to vector<16x512xbf16>
    %c0_6 = arith.constant 0 : index
    %c0_7 = arith.constant 0 : index
    %10 = vector.load %arg4[%c0_6, %c0_7] : memref<512x512xbf16, #tpu.memory_space<vmem>>, vector<512x512xbf16>
    %cst_8 = arith.constant dense<0.000000e+00> : vector<16x512xf32>
    %11 = tpu.matmul %9, %10, %cst_8 {dimension_numbers = #tpu.dot_dimension_numbers<[1], [0], [0], [1], [0, 0, 1, 1], [], []>} : vector<16x512xbf16>, vector<512x512xbf16>, vector<16x512xf32> -> vector<16x512xf32>
    %c0_9 = arith.constant 0 : index
    %c0_10 = arith.constant 0 : index
    %12 = vector.load %arg5[%c0_9, %c0_10] : memref<1x512xf32, #tpu.memory_space<vmem>>, vector<1x512xf32>
    %13 = vector.broadcast %12 : vector<1x512xf32> to vector<16x512xf32>
    %14 = arith.addf %11, %13 : vector<16x512xf32>
    %cst_11 = arith.constant 0.000000e+00 : f32
    %15 = vector.broadcast %cst_11 : f32 to vector<16x512xf32>
    %16 = arith.maximumf %14, %15 : vector<16x512xf32>
    %17 = arith.truncf %16 : vector<16x512xf32> to vector<16x512xbf16>
    %c0_12 = arith.constant 0 : index
    %c0_13 = arith.constant 0 : index
    %18 = vector.load %arg6[%c0_12, %c0_13] : memref<512x512xbf16, #tpu.memory_space<vmem>>, vector<512x512xbf16>
    %cst_14 = arith.constant dense<0.000000e+00> : vector<16x512xf32>
    %19 = tpu.matmul %17, %18, %cst_14 {dimension_numbers = #tpu.dot_dimension_numbers<[1], [0], [0], [1], [0, 0, 1, 1], [], []>} : vector<16x512xbf16>, vector<512x512xbf16>, vector<16x512xf32> -> vector<16x512xf32>
    %c0_15 = arith.constant 0 : index
    %c0_16 = arith.constant 0 : index
    %20 = vector.load %arg7[%c0_15, %c0_16] : memref<1x512xf32, #tpu.memory_space<vmem>>, vector<1x512xf32>
    %21 = vector.broadcast %20 : vector<1x512xf32> to vector<16x512xf32>
    %22 = arith.addf %19, %21 : vector<16x512xf32>
    %cst_17 = arith.constant 0.000000e+00 : f32
    %23 = vector.broadcast %cst_17 : f32 to vector<16x512xf32>
    %24 = arith.maximumf %22, %23 : vector<16x512xf32>
    %25 = arith.truncf %24 : vector<16x512xf32> to vector<16x512xbf16>
    %c0_18 = arith.constant 0 : index
    %c0_19 = arith.constant 0 : index
    %26 = vector.load %arg8[%c0_18, %c0_19] : memref<512x128xbf16, #tpu.memory_space<vmem>>, vector<512x128xbf16>
    %cst_20 = arith.constant dense<0.000000e+00> : vector<16x128xf32>
    %27 = tpu.matmul %25, %26, %cst_20 {dimension_numbers = #tpu.dot_dimension_numbers<[1], [0], [0], [1], [0, 0, 1, 1], [], []>} : vector<16x512xbf16>, vector<512x128xbf16>, vector<16x128xf32> -> vector<16x128xf32>
    %c0_21 = arith.constant 0 : index
    %c0_22 = arith.constant 0 : index
    %28 = vector.load %arg9[%c0_21, %c0_22] : memref<1x128xf32, #tpu.memory_space<vmem>>, vector<1x128xf32>
    %29 = vector.broadcast %28 : vector<1x128xf32> to vector<16x128xf32>
    %30 = arith.addf %27, %29 : vector<16x128xf32>
    %c0_23 = arith.constant 0 : index
    %c0_24 = arith.constant 0 : index
    %31 = vector.load %arg10[%c0_23, %c0_24] : memref<16x128xf32, #tpu.memory_space<vmem>>, vector<16x128xf32>
    tpu.vector_store %arg10[%c0_23, %c0_24], %30 {strides = array<i32>} : memref<16x128xf32, #tpu.memory_space<vmem>>, vector<16x128xf32>,
    return
  }
  func.func @transform_0(%arg0: i32) -> (i32, i32) {
    %c0_i32 = arith.constant 0 : i32
    %c0_i32_0 = arith.constant 0 : i32
    return %arg0, %c0_i32 : i32, i32
  }
  func.func @transform_1(%arg0: i32) -> (i32, i32) {
    %c0_i32 = arith.constant 0 : i32
    %c0_i32_0 = arith.constant 0 : i32
    %c0_i32_1 = arith.constant 0 : i32
    return %c0_i32, %c0_i32_0 : i32, i32
  }
  func.func @transform_2(%arg0: i32) -> (i32, i32) {
    %c0_i32 = arith.constant 0 : i32
    %c0_i32_0 = arith.constant 0 : i32
    %c0_i32_1 = arith.constant 0 : i32
    return %c0_i32, %c0_i32_0 : i32, i32
  }
  func.func @transform_3(%arg0: i32) -> (i32, i32) {
    %c0_i32 = arith.constant 0 : i32
    %c0_i32_0 = arith.constant 0 : i32
    %c0_i32_1 = arith.constant 0 : i32
    return %c0_i32, %c0_i32_0 : i32, i32
  }
  func.func @transform_4(%arg0: i32) -> (i32, i32) {
    %c0_i32 = arith.constant 0 : i32
    %c0_i32_0 = arith.constant 0 : i32
    %c0_i32_1 = arith.constant 0 : i32
    return %c0_i32, %c0_i32_0 : i32, i32
  }
  func.func @transform_5(%arg0: i32) -> (i32, i32) {
    %c0_i32 = arith.constant 0 : i32
    %c0_i32_0 = arith.constant 0 : i32
    %c0_i32_1 = arith.constant 0 : i32
    return %c0_i32, %c0_i32_0 : i32, i32
  }
  func.func @transform_6(%arg0: i32) -> (i32, i32) {
    %c0_i32 = arith.constant 0 : i32
    %c0_i32_0 = arith.constant 0 : i32
    %c0_i32_1 = arith.constant 0 : i32
    return %c0_i32, %c0_i32_0 : i32, i32
  }
  func.func @transform_7(%arg0: i32) -> (i32, i32) {
    %c0_i32 = arith.constant 0 : i32
    %c0_i32_0 = arith.constant 0 : i32
    %c0_i32_1 = arith.constant 0 : i32
    return %c0_i32, %c0_i32_0 : i32, i32
  }
  func.func @transform_8(%arg0: i32) -> (i32, i32) {
    %c0_i32 = arith.constant 0 : i32
    %c0_i32_0 = arith.constant 0 : i32
    %c0_i32_1 = arith.constant 0 : i32
    return %c0_i32, %c0_i32_0 : i32, i32
  }
  func.func @transform_9(%arg0: i32) -> (i32, i32) {
    %c0_i32 = arith.constant 0 : i32
    %c0_i32_0 = arith.constant 0 : i32
    return %arg0, %c0_i32 : i32, i32
  }
}

</mosaic_0001>

<llo_original>
// kernel: mnist_mlp_forward.1
$region0: #{mnist_mlp_forward.1}
  #allocation0 [shape = 'u32[]', space=smem, size = 0x4, offset = 0x4, fixed_abs, tag = 'smem constant byte address 0x4 - core index']
  #allocation1 [shape = 'u32[144,128]{1,0:T(1,128)}', space=vmem, size = 0x12000, scoped, tag = 'internal scratch']
  %s0 = inlined_call_operand.vmem [shape: f32[16,896], index: 0, kind: input, shape index: {}]
  %s1 = inlined_call_operand.hbm [shape: bf16[896,512], index: 1, kind: input, shape index: {}]
  %s2 = inlined_call_operand.vmem [shape: f32[1,512], index: 2, kind: input, shape index: {}]
  %s3 = inlined_call_operand.hbm [shape: bf16[512,512], index: 3, kind: input, shape index: {}]
  %s4 = inlined_call_operand.vmem [shape: f32[1,512], index: 4, kind: input, shape index: {}]
  %s5 = inlined_call_operand.hbm [shape: bf16[512,512], index: 5, kind: input, shape index: {}]
  %s6 = inlined_call_operand.vmem [shape: f32[1,512], index: 6, kind: input, shape index: {}]
  %s7 = inlined_call_operand.vmem [shape: bf16[512,128], index: 7, kind: input, shape index: {}]
  %s8 = inlined_call_operand.vmem [shape: f32[1,128], index: 8, kind: input, shape index: {}]
  %s9 = inlined_call_operand.vmem [shape: f32[16,128], index: 9, kind: output, shape index: {}]
  %s10 = sld [smem:[#allocation0]]
  $region58: #{mnist_mlp_forward.1} parent=0
    _
  %s12 = ssub.s32 1, %s10
  %s13 = scalar_select 0, %s12, %s10
  $region1: #{mnist_mlp_forward.1} parent=0
    #allocation2 [shape = 'u8[917504]{0}', space=vmem, size = 0xe0000, scoped, tag = 'input window, operand 1, single buffered']
    #allocation3 [shape = 's32[1]{0}', space=sflag, size = 0x4, scoped, tag = 'scoped memory for mnist_mlp_forward.1']
    #allocation4 [shape = 'u8[524288]{0}', space=vmem, size = 0x80000, scoped, tag = 'input window, operand 3, single buffered']
    #allocation5 [shape = 's32[1]{0}', space=sflag, size = 0x4, scoped, tag = 'scoped memory for mnist_mlp_forward.1']
    #allocation6 [shape = 'u8[524288]{0}', space=vmem, size = 0x80000, scoped, tag = 'input window, operand 5, single buffered']
    %14 = vsyncpa [#allocation3], 0
    %15 = vsyncpa [#allocation5], 0
    // Predicated region
    $region2: #{mnist_mlp_forward.1} parent=1 // pred_check
      _
    $region3: #{mnist_mlp_forward.1} parent=1 // pred_check_branch
      %17 = sbr.rel (0) target = $region5
    $region4: #{mnist_mlp_forward.1} parent=1 // pred_region
      _
    $region5: #{mnist_mlp_forward.1} parent=1 // pred_fallthru
      _
    // Predicated region
    $region6: #{mnist_mlp_forward.1} parent=1 // pred_check
      _
    $region7: #{mnist_mlp_forward.1} parent=1 // pred_check_branch
      %19 = sbr.rel (0) target = $region9
    $region8: #{mnist_mlp_forward.1} parent=1 // pred_region
      %s21 = ssub.s32 28672, 28672
      %22 = vsyncadd [#allocation3], %s21
      %s23 = sshll.u32 [#allocation2], 4
      %s24 = int_to_ptr.vmem [resolvable:$true] %s23
      %29 = dma.hbm_to_vmem [thread:$0]  %s1, 28672, %s24, [#allocation3], 256, 256, 16
    $region9: #{mnist_mlp_forward.1} parent=1 // pred_fallthru
      _
    // Predicated region
    $region10: #{mnist_mlp_forward.1} parent=1 // pred_check
      _
    $region11: #{mnist_mlp_forward.1} parent=1 // pred_check_branch
      %31 = sbr.rel (0) target = $region13
    $region12: #{mnist_mlp_forward.1} parent=1 // pred_region
      _
    $region13: #{mnist_mlp_forward.1} parent=1 // pred_fallthru
      _
    // Predicated region
    $region14: #{mnist_mlp_forward.1} parent=1 // pred_check
      _
    $region15: #{mnist_mlp_forward.1} parent=1 // pred_check_branch
      %33 = sbr.rel (0) target = $region17
    $region16: #{mnist_mlp_forward.1} parent=1 // pred_region
      %s35 = ssub.s32 16384, 16384
      %36 = vsyncadd [#allocation5], %s35
      %s37 = sshll.u32 [#allocation4], 4
      %s38 = int_to_ptr.vmem [resolvable:$true] %s37
      %43 = dma.hbm_to_vmem [thread:$0]  %s3, 16384, %s38, [#allocation5], 256, 256, 16
    $region17: #{mnist_mlp_forward.1} parent=1 // pred_fallthru
      _
    // Predicated region
    $region18: #{mnist_mlp_forward.1} parent=1 // pred_check
      _
    $region19: #{mnist_mlp_forward.1} parent=1 // pred_check_branch
      %45 = sbr.rel (0) target = $region21
    $region20: #{mnist_mlp_forward.1} parent=1 // pred_region
      _
    $region21: #{mnist_mlp_forward.1} parent=1 // pred_fallthru
      _
    // Predicated region
    $region22: #{mnist_mlp_forward.1} parent=1 // pred_check
      _
    $region23: #{mnist_mlp_forward.1} parent=1 // pred_check_branch
      %47 = sbr.rel (0) target = $region25
    $region24: #{mnist_mlp_forward.1} parent=1 // pred_region
      %s49 = ssub.s32 16384, 16384
      %50 = vsyncadd [#allocation5], %s49
      %s51 = sshll.u32 [#allocation6], 4
      %s52 = int_to_ptr.vmem [resolvable:$true] %s51
      %57 = dma.hbm_to_vmem [thread:$0]  %s5, 16384, %s52, [#allocation5], 256, 256, 16
    $region25: #{mnist_mlp_forward.1} parent=1 // pred_fallthru
      _
    // Predicated region
    $region26: #{mnist_mlp_forward.1} parent=1 // pred_check
      _
    $region27: #{mnist_mlp_forward.1} parent=1 // pred_check_branch
      %59 = sbr.rel (0) target = $region29
    $region28: #{mnist_mlp_forward.1} parent=1 // pred_region
      _
    $region29: #{mnist_mlp_forward.1} parent=1 // pred_fallthru
      _
    // Predicated region
    $region30: #{mnist_mlp_forward.1} parent=1 // pred_check
      _
    $region31: #{mnist_mlp_forward.1} parent=1 // pred_check_branch
      %61 = sbr.rel (0) target = $region33
    $region32: #{mnist_mlp_forward.1} parent=1 // pred_region
      _
    $region33: #{mnist_mlp_forward.1} parent=1 // pred_fallthru
      _
    // Predicated region
    $region34: #{mnist_mlp_forward.1} parent=1 // pred_check
      _
    $region35: #{mnist_mlp_forward.1} parent=1 // pred_check_branch
      %63 = sbr.rel (0) target = $region37
    $region36: #{mnist_mlp_forward.1} parent=1 // pred_region
      _
    $region37: #{mnist_mlp_forward.1} parent=1 // pred_fallthru
      _
    // Predicated region
    $region38: #{mnist_mlp_forward.1} parent=1 // pred_check
      _
    $region39: #{mnist_mlp_forward.1} parent=1 // pred_check_branch
      %65 = sbr.rel (0) target = $region41
    $region40: #{mnist_mlp_forward.1} parent=1 // pred_region
      %66 = dma.done [#allocation3], 28672
    $region41: #{mnist_mlp_forward.1} parent=1 // pred_fallthru
      _
    // Predicated region
    $region42: #{mnist_mlp_forward.1} parent=1 // pred_check
      _
    $region43: #{mnist_mlp_forward.1} parent=1 // pred_check_branch
      %68 = sbr.rel (0) target = $region45
    $region44: #{mnist_mlp_forward.1} parent=1 // pred_region
      %69 = dma.done [#allocation5], 16384
    $region45: #{mnist_mlp_forward.1} parent=1 // pred_fallthru
      _
    // Predicated region
    $region46: #{mnist_mlp_forward.1} parent=1 // pred_check
      _
    $region47: #{mnist_mlp_forward.1} parent=1 // pred_check_branch
      %71 = sbr.rel (0) target = $region49
    $region48: #{mnist_mlp_forward.1} parent=1 // pred_region
      %72 = dma.done [#allocation5], 16384
    $region49: #{mnist_mlp_forward.1} parent=1 // pred_fallthru
      _
    %v74 = vld [vmem:[%s0] sm:$0xff]
    %v75 = vld [vmem:[%s0 + $0x8] sm:$0xff]
    %v76 = vld [vmem:[%s0 + $0x10] sm:$0xff]
    %v77 = vld [vmem:[%s0 + $0x18] sm:$0xff]
    %v78 = vld [vmem:[%s0 + $0x20] sm:$0xff]
    %v79 = vld [vmem:[%s0 + $0x28] sm:$0xff]
    %v80 = vld [vmem:[%s0 + $0x30] sm:$0xff]
    %v81 = vld [vmem:[%s0 + $0x38] sm:$0xff]
    %v82 = vld [vmem:[%s0 + $0x40] sm:$0xff]
    %v83 = vld [vmem:[%s0 + $0x48] sm:$0xff]
    %v84 = vld [vmem:[%s0 + $0x50] sm:$0xff]
    %v85 = vld [vmem:[%s0 + $0x58] sm:$0xff]
    %v86 = vld [vmem:[%s0 + $0x60] sm:$0xff]
    %v87 = vld [vmem:[%s0 + $0x68] sm:$0xff]
    %v88 = vpack.c.bf16 %v81, %v74
    %v89 = vpack.c.bf16 %v82, %v75
    %v90 = vpack.c.bf16 %v83, %v76
    %v91 = vpack.c.bf16 %v84, %v77
    %v92 = vpack.c.bf16 %v85, %v78
    %v93 = vpack.c.bf16 %v86, %v79
    %v94 = vpack.c.bf16 %v87, %v80
    %v95 = vld [vmem:[#allocation2] sm:$0xff]
    %v96 = vld [vmem:[#allocation2 + $0x8] sm:$0xff]
    %v97 = vld [vmem:[#allocation2 + $0x10] sm:$0xff]
    %v98 = vld [vmem:[#allocation2 + $0x18] sm:$0xff]
    %v99 = vld [vmem:[#allocation2 + $0x20] sm:$0xff]
    %v100 = vld [vmem:[#allocation2 + $0x28] sm:$0xff]
    %v101 = vld [vmem:[#allocation2 + $0x30] sm:$0xff]
    %v102 = vld [vmem:[#allocation2 + $0x38] sm:$0xff]
    %v103 = vld [vmem:[#allocation2 + $0x40] sm:$0xff]
    %v104 = vld [vmem:[#allocation2 + $0x48] sm:$0xff]
    %v105 = vld [vmem:[#allocation2 + $0x50] sm:$0xff]
    %v106 = vld [vmem:[#allocation2 + $0x58] sm:$0xff]
    %v107 = vld [vmem:[#allocation2 + $0x60] sm:$0xff]
    %v108 = vld [vmem:[#allocation2 + $0x68] sm:$0xff]
    %v109 = vld [vmem:[#allocation2 + $0x70] sm:$0xff]
    %v110 = vld [vmem:[#allocation2 + $0x78] sm:$0xff]
    %v111 = vld [vmem:[#allocation2 + $0x80] sm:$0xff]
    %v112 = vld [vmem:[#allocation2 + $0x88] sm:$0xff]
    %v113 = vld [vmem:[#allocation2 + $0x90] sm:$0xff]
    %v114 = vld [vmem:[#allocation2 + $0x98] sm:$0xff]
    %v115 = vld [vmem:[#allocation2 + $0xa0] sm:$0xff]
    %v116 = vld [vmem:[#allocation2 + $0xa8] sm:$0xff]
    %v117 = vld [vmem:[#allocation2 + $0xb0] sm:$0xff]
    %v118 = vld [vmem:[#allocation2 + $0xb8] sm:$0xff]
    %v119 = vld [vmem:[#allocation2 + $0xc0] sm:$0xff]
    %v120 = vld [vmem:[#allocation2 + $0xc8] sm:$0xff]
    %v121 = vld [vmem:[#allocation2 + $0xd0] sm:$0xff]
    %v122 = vld [vmem:[#allocation2 + $0xd8] sm:$0xff]
    %v123 = vld [vmem:[#allocation2 + $0xe0] sm:$0xff]
    %v124 = vld [vmem:[#allocation2 + $0xe8] sm:$0xff]
    %v125 = vld [vmem:[#allocation2 + $0xf0] sm:$0xff]
    %v126 = vld [vmem:[#allocation2 + $0xf8] sm:$0xff]
    %v127 = vld [vmem:[#allocation2 + $0x100] sm:$0xff]
    %v128 = vld [vmem:[#allocation2 + $0x108] sm:$0xff]
    %v129 = vld [vmem:[#allocation2 + $0x110] sm:$0xff]
    %v130 = vld [vmem:[#allocation2 + $0x118] sm:$0xff]
    %v131 = vld [vmem:[#allocation2 + $0x120] sm:$0xff]
    %v132 = vld [vmem:[#allocation2 + $0x128] sm:$0xff]
    %v133 = vld [vmem:[#allocation2 + $0x130] sm:$0xff]
    %v134 = vld [vmem:[#allocation2 + $0x138] sm:$0xff]
    %v135 = vld [vmem:[#allocation2 + $0x140] sm:$0xff]
    %v136 = vld [vmem:[#allocation2 + $0x148] sm:$0xff]
    %v137 = vld [vmem:[#allocation2 + $0x150] sm:$0xff]
    %v138 = vld [vmem:[#allocation2 + $0x158] sm:$0xff]
    %v139 = vld [vmem:[#allocation2 + $0x160] sm:$0xff]
    %v140 = vld [vmem:[#allocation2 + $0x168] sm:$0xff]
    %v141 = vld [vmem:[#allocation2 + $0x170] sm:$0xff]
    %v142 = vld [vmem:[#allocation2 + $0x178] sm:$0xff]
    %v143 = vld [vmem:[#allocation2 + $0x180] sm:$0xff]
    %v144 = vld [vmem:[#allocation2 + $0x188] sm:$0xff]
    %v145 = vld [vmem:[#allocation2 + $0x190] sm:$0xff]
    %v146 = vld [vmem:[#allocation2 + $0x198] sm:$0xff]
    %v147 = vld [vmem:[#allocation2 + $0x1a0] sm:$0xff]
    %v148 = vld [vmem:[#allocation2 + $0x1a8] sm:$0xff]
    %v149 = vld [vmem:[#allocation2 + $0x1b0] sm:$0xff]
    %v150 = vld [vmem:[#allocation2 + $0x1b8] sm:$0xff]
    %v151 = vld [vmem:[#allocation2 + $0x1c0] sm:$0xff]
    %v152 = vld [vmem:[#allocation2 + $0x1c8] sm:$0xff]
    %v153 = vld [vmem:[#allocation2 + $0x1d0] sm:$0xff]
    %v154 = vld [vmem:[#allocation2 + $0x1d8] sm:$0xff]
    %v155 = vld [vmem:[#allocation2 + $0x1e0] sm:$0xff]
    %v156 = vld [vmem:[#allocation2 + $0x1e8] sm:$0xff]
    %v157 = vld [vmem:[#allocation2 + $0x1f0] sm:$0xff]
    %v158 = vld [vmem:[#allocation2 + $0x1f8] sm:$0xff]
    %v159 = vld [vmem:[#allocation2 + $0x200] sm:$0xff]
    %v160 = vld [vmem:[#allocation2 + $0x208] sm:$0xff]
    %v161 = vld [vmem:[#allocation2 + $0x210] sm:$0xff]
    %v162 = vld [vmem:[#allocation2 + $0x218] sm:$0xff]
    %v163 = vld [vmem:[#allocation2 + $0x220] sm:$0xff]
    %v164 = vld [vmem:[#allocation2 + $0x228] sm:$0xff]
    %v165 = vld [vmem:[#allocation2 + $0x230] sm:$0xff]
    %v166 = vld [vmem:[#allocation2 + $0x238] sm:$0xff]
    %v167 = vld [vmem:[#allocation2 + $0x240] sm:$0xff]
    %v168 = vld [vmem:[#allocation2 + $0x248] sm:$0xff]
    %v169 = vld [vmem:[#allocation2 + $0x250] sm:$0xff]
    %v170 = vld [vmem:[#allocation2 + $0x258] sm:$0xff]
    %v171 = vld [vmem:[#allocation2 + $0x260] sm:$0xff]
    %v172 = vld [vmem:[#allocation2 + $0x268] sm:$0xff]
    %v173 = vld [vmem:[#allocation2 + $0x270] sm:$0xff]
    %v174 = vld [vmem:[#allocation2 + $0x278] sm:$0xff]
    %v175 = vld [vmem:[#allocation2 + $0x280] sm:$0xff]
    %v176 = vld [vmem:[#allocation2 + $0x288] sm:$0xff]
    %v177 = vld [vmem:[#allocation2 + $0x290] sm:$0xff]
    %v178 = vld [vmem:[#allocation2 + $0x298] sm:$0xff]
    %v179 = vld [vmem:[#allocation2 + $0x2a0] sm:$0xff]
    %v180 = vld [vmem:[#allocation2 + $0x2a8] sm:$0xff]
    %v181 = vld [vmem:[#allocation2 + $0x2b0] sm:$0xff]
    %v182 = vld [vmem:[#allocation2 + $0x2b8] sm:$0xff]
    %v183 = vld [vmem:[#allocation2 + $0x2c0] sm:$0xff]
    %v184 = vld [vmem:[#allocation2 + $0x2c8] sm:$0xff]
    %v185 = vld [vmem:[#allocation2 + $0x2d0] sm:$0xff]
    %v186 = vld [vmem:[#allocation2 + $0x2d8] sm:$0xff]
    %v187 = vld [vmem:[#allocation2 + $0x2e0] sm:$0xff]
    %v188 = vld [vmem:[#allocation2 + $0x2e8] sm:$0xff]
    %v189 = vld [vmem:[#allocation2 + $0x2f0] sm:$0xff]
    %v190 = vld [vmem:[#allocation2 + $0x2f8] sm:$0xff]
    %v191 = vld [vmem:[#allocation2 + $0x300] sm:$0xff]
    %v192 = vld [vmem:[#allocation2 + $0x308] sm:$0xff]
    %v193 = vld [vmem:[#allocation2 + $0x310] sm:$0xff]
    %v194 = vld [vmem:[#allocation2 + $0x318] sm:$0xff]
    %v195 = vld [vmem:[#allocation2 + $0x320] sm:$0xff]
    %v196 = vld [vmem:[#allocation2 + $0x328] sm:$0xff]
    %v197 = vld [vmem:[#allocation2 + $0x330] sm:$0xff]
    %v198 = vld [vmem:[#allocation2 + $0x338] sm:$0xff]
    %v199 = vld [vmem:[#allocation2 + $0x340] sm:$0xff]
    %v200 = vld [vmem:[#allocation2 + $0x348] sm:$0xff]
    %v201 = vld [vmem:[#allocation2 + $0x350] sm:$0xff]
    %v202 = vld [vmem:[#allocation2 + $0x358] sm:$0xff]
    %v203 = vld [vmem:[#allocation2 + $0x360] sm:$0xff]
    %v204 = vld [vmem:[#allocation2 + $0x368] sm:$0xff]
    %v205 = vld [vmem:[#allocation2 + $0x370] sm:$0xff]
    %v206 = vld [vmem:[#allocation2 + $0x378] sm:$0xff]
    %v207 = vld [vmem:[#allocation2 + $0x380] sm:$0xff]
    %v208 = vld [vmem:[#allocation2 + $0x388] sm:$0xff]
    %v209 = vld [vmem:[#allocation2 + $0x390] sm:$0xff]
    %v210 = vld [vmem:[#allocation2 + $0x398] sm:$0xff]
    %v211 = vld [vmem:[#allocation2 + $0x3a0] sm:$0xff]
    %v212 = vld [vmem:[#allocation2 + $0x3a8] sm:$0xff]
    %v213 = vld [vmem:[#allocation2 + $0x3b0] sm:$0xff]
    %v214 = vld [vmem:[#allocation2 + $0x3b8] sm:$0xff]
    %v215 = vld [vmem:[#allocation2 + $0x3c0] sm:$0xff]
    %v216 = vld [vmem:[#allocation2 + $0x3c8] sm:$0xff]
    %v217 = vld [vmem:[#allocation2 + $0x3d0] sm:$0xff]
    %v218 = vld [vmem:[#allocation2 + $0x3d8] sm:$0xff]
    %v219 = vld [vmem:[#allocation2 + $0x3e0] sm:$0xff]
    %v220 = vld [vmem:[#allocation2 + $0x3e8] sm:$0xff]
    %v221 = vld [vmem:[#allocation2 + $0x3f0] sm:$0xff]
    %v222 = vld [vmem:[#allocation2 + $0x3f8] sm:$0xff]
    %v223 = vld [vmem:[#allocation2 + $0x400] sm:$0xff]
    %v224 = vld [vmem:[#allocation2 + $0x408] sm:$0xff]
    %v225 = vld [vmem:[#allocation2 + $0x410] sm:$0xff]
    %v226 = vld [vmem:[#allocation2 + $0x418] sm:$0xff]
    %v227 = vld [vmem:[#allocation2 + $0x420] sm:$0xff]
    %v228 = vld [vmem:[#allocation2 + $0x428] sm:$0xff]
    %v229 = vld [vmem:[#allocation2 + $0x430] sm:$0xff]
    %v230 = vld [vmem:[#allocation2 + $0x438] sm:$0xff]
    %v231 = vld [vmem:[#allocation2 + $0x440] sm:$0xff]
    %v232 = vld [vmem:[#allocation2 + $0x448] sm:$0xff]
    %v233 = vld [vmem:[#allocation2 + $0x450] sm:$0xff]
    %v234 = vld [vmem:[#allocation2 + $0x458] sm:$0xff]
    %v235 = vld [vmem:[#allocation2 + $0x460] sm:$0xff]
    %v236 = vld [vmem:[#allocation2 + $0x468] sm:$0xff]
    %v237 = vld [vmem:[#allocation2 + $0x470] sm:$0xff]
    %v238 = vld [vmem:[#allocation2 + $0x478] sm:$0xff]
    %v239 = vld [vmem:[#allocation2 + $0x480] sm:$0xff]
    %v240 = vld [vmem:[#allocation2 + $0x488] sm:$0xff]
    %v241 = vld [vmem:[#allocation2 + $0x490] sm:$0xff]
    %v242 = vld [vmem:[#allocation2 + $0x498] sm:$0xff]
    %v243 = vld [vmem:[#allocation2 + $0x4a0] sm:$0xff]
    %v244 = vld [vmem:[#allocation2 + $0x4a8] sm:$0xff]
    %v245 = vld [vmem:[#allocation2 + $0x4b0] sm:$0xff]
    %v246 = vld [vmem:[#allocation2 + $0x4b8] sm:$0xff]
    %v247 = vld [vmem:[#allocation2 + $0x4c0] sm:$0xff]
    %v248 = vld [vmem:[#allocation2 + $0x4c8] sm:$0xff]
    %v249 = vld [vmem:[#allocation2 + $0x4d0] sm:$0xff]
    %v250 = vld [vmem:[#allocation2 + $0x4d8] sm:$0xff]
    %v251 = vld [vmem:[#allocation2 + $0x4e0] sm:$0xff]
    %v252 = vld [vmem:[#allocation2 + $0x4e8] sm:$0xff]
    %v253 = vld [vmem:[#allocation2 + $0x4f0] sm:$0xff]
    %v254 = vld [vmem:[#allocation2 + $0x4f8] sm:$0xff]
    %v255 = vld [vmem:[#allocation2 + $0x500] sm:$0xff]
    %v256 = vld [vmem:[#allocation2 + $0x508] sm:$0xff]
    %v257 = vld [vmem:[#allocation2 + $0x510] sm:$0xff]
    %v258 = vld [vmem:[#allocation2 + $0x518] sm:$0xff]
    %v259 = vld [vmem:[#allocation2 + $0x520] sm:$0xff]
    %v260 = vld [vmem:[#allocation2 + $0x528] sm:$0xff]
    %v261 = vld [vmem:[#allocation2 + $0x530] sm:$0xff]
    %v262 = vld [vmem:[#allocation2 + $0x538] sm:$0xff]
    %v263 = vld [vmem:[#allocation2 + $0x540] sm:$0xff]
    %v264 = vld [vmem:[#allocation2 + $0x548] sm:$0xff]
    %v265 = vld [vmem:[#allocation2 + $0x550] sm:$0xff]
    %v266 = vld [vmem:[#allocation2 + $0x558] sm:$0xff]
    %v267 = vld [vmem:[#allocation2 + $0x560] sm:$0xff]
    %v268 = vld [vmem:[#allocation2 + $0x568] sm:$0xff]
    %v269 = vld [vmem:[#allocation2 + $0x570] sm:$0xff]
    %v270 = vld [vmem:[#allocation2 + $0x578] sm:$0xff]
    %v271 = vld [vmem:[#allocation2 + $0x580] sm:$0xff]
    %v272 = vld [vmem:[#allocation2 + $0x588] sm:$0xff]
    %v273 = vld [vmem:[#allocation2 + $0x590] sm:$0xff]
    %v274 = vld [vmem:[#allocation2 + $0x598] sm:$0xff]
    %v275 = vld [vmem:[#allocation2 + $0x5a0] sm:$0xff]
    %v276 = vld [vmem:[#allocation2 + $0x5a8] sm:$0xff]
    %v277 = vld [vmem:[#allocation2 + $0x5b0] sm:$0xff]
    %v278 = vld [vmem:[#allocation2 + $0x5b8] sm:$0xff]
    %v279 = vld [vmem:[#allocation2 + $0x5c0] sm:$0xff]
    %v280 = vld [vmem:[#allocation2 + $0x5c8] sm:$0xff]
    %v281 = vld [vmem:[#allocation2 + $0x5d0] sm:$0xff]
    %v282 = vld [vmem:[#allocation2 + $0x5d8] sm:$0xff]
    %v283 = vld [vmem:[#allocation2 + $0x5e0] sm:$0xff]
    %v284 = vld [vmem:[#allocation2 + $0x5e8] sm:$0xff]
    %v285 = vld [vmem:[#allocation2 + $0x5f0] sm:$0xff]
    %v286 = vld [vmem:[#allocation2 + $0x5f8] sm:$0xff]
    %v287 = vld [vmem:[#allocation2 + $0x600] sm:$0xff]
    %v288 = vld [vmem:[#allocation2 + $0x608] sm:$0xff]
    %v289 = vld [vmem:[#allocation2 + $0x610] sm:$0xff]
    %v290 = vld [vmem:[#allocation2 + $0x618] sm:$0xff]
    %v291 = vld [vmem:[#allocation2 + $0x620] sm:$0xff]
    %v292 = vld [vmem:[#allocation2 + $0x628] sm:$0xff]
    %v293 = vld [vmem:[#allocation2 + $0x630] sm:$0xff]
    %v294 = vld [vmem:[#allocation2 + $0x638] sm:$0xff]
    %v295 = vld [vmem:[#allocation2 + $0x640] sm:$0xff]
    %v296 = vld [vmem:[#allocation2 + $0x648] sm:$0xff]
    %v297 = vld [vmem:[#allocation2 + $0x650] sm:$0xff]
    %v298 = vld [vmem:[#allocation2 + $0x658] sm:$0xff]
    %v299 = vld [vmem:[#allocation2 + $0x660] sm:$0xff]
    %v300 = vld [vmem:[#allocation2 + $0x668] sm:$0xff]
    %v301 = vld [vmem:[#allocation2 + $0x670] sm:$0xff]
    %v302 = vld [vmem:[#allocation2 + $0x678] sm:$0xff]
    %v303 = vld [vmem:[#allocation2 + $0x680] sm:$0xff]
    %v304 = vld [vmem:[#allocation2 + $0x688] sm:$0xff]
    %v305 = vld [vmem:[#allocation2 + $0x690] sm:$0xff]
    %v306 = vld [vmem:[#allocation2 + $0x698] sm:$0xff]
    %v307 = vld [vmem:[#allocation2 + $0x6a0] sm:$0xff]
    %v308 = vld [vmem:[#allocation2 + $0x6a8] sm:$0xff]
    %v309 = vld [vmem:[#allocation2 + $0x6b0] sm:$0xff]
    %v310 = vld [vmem:[#allocation2 + $0x6b8] sm:$0xff]
    %v311 = vld [vmem:[#allocation2 + $0x6c0] sm:$0xff]
    %v312 = vld [vmem:[#allocation2 + $0x6c8] sm:$0xff]
    %v313 = vld [vmem:[#allocation2 + $0x6d0] sm:$0xff]
    %v314 = vld [vmem:[#allocation2 + $0x6d8] sm:$0xff]
    %v315 = vld [vmem:[#allocation2 + $0x6e0] sm:$0xff]
    %v316 = vld [vmem:[#allocation2 + $0x6e8] sm:$0xff]
    %v317 = vld [vmem:[#allocation2 + $0x6f0] sm:$0xff]
    %v318 = vld [vmem:[#allocation2 + $0x6f8] sm:$0xff]
    %v319 = vld [vmem:[%s2] sm:$0xf]
    %v321 = vlaneseq
    %v322 = vshrl.u32 %v321, 7
    %v323 = vsub.s32 0, %v322
    %v324 = vrot.slane %v319, %v323
    %v325 = vlaneseq
    %v326 = vshrl.u32 %v325, 7
    %v327 = vsub.s32 1, %v326
    %v328 = vrot.slane %v319, %v327
    %v329 = vlaneseq
    %v330 = vshrl.u32 %v329, 7
    %v331 = vsub.s32 2, %v330
    %v332 = vrot.slane %v319, %v331
    %v333 = vlaneseq
    %v334 = vshrl.u32 %v333, 7
    %v335 = vsub.s32 3, %v334
    %v336 = vrot.slane %v319, %v335
    %v565 = vunpack.c.l.b16 %v95
    %v566 = vunpack.c.h.b16 %v95
    %v567 = vunpack.c.l.b16 %v96
    %v568 = vunpack.c.h.b16 %v96
    %v569 = vunpack.c.l.b16 %v97
    %v570 = vunpack.c.h.b16 %v97
    %v571 = vunpack.c.l.b16 %v98
    %v572 = vunpack.c.h.b16 %v98
    %v573 = vunpack.c.l.b16 %v99
    %v574 = vunpack.c.h.b16 %v99
    %v575 = vunpack.c.l.b16 %v100
    %v576 = vunpack.c.h.b16 %v100
    %v577 = vunpack.c.l.b16 %v101
    %v578 = vunpack.c.h.b16 %v101
    %v579 = vunpack.c.l.b16 %v102
    %v580 = vunpack.c.h.b16 %v102
    %v581 = vunpack.c.l.b16 %v103
    %v582 = vunpack.c.h.b16 %v103
    %v583 = vunpack.c.l.b16 %v104
    %v584 = vunpack.c.h.b16 %v104
    %v585 = vunpack.c.l.b16 %v105
    %v586 = vunpack.c.h.b16 %v105
    %v587 = vunpack.c.l.b16 %v106
    %v588 = vunpack.c.h.b16 %v106
    %v589 = vunpack.c.l.b16 %v107
    %v590 = vunpack.c.h.b16 %v107
    %v591 = vunpack.c.l.b16 %v108
    %v592 = vunpack.c.h.b16 %v108
    %v593 = vunpack.c.l.b16 %v109
    %v594 = vunpack.c.h.b16 %v109
    %v595 = vunpack.c.l.b16 %v110
    %v596 = vunpack.c.h.b16 %v110
    %v597 = vunpack.c.l.b16 %v111
    %v598 = vunpack.c.h.b16 %v111
    %v599 = vunpack.c.l.b16 %v112
    %v600 = vunpack.c.h.b16 %v112
    %v601 = vunpack.c.l.b16 %v113
    %v602 = vunpack.c.h.b16 %v113
    %v603 = vunpack.c.l.b16 %v114
    %v604 = vunpack.c.h.b16 %v114
    %v605 = vunpack.c.l.b16 %v115
    %v606 = vunpack.c.h.b16 %v115
    %v607 = vunpack.c.l.b16 %v116
    %v608 = vunpack.c.h.b16 %v116
    %v609 = vunpack.c.l.b16 %v117
    %v610 = vunpack.c.h.b16 %v117
    %v611 = vunpack.c.l.b16 %v118
    %v612 = vunpack.c.h.b16 %v118
    %v613 = vunpack.c.l.b16 %v119
    %v614 = vunpack.c.h.b16 %v119
    %v615 = vunpack.c.l.b16 %v120
    %v616 = vunpack.c.h.b16 %v120
    %v617 = vunpack.c.l.b16 %v121
    %v618 = vunpack.c.h.b16 %v121
    %v619 = vunpack.c.l.b16 %v122
    %v620 = vunpack.c.h.b16 %v122
    %v621 = vunpack.c.l.b16 %v123
    %v622 = vunpack.c.h.b16 %v123
    %v623 = vunpack.c.l.b16 %v124
    %v624 = vunpack.c.h.b16 %v124
    %v625 = vunpack.c.l.b16 %v125
    %v626 = vunpack.c.h.b16 %v125
    %v627 = vunpack.c.l.b16 %v126
    %v628 = vunpack.c.h.b16 %v126
    %v629 = vunpack.c.l.b16 %v127
    %v630 = vunpack.c.h.b16 %v127
    %v631 = vunpack.c.l.b16 %v128
    %v632 = vunpack.c.h.b16 %v128
    %v633 = vunpack.c.l.b16 %v129
    %v634 = vunpack.c.h.b16 %v129
    %v635 = vunpack.c.l.b16 %v130
    %v636 = vunpack.c.h.b16 %v130
    %v637 = vunpack.c.l.b16 %v131
    %v638 = vunpack.c.h.b16 %v131
    %v639 = vunpack.c.l.b16 %v132
    %v640 = vunpack.c.h.b16 %v132
    %v641 = vunpack.c.l.b16 %v133
    %v642 = vunpack.c.h.b16 %v133
    %v643 = vunpack.c.l.b16 %v134
    %v644 = vunpack.c.h.b16 %v134
    %v645 = vunpack.c.l.b16 %v135
    %v646 = vunpack.c.h.b16 %v135
    %v647 = vunpack.c.l.b16 %v136
    %v648 = vunpack.c.h.b16 %v136
    %v649 = vunpack.c.l.b16 %v137
    %v650 = vunpack.c.h.b16 %v137
    %v651 = vunpack.c.l.b16 %v138
    %v652 = vunpack.c.h.b16 %v138
    %v653 = vunpack.c.l.b16 %v139
    %v654 = vunpack.c.h.b16 %v139
    %v655 = vunpack.c.l.b16 %v140
    %v656 = vunpack.c.h.b16 %v140
    %v657 = vunpack.c.l.b16 %v141
    %v658 = vunpack.c.h.b16 %v141
    %v659 = vunpack.c.l.b16 %v142
    %v660 = vunpack.c.h.b16 %v142
    %v661 = vunpack.c.l.b16 %v143
    %v662 = vunpack.c.h.b16 %v143
    %v663 = vunpack.c.l.b16 %v144
    %v664 = vunpack.c.h.b16 %v144
    %v665 = vunpack.c.l.b16 %v145
    %v666 = vunpack.c.h.b16 %v145
    %v667 = vunpack.c.l.b16 %v146
    %v668 = vunpack.c.h.b16 %v146
    %v669 = vunpack.c.l.b16 %v147
    %v670 = vunpack.c.h.b16 %v147
    %v671 = vunpack.c.l.b16 %v148
    %v672 = vunpack.c.h.b16 %v148
    %v673 = vunpack.c.l.b16 %v149
    %v674 = vunpack.c.h.b16 %v149
    %v675 = vunpack.c.l.b16 %v150
    %v676 = vunpack.c.h.b16 %v150
    %v677 = vunpack.c.l.b16 %v151
    %v678 = vunpack.c.h.b16 %v151
    %v679 = vunpack.c.l.b16 %v152
    %v680 = vunpack.c.h.b16 %v152
    %v681 = vunpack.c.l.b16 %v153
    %v682 = vunpack.c.h.b16 %v153
    %v683 = vunpack.c.l.b16 %v154
    %v684 = vunpack.c.h.b16 %v154
    %v685 = vunpack.c.l.b16 %v155
    %v686 = vunpack.c.h.b16 %v155
    %v687 = vunpack.c.l.b16 %v156
    %v688 = vunpack.c.h.b16 %v156
    %v689 = vunpack.c.l.b16 %v157
    %v690 = vunpack.c.h.b16 %v157
    %v691 = vunpack.c.l.b16 %v158
    %v692 = vunpack.c.h.b16 %v158
    %v693 = vunpack.c.l.b16 %v159
    %v694 = vunpack.c.h.b16 %v159
    %v695 = vunpack.c.l.b16 %v160
    %v696 = vunpack.c.h.b16 %v160
    %v697 = vunpack.c.l.b16 %v161
    %v698 = vunpack.c.h.b16 %v161
    %v699 = vunpack.c.l.b16 %v162
    %v700 = vunpack.c.h.b16 %v162
    %v701 = vunpack.c.l.b16 %v163
    %v702 = vunpack.c.h.b16 %v163
    %v703 = vunpack.c.l.b16 %v164
    %v704 = vunpack.c.h.b16 %v164
    %v705 = vunpack.c.l.b16 %v165
    %v706 = vunpack.c.h.b16 %v165
    %v707 = vunpack.c.l.b16 %v166
    %v708 = vunpack.c.h.b16 %v166
    %v709 = vunpack.c.l.b16 %v167
    %v710 = vunpack.c.h.b16 %v167
    %v711 = vunpack.c.l.b16 %v168
    %v712 = vunpack.c.h.b16 %v168
    %v713 = vunpack.c.l.b16 %v169
    %v714 = vunpack.c.h.b16 %v169
    %v715 = vunpack.c.l.b16 %v170
    %v716 = vunpack.c.h.b16 %v170
    %v717 = vunpack.c.l.b16 %v171
    %v718 = vunpack.c.h.b16 %v171
    %v719 = vunpack.c.l.b16 %v172
    %v720 = vunpack.c.h.b16 %v172
    %v721 = vunpack.c.l.b16 %v173
    %v722 = vunpack.c.h.b16 %v173
    %v723 = vunpack.c.l.b16 %v174
    %v724 = vunpack.c.h.b16 %v174
    %v725 = vunpack.c.l.b16 %v175
    %v726 = vunpack.c.h.b16 %v175
    %v727 = vunpack.c.l.b16 %v176
    %v728 = vunpack.c.h.b16 %v176
    %v729 = vunpack.c.l.b16 %v177
    %v730 = vunpack.c.h.b16 %v177
    %v731 = vunpack.c.l.b16 %v178
    %v732 = vunpack.c.h.b16 %v178
    %v733 = vunpack.c.l.b16 %v179
    %v734 = vunpack.c.h.b16 %v179
    %v735 = vunpack.c.l.b16 %v180
    %v736 = vunpack.c.h.b16 %v180
    %v737 = vunpack.c.l.b16 %v181
    %v738 = vunpack.c.h.b16 %v181
    %v739 = vunpack.c.l.b16 %v182
    %v740 = vunpack.c.h.b16 %v182
    %v741 = vunpack.c.l.b16 %v183
    %v742 = vunpack.c.h.b16 %v183
    %v743 = vunpack.c.l.b16 %v184
    %v744 = vunpack.c.h.b16 %v184
    %v745 = vunpack.c.l.b16 %v185
    %v746 = vunpack.c.h.b16 %v185
    %v747 = vunpack.c.l.b16 %v186
    %v748 = vunpack.c.h.b16 %v186
    %v749 = vunpack.c.l.b16 %v187
    %v750 = vunpack.c.h.b16 %v187
    %v751 = vunpack.c.l.b16 %v188
    %v752 = vunpack.c.h.b16 %v188
    %v753 = vunpack.c.l.b16 %v189
    %v754 = vunpack.c.h.b16 %v189
    %v755 = vunpack.c.l.b16 %v190
    %v756 = vunpack.c.h.b16 %v190
    %v757 = vunpack.c.l.b16 %v191
    %v758 = vunpack.c.h.b16 %v191
    %v759 = vunpack.c.l.b16 %v192
    %v760 = vunpack.c.h.b16 %v192
    %v761 = vunpack.c.l.b16 %v193
    %v762 = vunpack.c.h.b16 %v193
    %v763 = vunpack.c.l.b16 %v194
    %v764 = vunpack.c.h.b16 %v194
    %v765 = vunpack.c.l.b16 %v195
    %v766 = vunpack.c.h.b16 %v195
    %v767 = vunpack.c.l.b16 %v196
    %v768 = vunpack.c.h.b16 %v196
    %v769 = vunpack.c.l.b16 %v197
    %v770 = vunpack.c.h.b16 %v197
    %v771 = vunpack.c.l.b16 %v198
    %v772 = vunpack.c.h.b16 %v198
    %v773 = vunpack.c.l.b16 %v199
    %v774 = vunpack.c.h.b16 %v199
    %v775 = vunpack.c.l.b16 %v200
    %v776 = vunpack.c.h.b16 %v200
    %v777 = vunpack.c.l.b16 %v201
    %v778 = vunpack.c.h.b16 %v201
    %v779 = vunpack.c.l.b16 %v202
    %v780 = vunpack.c.h.b16 %v202
    %v781 = vunpack.c.l.b16 %v203
    %v782 = vunpack.c.h.b16 %v203
    %v783 = vunpack.c.l.b16 %v204
    %v784 = vunpack.c.h.b16 %v204
    %v785 = vunpack.c.l.b16 %v205
    %v786 = vunpack.c.h.b16 %v205
    %v787 = vunpack.c.l.b16 %v206
    %v788 = vunpack.c.h.b16 %v206
    %v789 = vunpack.c.l.b16 %v207
    %v790 = vunpack.c.h.b16 %v207
    %v791 = vunpack.c.l.b16 %v208
    %v792 = vunpack.c.h.b16 %v208
    %v793 = vunpack.c.l.b16 %v209
    %v794 = vunpack.c.h.b16 %v209
    %v795 = vunpack.c.l.b16 %v210
    %v796 = vunpack.c.h.b16 %v210
    %v797 = vunpack.c.l.b16 %v211
    %v798 = vunpack.c.h.b16 %v211
    %v799 = vunpack.c.l.b16 %v212
    %v800 = vunpack.c.h.b16 %v212
    %v801 = vunpack.c.l.b16 %v213
    %v802 = vunpack.c.h.b16 %v213
    %v803 = vunpack.c.l.b16 %v214
    %v804 = vunpack.c.h.b16 %v214
    %v805 = vunpack.c.l.b16 %v215
    %v806 = vunpack.c.h.b16 %v215
    %v807 = vunpack.c.l.b16 %v216
    %v808 = vunpack.c.h.b16 %v216
    %v809 = vunpack.c.l.b16 %v217
    %v810 = vunpack.c.h.b16 %v217
    %v811 = vunpack.c.l.b16 %v218
    %v812 = vunpack.c.h.b16 %v218
    %v813 = vunpack.c.l.b16 %v219
    %v814 = vunpack.c.h.b16 %v219
    %v815 = vunpack.c.l.b16 %v220
    %v816 = vunpack.c.h.b16 %v220
    %v817 = vunpack.c.l.b16 %v221
    %v818 = vunpack.c.h.b16 %v221
    %v819 = vunpack.c.l.b16 %v222
    %v820 = vunpack.c.h.b16 %v222
    %v821 = vunpack.c.l.b16 %v223
    %v822 = vunpack.c.h.b16 %v223
    %v823 = vunpack.c.l.b16 %v224
    %v824 = vunpack.c.h.b16 %v224
    %v825 = vunpack.c.l.b16 %v225
    %v826 = vunpack.c.h.b16 %v225
    %v827 = vunpack.c.l.b16 %v226
    %v828 = vunpack.c.h.b16 %v226
    %v829 = vunpack.c.l.b16 %v227
    %v830 = vunpack.c.h.b16 %v227
    %v831 = vunpack.c.l.b16 %v228
    %v832 = vunpack.c.h.b16 %v228
    %v833 = vunpack.c.l.b16 %v229
    %v834 = vunpack.c.h.b16 %v229
    %v835 = vunpack.c.l.b16 %v230
    %v836 = vunpack.c.h.b16 %v230
    %v837 = vunpack.c.l.b16 %v231
    %v838 = vunpack.c.h.b16 %v231
    %v839 = vunpack.c.l.b16 %v232
    %v840 = vunpack.c.h.b16 %v232
    %v841 = vunpack.c.l.b16 %v233
    %v842 = vunpack.c.h.b16 %v233
    %v843 = vunpack.c.l.b16 %v234
    %v844 = vunpack.c.h.b16 %v234
    %v845 = vunpack.c.l.b16 %v235
    %v846 = vunpack.c.h.b16 %v235
    %v847 = vunpack.c.l.b16 %v236
    %v848 = vunpack.c.h.b16 %v236
    %v849 = vunpack.c.l.b16 %v237
    %v850 = vunpack.c.h.b16 %v237
    %v851 = vunpack.c.l.b16 %v238
    %v852 = vunpack.c.h.b16 %v238
    %v853 = vunpack.c.l.b16 %v239
    %v854 = vunpack.c.h.b16 %v239
    %v855 = vunpack.c.l.b16 %v240
    %v856 = vunpack.c.h.b16 %v240
    %v857 = vunpack.c.l.b16 %v241
    %v858 = vunpack.c.h.b16 %v241
    %v859 = vunpack.c.l.b16 %v242
    %v860 = vunpack.c.h.b16 %v242
    %v861 = vunpack.c.l.b16 %v243
    %v862 = vunpack.c.h.b16 %v243
    %v863 = vunpack.c.l.b16 %v244
    %v864 = vunpack.c.h.b16 %v244
    %v865 = vunpack.c.l.b16 %v245
    %v866 = vunpack.c.h.b16 %v245
    %v867 = vunpack.c.l.b16 %v246
    %v868 = vunpack.c.h.b16 %v246
    %v869 = vunpack.c.l.b16 %v247
    %v870 = vunpack.c.h.b16 %v247
    %v871 = vunpack.c.l.b16 %v248
    %v872 = vunpack.c.h.b16 %v248
    %v873 = vunpack.c.l.b16 %v249
    %v874 = vunpack.c.h.b16 %v249
    %v875 = vunpack.c.l.b16 %v250
    %v876 = vunpack.c.h.b16 %v250
    %v877 = vunpack.c.l.b16 %v251
    %v878 = vunpack.c.h.b16 %v251
    %v879 = vunpack.c.l.b16 %v252
    %v880 = vunpack.c.h.b16 %v252
    %v881 = vunpack.c.l.b16 %v253
    %v882 = vunpack.c.h.b16 %v253
    %v883 = vunpack.c.l.b16 %v254
    %v884 = vunpack.c.h.b16 %v254
    %v885 = vunpack.c.l.b16 %v255
    %v886 = vunpack.c.h.b16 %v255
    %v887 = vunpack.c.l.b16 %v256
    %v888 = vunpack.c.h.b16 %v256
    %v889 = vunpack.c.l.b16 %v257
    %v890 = vunpack.c.h.b16 %v257
    %v891 = vunpack.c.l.b16 %v258
    %v892 = vunpack.c.h.b16 %v258
    %v893 = vunpack.c.l.b16 %v259
    %v894 = vunpack.c.h.b16 %v259
    %v895 = vunpack.c.l.b16 %v260
    %v896 = vunpack.c.h.b16 %v260
    %v897 = vunpack.c.l.b16 %v261
    %v898 = vunpack.c.h.b16 %v261
    %v899 = vunpack.c.l.b16 %v262
    %v900 = vunpack.c.h.b16 %v262
    %v901 = vunpack.c.l.b16 %v263
    %v902 = vunpack.c.h.b16 %v263
    %v903 = vunpack.c.l.b16 %v264
    %v904 = vunpack.c.h.b16 %v264
    %v905 = vunpack.c.l.b16 %v265
    %v906 = vunpack.c.h.b16 %v265
    %v907 = vunpack.c.l.b16 %v266
    %v908 = vunpack.c.h.b16 %v266
    %v909 = vunpack.c.l.b16 %v267
    %v910 = vunpack.c.h.b16 %v267
    %v911 = vunpack.c.l.b16 %v268
    %v912 = vunpack.c.h.b16 %v268
    %v913 = vunpack.c.l.b16 %v269
    %v914 = vunpack.c.h.b16 %v269
    %v915 = vunpack.c.l.b16 %v270
    %v916 = vunpack.c.h.b16 %v270
    %v917 = vunpack.c.l.b16 %v271
    %v918 = vunpack.c.h.b16 %v271
    %v919 = vunpack.c.l.b16 %v272
    %v920 = vunpack.c.h.b16 %v272
    %v921 = vunpack.c.l.b16 %v273
    %v922 = vunpack.c.h.b16 %v273
    %v923 = vunpack.c.l.b16 %v274
    %v924 = vunpack.c.h.b16 %v274
    %v925 = vunpack.c.l.b16 %v275
    %v926 = vunpack.c.h.b16 %v275
    %v927 = vunpack.c.l.b16 %v276
    %v928 = vunpack.c.h.b16 %v276
    %v929 = vunpack.c.l.b16 %v277
    %v930 = vunpack.c.h.b16 %v277
    %v931 = vunpack.c.l.b16 %v278
    %v932 = vunpack.c.h.b16 %v278
    %v933 = vunpack.c.l.b16 %v279
    %v934 = vunpack.c.h.b16 %v279
    %v935 = vunpack.c.l.b16 %v280
    %v936 = vunpack.c.h.b16 %v280
    %v937 = vunpack.c.l.b16 %v281
    %v938 = vunpack.c.h.b16 %v281
    %v939 = vunpack.c.l.b16 %v282
    %v940 = vunpack.c.h.b16 %v282
    %v941 = vunpack.c.l.b16 %v283
    %v942 = vunpack.c.h.b16 %v283
    %v943 = vunpack.c.l.b16 %v284
    %v944 = vunpack.c.h.b16 %v284
    %v945 = vunpack.c.l.b16 %v285
    %v946 = vunpack.c.h.b16 %v285
    %v947 = vunpack.c.l.b16 %v286
    %v948 = vunpack.c.h.b16 %v286
    %v949 = vunpack.c.l.b16 %v287
    %v950 = vunpack.c.h.b16 %v287
    %v951 = vunpack.c.l.b16 %v288
    %v952 = vunpack.c.h.b16 %v288
    %v953 = vunpack.c.l.b16 %v289
    %v954 = vunpack.c.h.b16 %v289
    %v955 = vunpack.c.l.b16 %v290
    %v956 = vunpack.c.h.b16 %v290
    %v957 = vunpack.c.l.b16 %v291
    %v958 = vunpack.c.h.b16 %v291
    %v959 = vunpack.c.l.b16 %v292
    %v960 = vunpack.c.h.b16 %v292
    %v961 = vunpack.c.l.b16 %v293
    %v962 = vunpack.c.h.b16 %v293
    %v963 = vunpack.c.l.b16 %v294
    %v964 = vunpack.c.h.b16 %v294
    %v965 = vunpack.c.l.b16 %v295
    %v966 = vunpack.c.h.b16 %v295
    %v967 = vunpack.c.l.b16 %v296
    %v968 = vunpack.c.h.b16 %v296
    %v969 = vunpack.c.l.b16 %v297
    %v970 = vunpack.c.h.b16 %v297
    %v971 = vunpack.c.l.b16 %v298
    %v972 = vunpack.c.h.b16 %v298
    %v973 = vunpack.c.l.b16 %v299
    %v974 = vunpack.c.h.b16 %v299
    %v975 = vunpack.c.l.b16 %v300
    %v976 = vunpack.c.h.b16 %v300
    %v977 = vunpack.c.l.b16 %v301
    %v978 = vunpack.c.h.b16 %v301
    %v979 = vunpack.c.l.b16 %v302
    %v980 = vunpack.c.h.b16 %v302
    %v981 = vunpack.c.l.b16 %v303
    %v982 = vunpack.c.h.b16 %v303
    %v983 = vunpack.c.l.b16 %v304
    %v984 = vunpack.c.h.b16 %v304
    %v985 = vunpack.c.l.b16 %v305
    %v986 = vunpack.c.h.b16 %v305
    %v987 = vunpack.c.l.b16 %v306
    %v988 = vunpack.c.h.b16 %v306
    %v989 = vunpack.c.l.b16 %v307
    %v990 = vunpack.c.h.b16 %v307
    %v991 = vunpack.c.l.b16 %v308
    %v992 = vunpack.c.h.b16 %v308
    %v993 = vunpack.c.l.b16 %v309
    %v994 = vunpack.c.h.b16 %v309
    %v995 = vunpack.c.l.b16 %v310
    %v996 = vunpack.c.h.b16 %v310
    %v997 = vunpack.c.l.b16 %v311
    %v998 = vunpack.c.h.b16 %v311
    %v999 = vunpack.c.l.b16 %v312
    %v1000 = vunpack.c.h.b16 %v312
    %v1001 = vunpack.c.l.b16 %v313
    %v1002 = vunpack.c.h.b16 %v313
    %v1003 = vunpack.c.l.b16 %v314
    %v1004 = vunpack.c.h.b16 %v314
    %v1005 = vunpack.c.l.b16 %v315
    %v1006 = vunpack.c.h.b16 %v315
    %v1007 = vunpack.c.l.b16 %v316
    %v1008 = vunpack.c.h.b16 %v316
    %v1009 = vunpack.c.l.b16 %v317
    %v1010 = vunpack.c.h.b16 %v317
    %v1011 = vunpack.c.l.b16 %v318
    %v1012 = vunpack.c.h.b16 %v318
    %v1013 = vpack.c.b16 %v569, %v565
    %v1014 = vpack.c.b16 %v570, %v566
    %v1015 = vpack.c.b16 %v571, %v567
    %v1016 = vpack.c.b16 %v572, %v568
    %v1017 = vpack.c.b16 %v577, %v573
    %v1018 = vpack.c.b16 %v578, %v574
    %v1019 = vpack.c.b16 %v579, %v575
    %v1020 = vpack.c.b16 %v580, %v576
    %v1021 = vpack.c.b16 %v585, %v581
    %v1022 = vpack.c.b16 %v586, %v582
    %v1023 = vpack.c.b16 %v587, %v583
    %v1024 = vpack.c.b16 %v588, %v584
    %v1025 = vpack.c.b16 %v593, %v589
    %v1026 = vpack.c.b16 %v594, %v590
    %v1027 = vpack.c.b16 %v595, %v591
    %v1028 = vpack.c.b16 %v596, %v592
    %v1029 = vpack.c.b16 %v601, %v597
    %v1030 = vpack.c.b16 %v602, %v598
    %v1031 = vpack.c.b16 %v603, %v599
    %v1032 = vpack.c.b16 %v604, %v600
    %v1033 = vpack.c.b16 %v609, %v605
    %v1034 = vpack.c.b16 %v610, %v606
    %v1035 = vpack.c.b16 %v611, %v607
    %v1036 = vpack.c.b16 %v612, %v608
    %v1037 = vpack.c.b16 %v617, %v613
    %v1038 = vpack.c.b16 %v618, %v614
    %v1039 = vpack.c.b16 %v619, %v615
    %v1040 = vpack.c.b16 %v620, %v616
    %v1041 = vpack.c.b16 %v625, %v621
    %v1042 = vpack.c.b16 %v626, %v622
    %v1043 = vpack.c.b16 %v627, %v623
    %v1044 = vpack.c.b16 %v628, %v624
    %v1045 = vpack.c.b16 %v633, %v629
    %v1046 = vpack.c.b16 %v634, %v630
    %v1047 = vpack.c.b16 %v635, %v631
    %v1048 = vpack.c.b16 %v636, %v632
    %v1049 = vpack.c.b16 %v641, %v637
    %v1050 = vpack.c.b16 %v642, %v638
    %v1051 = vpack.c.b16 %v643, %v639
    %v1052 = vpack.c.b16 %v644, %v640
    %v1053 = vpack.c.b16 %v649, %v645
    %v1054 = vpack.c.b16 %v650, %v646
    %v1055 = vpack.c.b16 %v651, %v647
    %v1056 = vpack.c.b16 %v652, %v648
    %v1057 = vpack.c.b16 %v657, %v653
    %v1058 = vpack.c.b16 %v658, %v654
    %v1059 = vpack.c.b16 %v659, %v655
    %v1060 = vpack.c.b16 %v660, %v656
    %v1061 = vpack.c.b16 %v665, %v661
    %v1062 = vpack.c.b16 %v666, %v662
    %v1063 = vpack.c.b16 %v667, %v663
    %v1064 = vpack.c.b16 %v668, %v664
    %v1065 = vpack.c.b16 %v673, %v669
    %v1066 = vpack.c.b16 %v674, %v670
    %v1067 = vpack.c.b16 %v675, %v671
    %v1068 = vpack.c.b16 %v676, %v672
    %v1069 = vpack.c.b16 %v681, %v677
    %v1070 = vpack.c.b16 %v682, %v678
    %v1071 = vpack.c.b16 %v683, %v679
    %v1072 = vpack.c.b16 %v684, %v680
    %v1073 = vpack.c.b16 %v689, %v685
    %v1074 = vpack.c.b16 %v690, %v686
    %v1075 = vpack.c.b16 %v691, %v687
    %v1076 = vpack.c.b16 %v692, %v688
    %v1077 = vpack.c.b16 %v697, %v693
    %v1078 = vpack.c.b16 %v698, %v694
    %v1079 = vpack.c.b16 %v699, %v695
    %v1080 = vpack.c.b16 %v700, %v696
    %v1081 = vpack.c.b16 %v705, %v701
    %v1082 = vpack.c.b16 %v706, %v702
    %v1083 = vpack.c.b16 %v707, %v703
    %v1084 = vpack.c.b16 %v708, %v704
    %v1085 = vpack.c.b16 %v713, %v709
    %v1086 = vpack.c.b16 %v714, %v710
    %v1087 = vpack.c.b16 %v715, %v711
    %v1088 = vpack.c.b16 %v716, %v712
    %v1089 = vpack.c.b16 %v721, %v717
    %v1090 = vpack.c.b16 %v722, %v718
    %v1091 = vpack.c.b16 %v723, %v719
    %v1092 = vpack.c.b16 %v724, %v720
    %v1093 = vpack.c.b16 %v729, %v725
    %v1094 = vpack.c.b16 %v730, %v726
    %v1095 = vpack.c.b16 %v731, %v727
    %v1096 = vpack.c.b16 %v732, %v728
    %v1097 = vpack.c.b16 %v737, %v733
    %v1098 = vpack.c.b16 %v738, %v734
    %v1099 = vpack.c.b16 %v739, %v735
    %v1100 = vpack.c.b16 %v740, %v736
    %v1101 = vpack.c.b16 %v745, %v741
    %v1102 = vpack.c.b16 %v746, %v742
    %v1103 = vpack.c.b16 %v747, %v743
    %v1104 = vpack.c.b16 %v748, %v744
    %v1105 = vpack.c.b16 %v753, %v749
    %v1106 = vpack.c.b16 %v754, %v750
    %v1107 = vpack.c.b16 %v755, %v751
    %v1108 = vpack.c.b16 %v756, %v752
    %v1109 = vpack.c.b16 %v761, %v757
    %v1110 = vpack.c.b16 %v762, %v758
    %v1111 = vpack.c.b16 %v763, %v759
    %v1112 = vpack.c.b16 %v764, %v760
    %v1113 = vpack.c.b16 %v769, %v765
    %v1114 = vpack.c.b16 %v770, %v766
    %v1115 = vpack.c.b16 %v771, %v767
    %v1116 = vpack.c.b16 %v772, %v768
    %v1117 = vpack.c.b16 %v777, %v773
    %v1118 = vpack.c.b16 %v778, %v774
    %v1119 = vpack.c.b16 %v779, %v775
    %v1120 = vpack.c.b16 %v780, %v776
    %v1121 = vpack.c.b16 %v785, %v781
    %v1122 = vpack.c.b16 %v786, %v782
    %v1123 = vpack.c.b16 %v787, %v783
    %v1124 = vpack.c.b16 %v788, %v784
    %v1125 = vpack.c.b16 %v793, %v789
    %v1126 = vpack.c.b16 %v794, %v790
    %v1127 = vpack.c.b16 %v795, %v791
    %v1128 = vpack.c.b16 %v796, %v792
    %v1129 = vpack.c.b16 %v801, %v797
    %v1130 = vpack.c.b16 %v802, %v798
    %v1131 = vpack.c.b16 %v803, %v799
    %v1132 = vpack.c.b16 %v804, %v800
    %v1133 = vpack.c.b16 %v809, %v805
    %v1134 = vpack.c.b16 %v810, %v806
    %v1135 = vpack.c.b16 %v811, %v807
    %v1136 = vpack.c.b16 %v812, %v808
    %v1137 = vpack.c.b16 %v817, %v813
    %v1138 = vpack.c.b16 %v818, %v814
    %v1139 = vpack.c.b16 %v819, %v815
    %v1140 = vpack.c.b16 %v820, %v816
    %v1141 = vpack.c.b16 %v825, %v821
    %v1142 = vpack.c.b16 %v826, %v822
    %v1143 = vpack.c.b16 %v827, %v823
    %v1144 = vpack.c.b16 %v828, %v824
    %v1145 = vpack.c.b16 %v833, %v829
    %v1146 = vpack.c.b16 %v834, %v830
    %v1147 = vpack.c.b16 %v835, %v831
    %v1148 = vpack.c.b16 %v836, %v832
    %v1149 = vpack.c.b16 %v841, %v837
    %v1150 = vpack.c.b16 %v842, %v838
    %v1151 = vpack.c.b16 %v843, %v839
    %v1152 = vpack.c.b16 %v844, %v840
    %v1153 = vpack.c.b16 %v849, %v845
    %v1154 = vpack.c.b16 %v850, %v846
    %v1155 = vpack.c.b16 %v851, %v847
    %v1156 = vpack.c.b16 %v852, %v848
    %v1157 = vpack.c.b16 %v857, %v853
    %v1158 = vpack.c.b16 %v858, %v854
    %v1159 = vpack.c.b16 %v859, %v855
    %v1160 = vpack.c.b16 %v860, %v856
    %v1161 = vpack.c.b16 %v865, %v861
    %v1162 = vpack.c.b16 %v866, %v862
    %v1163 = vpack.c.b16 %v867, %v863
    %v1164 = vpack.c.b16 %v868, %v864
    %v1165 = vpack.c.b16 %v873, %v869
    %v1166 = vpack.c.b16 %v874, %v870
    %v1167 = vpack.c.b16 %v875, %v871
    %v1168 = vpack.c.b16 %v876, %v872
    %v1169 = vpack.c.b16 %v881, %v877
    %v1170 = vpack.c.b16 %v882, %v878
    %v1171 = vpack.c.b16 %v883, %v879
    %v1172 = vpack.c.b16 %v884, %v880
    %v1173 = vpack.c.b16 %v889, %v885
    %v1174 = vpack.c.b16 %v890, %v886
    %v1175 = vpack.c.b16 %v891, %v887
    %v1176 = vpack.c.b16 %v892, %v888
    %v1177 = vpack.c.b16 %v897, %v893
    %v1178 = vpack.c.b16 %v898, %v894
    %v1179 = vpack.c.b16 %v899, %v895
    %v1180 = vpack.c.b16 %v900, %v896
    %v1181 = vpack.c.b16 %v905, %v901
    %v1182 = vpack.c.b16 %v906, %v902
    %v1183 = vpack.c.b16 %v907, %v903
    %v1184 = vpack.c.b16 %v908, %v904
    %v1185 = vpack.c.b16 %v913, %v909
    %v1186 = vpack.c.b16 %v914, %v910
    %v1187 = vpack.c.b16 %v915, %v911
    %v1188 = vpack.c.b16 %v916, %v912
    %v1189 = vpack.c.b16 %v921, %v917
    %v1190 = vpack.c.b16 %v922, %v918
    %v1191 = vpack.c.b16 %v923, %v919
    %v1192 = vpack.c.b16 %v924, %v920
    %v1193 = vpack.c.b16 %v929, %v925
    %v1194 = vpack.c.b16 %v930, %v926
    %v1195 = vpack.c.b16 %v931, %v927
    %v1196 = vpack.c.b16 %v932, %v928
    %v1197 = vpack.c.b16 %v937, %v933
    %v1198 = vpack.c.b16 %v938, %v934
    %v1199 = vpack.c.b16 %v939, %v935
    %v1200 = vpack.c.b16 %v940, %v936
    %v1201 = vpack.c.b16 %v945, %v941
    %v1202 = vpack.c.b16 %v946, %v942
    %v1203 = vpack.c.b16 %v947, %v943
    %v1204 = vpack.c.b16 %v948, %v944
    %v1205 = vpack.c.b16 %v953, %v949
    %v1206 = vpack.c.b16 %v954, %v950
    %v1207 = vpack.c.b16 %v955, %v951
    %v1208 = vpack.c.b16 %v956, %v952
    %v1209 = vpack.c.b16 %v961, %v957
    %v1210 = vpack.c.b16 %v962, %v958
    %v1211 = vpack.c.b16 %v963, %v959
    %v1212 = vpack.c.b16 %v964, %v960
    %v1213 = vpack.c.b16 %v969, %v965
    %v1214 = vpack.c.b16 %v970, %v966
    %v1215 = vpack.c.b16 %v971, %v967
    %v1216 = vpack.c.b16 %v972, %v968
    %v1217 = vpack.c.b16 %v977, %v973
    %v1218 = vpack.c.b16 %v978, %v974
    %v1219 = vpack.c.b16 %v979, %v975
    %v1220 = vpack.c.b16 %v980, %v976
    %v1221 = vpack.c.b16 %v985, %v981
    %v1222 = vpack.c.b16 %v986, %v982
    %v1223 = vpack.c.b16 %v987, %v983
    %v1224 = vpack.c.b16 %v988, %v984
    %v1225 = vpack.c.b16 %v993, %v989
    %v1226 = vpack.c.b16 %v994, %v990
    %v1227 = vpack.c.b16 %v995, %v991
    %v1228 = vpack.c.b16 %v996, %v992
    %v1229 = vpack.c.b16 %v1001, %v997
    %v1230 = vpack.c.b16 %v1002, %v998
    %v1231 = vpack.c.b16 %v1003, %v999
    %v1232 = vpack.c.b16 %v1004, %v1000
    %v1233 = vpack.c.b16 %v1009, %v1005
    %v1234 = vpack.c.b16 %v1010, %v1006
    %v1235 = vpack.c.b16 %v1011, %v1007
    %v1236 = vpack.c.b16 %v1012, %v1008
    %1461 = vmatprep.subr.bf16.mxu0 %v1042
    %1462 = vmatpush1.bf16.msra.mxu0 %v1041
    %1463 = vmatprep.subr.bf16.mxu0 %v1038
    %1464 = vmatpush1.bf16.msra.mxu0 %v1037
    %1465 = vmatprep.subr.bf16.mxu0 %v1034
    %1466 = vmatpush1.bf16.msra.mxu0 %v1033
    %1467 = vmatprep.subr.bf16.mxu0 %v1030
    %1468 = vmatpush1.bf16.msra.mxu0 %v1029
    %1469 = vmatprep.subr.bf16.mxu0 %v1026
    %1470 = vmatpush1.bf16.msra.mxu0 %v1025
    %1471 = vmatprep.subr.bf16.mxu0 %v1022
    %1472 = vmatpush1.bf16.msra.mxu0 %v1021
    %1473 = vmatprep.subr.bf16.mxu0 %v1018
    %1474 = vmatpush1.bf16.msra.mxu0 %v1017
    %1475 = vmatprep.subr.bf16.mxu0 %v1014
    %1476 = vmatpush1.bf16.msra.mxu0 %v1013
    %1477 = vmatprep.subr.bf16.mxu0 %v1074
    %1478 = vmatpush2.bf16.msra.mxu0 %v1073
    %1479 = vmatprep.subr.bf16.mxu0 %v1070
    %1480 = vmatpush2.bf16.msra.mxu0 %v1069
    %1481 = vmatprep.subr.bf16.mxu0 %v1066
    %1482 = vmatpush2.bf16.msra.mxu0 %v1065
    %1483 = vmatprep.subr.bf16.mxu0 %v1062
    %1484 = vmatpush2.bf16.msra.mxu0 %v1061
    %1485 = vmatprep.subr.bf16.mxu0 %v1058
    %1486 = vmatpush2.bf16.msra.mxu0 %v1057
    %1487 = vmatprep.subr.bf16.mxu0 %v1054
    %1488 = vmatpush2.bf16.msra.mxu0 %v1053
    %1489 = vmatprep.subr.bf16.mxu0 %v1050
    %1490 = vmatpush2.bf16.msra.mxu0 %v1049
    %1491 = vmatprep.subr.bf16.mxu0 %v1046
    %1492 = vmatpush2.bf16.msra.mxu0 %v1045
    %1493 = vmatprep.mubr.bf16.mxu0 %v89
    %1494 = vmatmul.mubr.bf16.gmra.mxu0 %v88
    %v1495 = vpop.f32.mrf.mxu0
    %v1496 = vadd.f32 %v324, %v1495
    %v1497 = vpop.f32.mrf.mxu0
    %v1498 = vadd.f32 %v328, %v1497
    %v1499 = vpop.f32.mrf.mxu0
    %v1500 = vadd.f32 %v324, %v1499
    %v1501 = vpop.f32.mrf.mxu0
    %v1502 = vadd.f32 %v328, %v1501
    %1503 = vdwg.mxu0
    %1504 = vmatprep.subr.bf16.mxu0 %v1106
    %1505 = vmatpush1.bf16.msra.mxu0 %v1105
    %1506 = vmatprep.subr.bf16.mxu0 %v1102
    %1507 = vmatpush1.bf16.msra.mxu0 %v1101
    %1508 = vmatprep.subr.bf16.mxu0 %v1098
    %1509 = vmatpush1.bf16.msra.mxu0 %v1097
    %1510 = vmatprep.subr.bf16.mxu0 %v1094
    %1511 = vmatpush1.bf16.msra.mxu0 %v1093
    %1512 = vmatprep.subr.bf16.mxu0 %v1090
    %1513 = vmatpush1.bf16.msra.mxu0 %v1089
    %1514 = vmatprep.subr.bf16.mxu0 %v1086
    %1515 = vmatpush1.bf16.msra.mxu0 %v1085
    %1516 = vmatprep.subr.bf16.mxu0 %v1082
    %1517 = vmatpush1.bf16.msra.mxu0 %v1081
    %1518 = vmatprep.subr.bf16.mxu0 %v1078
    %1519 = vmatpush1.bf16.msra.mxu0 %v1077
    %1520 = vmatprep.subr.bf16.mxu0 %v1138
    %1521 = vmatpush2.bf16.msra.mxu0 %v1137
    %1522 = vmatprep.subr.bf16.mxu0 %v1134
    %1523 = vmatpush2.bf16.msra.mxu0 %v1133
    %1524 = vmatprep.subr.bf16.mxu0 %v1130
    %1525 = vmatpush2.bf16.msra.mxu0 %v1129
    %1526 = vmatprep.subr.bf16.mxu0 %v1126
    %1527 = vmatpush2.bf16.msra.mxu0 %v1125
    %1528 = vmatprep.subr.bf16.mxu0 %v1122
    %1529 = vmatpush2.bf16.msra.mxu0 %v1121
    %1530 = vmatprep.subr.bf16.mxu0 %v1118
    %1531 = vmatpush2.bf16.msra.mxu0 %v1117
    %1532 = vmatprep.subr.bf16.mxu0 %v1114
    %1533 = vmatpush2.bf16.msra.mxu0 %v1113
    %1534 = vmatprep.subr.bf16.mxu0 %v1110
    %1535 = vmatpush2.bf16.msra.mxu0 %v1109
    %1536 = vmatprep.mubr.bf16.mxu0 %v91
    %1537 = vmatmul.mubr.bf16.gmra.mxu0 %v90
    %v1538 = vpop.f32.mrf.mxu0
    %v1539 = vadd.f32 %v1496, %v1538
    %v1540 = vpop.f32.mrf.mxu0
    %v1541 = vadd.f32 %v1498, %v1540
    %v1542 = vpop.f32.mrf.mxu0
    %v1543 = vadd.f32 %v1500, %v1542
    %v1544 = vpop.f32.mrf.mxu0
    %v1545 = vadd.f32 %v1502, %v1544
    %1546 = vdwg.mxu0
    %1547 = vmatprep.subr.bf16.mxu0 %v1170
    %1548 = vmatpush1.bf16.msra.mxu0 %v1169
    %1549 = vmatprep.subr.bf16.mxu0 %v1166
    %1550 = vmatpush1.bf16.msra.mxu0 %v1165
    %1551 = vmatprep.subr.bf16.mxu0 %v1162
    %1552 = vmatpush1.bf16.msra.mxu0 %v1161
    %1553 = vmatprep.subr.bf16.mxu0 %v1158
    %1554 = vmatpush1.bf16.msra.mxu0 %v1157
    %1555 = vmatprep.subr.bf16.mxu0 %v1154
    %1556 = vmatpush1.bf16.msra.mxu0 %v1153
    %1557 = vmatprep.subr.bf16.mxu0 %v1150
    %1558 = vmatpush1.bf16.msra.mxu0 %v1149
    %1559 = vmatprep.subr.bf16.mxu0 %v1146
    %1560 = vmatpush1.bf16.msra.mxu0 %v1145
    %1561 = vmatprep.subr.bf16.mxu0 %v1142
    %1562 = vmatpush1.bf16.msra.mxu0 %v1141
    %1563 = vmatprep.subr.bf16.mxu0 %v1202
    %1564 = vmatpush2.bf16.msra.mxu0 %v1201
    %1565 = vmatprep.subr.bf16.mxu0 %v1198
    %1566 = vmatpush2.bf16.msra.mxu0 %v1197
    %1567 = vmatprep.subr.bf16.mxu0 %v1194
    %1568 = vmatpush2.bf16.msra.mxu0 %v1193
    %1569 = vmatprep.subr.bf16.mxu0 %v1190
    %1570 = vmatpush2.bf16.msra.mxu0 %v1189
    %1571 = vmatprep.subr.bf16.mxu0 %v1186
    %1572 = vmatpush2.bf16.msra.mxu0 %v1185
    %1573 = vmatprep.subr.bf16.mxu0 %v1182
    %1574 = vmatpush2.bf16.msra.mxu0 %v1181
    %1575 = vmatprep.subr.bf16.mxu0 %v1178
    %1576 = vmatpush2.bf16.msra.mxu0 %v1177
    %1577 = vmatprep.subr.bf16.mxu0 %v1174
    %1578 = vmatpush2.bf16.msra.mxu0 %v1173
    %1579 = vmatprep.mubr.bf16.mxu0 %v93
    %1580 = vmatmul.mubr.bf16.gmra.mxu0 %v92
    %v1581 = vpop.f32.mrf.mxu0
    %v1582 = vadd.f32 %v1539, %v1581
    %v1583 = vpop.f32.mrf.mxu0
    %v1584 = vadd.f32 %v1541, %v1583
    %v1585 = vpop.f32.mrf.mxu0
    %v1586 = vadd.f32 %v1543, %v1585
    %v1587 = vpop.f32.mrf.mxu0
    %v1588 = vadd.f32 %v1545, %v1587
    %1589 = vdwg.mxu0
    %1590 = vmatprep.subr.bf16.mxu0 %v1234
    %1591 = vmatpush1.bf16.msra.mxu0 %v1233
    %1592 = vmatprep.subr.bf16.mxu0 %v1230
    %1593 = vmatpush1.bf16.msra.mxu0 %v1229
    %1594 = vmatprep.subr.bf16.mxu0 %v1226
    %1595 = vmatpush1.bf16.msra.mxu0 %v1225
    %1596 = vmatprep.subr.bf16.mxu0 %v1222
    %1597 = vmatpush1.bf16.msra.mxu0 %v1221
    %1598 = vmatprep.subr.bf16.mxu0 %v1218
    %1599 = vmatpush1.bf16.msra.mxu0 %v1217
    %1600 = vmatprep.subr.bf16.mxu0 %v1214
    %1601 = vmatpush1.bf16.msra.mxu0 %v1213
    %1602 = vmatprep.subr.bf16.mxu0 %v1210
    %1603 = vmatpush1.bf16.msra.mxu0 %v1209
    %1604 = vmatprep.subr.bf16.mxu0 %v1206
    %1605 = vmatpush1.bf16.msra.mxu0 %v1205
    %1606 = vmatprep.subr.bf16.mxu0 0
    %1607 = vmatpush2.bf16.msra.mxu0 0
    %1608 = vmatprep.subr.bf16.mxu0 0
    %1609 = vmatpush2.bf16.msra.mxu0 0
    %1610 = vmatprep.subr.bf16.mxu0 0
    %1611 = vmatpush2.bf16.msra.mxu0 0
    %1612 = vmatprep.subr.bf16.mxu0 0
    %1613 = vmatpush2.bf16.msra.mxu0 0
    %1614 = vmatprep.subr.bf16.mxu0 0
    %1615 = vmatpush2.bf16.msra.mxu0 0
    %1616 = vmatprep.subr.bf16.mxu0 0
    %1617 = vmatpush2.bf16.msra.mxu0 0
    %1618 = vmatprep.subr.bf16.mxu0 0
    %1619 = vmatpush2.bf16.msra.mxu0 0
    %1620 = vmatprep.subr.bf16.mxu0 0
    %1621 = vmatpush2.bf16.msra.mxu0 0
    %1622 = vmatprep.mubr.bf16.mxu0 0
    %1623 = vmatmul.mubr.bf16.gmra.mxu0 %v94
    %v1624 = vpop.f32.mrf.mxu0
    %v1625 = vadd.f32 %v1582, %v1624
    %v1626 = vpop.f32.mrf.mxu0
    %v1627 = vadd.f32 %v1584, %v1626
    %v1628 = vpop.f32.mrf.mxu0
    %v1629 = vadd.f32 %v1586, %v1628
    %v1630 = vpop.f32.mrf.mxu0
    %v1631 = vadd.f32 %v1588, %v1630
    %1632 = vdwg.mxu0
    %1633 = vmatprep.subr.bf16.mxu0 %v1044
    %1634 = vmatpush1.bf16.msra.mxu0 %v1043
    %1635 = vmatprep.subr.bf16.mxu0 %v1040
    %1636 = vmatpush1.bf16.msra.mxu0 %v1039
    %1637 = vmatprep.subr.bf16.mxu0 %v1036
    %1638 = vmatpush1.bf16.msra.mxu0 %v1035
    %1639 = vmatprep.subr.bf16.mxu0 %v1032
    %1640 = vmatpush1.bf16.msra.mxu0 %v1031
    %1641 = vmatprep.subr.bf16.mxu0 %v1028
    %1642 = vmatpush1.bf16.msra.mxu0 %v1027
    %1643 = vmatprep.subr.bf16.mxu0 %v1024
    %1644 = vmatpush1.bf16.msra.mxu0 %v1023
    %1645 = vmatprep.subr.bf16.mxu0 %v1020
    %1646 = vmatpush1.bf16.msra.mxu0 %v1019
    %1647 = vmatprep.subr.bf16.mxu0 %v1016
    %1648 = vmatpush1.bf16.msra.mxu0 %v1015
    %1649 = vmatprep.subr.bf16.mxu0 %v1076
    %1650 = vmatpush2.bf16.msra.mxu0 %v1075
    %1651 = vmatprep.subr.bf16.mxu0 %v1072
    %1652 = vmatpush2.bf16.msra.mxu0 %v1071
    %1653 = vmatprep.subr.bf16.mxu0 %v1068
    %1654 = vmatpush2.bf16.msra.mxu0 %v1067
    %1655 = vmatprep.subr.bf16.mxu0 %v1064
    %1656 = vmatpush2.bf16.msra.mxu0 %v1063
    %1657 = vmatprep.subr.bf16.mxu0 %v1060
    %1658 = vmatpush2.bf16.msra.mxu0 %v1059
    %1659 = vmatprep.subr.bf16.mxu0 %v1056
    %1660 = vmatpush2.bf16.msra.mxu0 %v1055
    %1661 = vmatprep.subr.bf16.mxu0 %v1052
    %1662 = vmatpush2.bf16.msra.mxu0 %v1051
    %1663 = vmatprep.subr.bf16.mxu0 %v1048
    %1664 = vmatpush2.bf16.msra.mxu0 %v1047
    %1665 = vmatprep.mubr.bf16.mxu0 %v89
    %1666 = vmatmul.mubr.bf16.gmra.mxu0 %v88
    %v1667 = vpop.f32.mrf.mxu0
    %v1668 = vadd.f32 %v332, %v1667
    %v1669 = vpop.f32.mrf.mxu0
    %v1670 = vadd.f32 %v336, %v1669
    %v1671 = vpop.f32.mrf.mxu0
    %v1672 = vadd.f32 %v332, %v1671
    %v1673 = vpop.f32.mrf.mxu0
    %v1674 = vadd.f32 %v336, %v1673
    %1675 = vdwg.mxu0
    %1676 = vmatprep.subr.bf16.mxu0 %v1108
    %1677 = vmatpush1.bf16.msra.mxu0 %v1107
    %1678 = vmatprep.subr.bf16.mxu0 %v1104
    %1679 = vmatpush1.bf16.msra.mxu0 %v1103
    %1680 = vmatprep.subr.bf16.mxu0 %v1100
    %1681 = vmatpush1.bf16.msra.mxu0 %v1099
    %1682 = vmatprep.subr.bf16.mxu0 %v1096
    %1683 = vmatpush1.bf16.msra.mxu0 %v1095
    %1684 = vmatprep.subr.bf16.mxu0 %v1092
    %1685 = vmatpush1.bf16.msra.mxu0 %v1091
    %1686 = vmatprep.subr.bf16.mxu0 %v1088
    %1687 = vmatpush1.bf16.msra.mxu0 %v1087
    %1688 = vmatprep.subr.bf16.mxu0 %v1084
    %1689 = vmatpush1.bf16.msra.mxu0 %v1083
    %1690 = vmatprep.subr.bf16.mxu0 %v1080
    %1691 = vmatpush1.bf16.msra.mxu0 %v1079
    %1692 = vmatprep.subr.bf16.mxu0 %v1140
    %1693 = vmatpush2.bf16.msra.mxu0 %v1139
    %1694 = vmatprep.subr.bf16.mxu0 %v1136
    %1695 = vmatpush2.bf16.msra.mxu0 %v1135
    %1696 = vmatprep.subr.bf16.mxu0 %v1132
    %1697 = vmatpush2.bf16.msra.mxu0 %v1131
    %1698 = vmatprep.subr.bf16.mxu0 %v1128
    %1699 = vmatpush2.bf16.msra.mxu0 %v1127
    %1700 = vmatprep.subr.bf16.mxu0 %v1124
    %1701 = vmatpush2.bf16.msra.mxu0 %v1123
    %1702 = vmatprep.subr.bf16.mxu0 %v1120
    %1703 = vmatpush2.bf16.msra.mxu0 %v1119
    %1704 = vmatprep.subr.bf16.mxu0 %v1116
    %1705 = vmatpush2.bf16.msra.mxu0 %v1115
    %1706 = vmatprep.subr.bf16.mxu0 %v1112
    %1707 = vmatpush2.bf16.msra.mxu0 %v1111
    %1708 = vmatprep.mubr.bf16.mxu0 %v91
    %1709 = vmatmul.mubr.bf16.gmra.mxu0 %v90
    %v1710 = vpop.f32.mrf.mxu0
    %v1711 = vadd.f32 %v1668, %v1710
    %v1712 = vpop.f32.mrf.mxu0
    %v1713 = vadd.f32 %v1670, %v1712
    %v1714 = vpop.f32.mrf.mxu0
    %v1715 = vadd.f32 %v1672, %v1714
    %v1716 = vpop.f32.mrf.mxu0
    %v1717 = vadd.f32 %v1674, %v1716
    %1718 = vdwg.mxu0
    %1719 = vmatprep.subr.bf16.mxu0 %v1172
    %1720 = vmatpush1.bf16.msra.mxu0 %v1171
    %1721 = vmatprep.subr.bf16.mxu0 %v1168
    %1722 = vmatpush1.bf16.msra.mxu0 %v1167
    %1723 = vmatprep.subr.bf16.mxu0 %v1164
    %1724 = vmatpush1.bf16.msra.mxu0 %v1163
    %1725 = vmatprep.subr.bf16.mxu0 %v1160
    %1726 = vmatpush1.bf16.msra.mxu0 %v1159
    %1727 = vmatprep.subr.bf16.mxu0 %v1156
    %1728 = vmatpush1.bf16.msra.mxu0 %v1155
    %1729 = vmatprep.subr.bf16.mxu0 %v1152
    %1730 = vmatpush1.bf16.msra.mxu0 %v1151
    %1731 = vmatprep.subr.bf16.mxu0 %v1148
    %1732 = vmatpush1.bf16.msra.mxu0 %v1147
    %1733 = vmatprep.subr.bf16.mxu0 %v1144
    %1734 = vmatpush1.bf16.msra.mxu0 %v1143
    %1735 = vmatprep.subr.bf16.mxu0 %v1204
    %1736 = vmatpush2.bf16.msra.mxu0 %v1203
    %1737 = vmatprep.subr.bf16.mxu0 %v1200
    %1738 = vmatpush2.bf16.msra.mxu0 %v1199
    %1739 = vmatprep.subr.bf16.mxu0 %v1196
    %1740 = vmatpush2.bf16.msra.mxu0 %v1195
    %1741 = vmatprep.subr.bf16.mxu0 %v1192
    %1742 = vmatpush2.bf16.msra.mxu0 %v1191
    %1743 = vmatprep.subr.bf16.mxu0 %v1188
    %1744 = vmatpush2.bf16.msra.mxu0 %v1187
    %1745 = vmatprep.subr.bf16.mxu0 %v1184
    %1746 = vmatpush2.bf16.msra.mxu0 %v1183
    %1747 = vmatprep.subr.bf16.mxu0 %v1180
    %1748 = vmatpush2.bf16.msra.mxu0 %v1179
    %1749 = vmatprep.subr.bf16.mxu0 %v1176
    %1750 = vmatpush2.bf16.msra.mxu0 %v1175
    %1751 = vmatprep.mubr.bf16.mxu0 %v93
    %1752 = vmatmul.mubr.bf16.gmra.mxu0 %v92
    %v1753 = vpop.f32.mrf.mxu0
    %v1754 = vadd.f32 %v1711, %v1753
    %v1755 = vpop.f32.mrf.mxu0
    %v1756 = vadd.f32 %v1713, %v1755
    %v1757 = vpop.f32.mrf.mxu0
    %v1758 = vadd.f32 %v1715, %v1757
    %v1759 = vpop.f32.mrf.mxu0
    %v1760 = vadd.f32 %v1717, %v1759
    %1761 = vdwg.mxu0
    %1762 = vmatprep.subr.bf16.mxu0 %v1236
    %1763 = vmatpush1.bf16.msra.mxu0 %v1235
    %1764 = vmatprep.subr.bf16.mxu0 %v1232
    %1765 = vmatpush1.bf16.msra.mxu0 %v1231
    %1766 = vmatprep.subr.bf16.mxu0 %v1228
    %1767 = vmatpush1.bf16.msra.mxu0 %v1227
    %1768 = vmatprep.subr.bf16.mxu0 %v1224
    %1769 = vmatpush1.bf16.msra.mxu0 %v1223
    %1770 = vmatprep.subr.bf16.mxu0 %v1220
    %1771 = vmatpush1.bf16.msra.mxu0 %v1219
    %1772 = vmatprep.subr.bf16.mxu0 %v1216
    %1773 = vmatpush1.bf16.msra.mxu0 %v1215
    %1774 = vmatprep.subr.bf16.mxu0 %v1212
    %1775 = vmatpush1.bf16.msra.mxu0 %v1211
    %1776 = vmatprep.subr.bf16.mxu0 %v1208
    %1777 = vmatpush1.bf16.msra.mxu0 %v1207
    %1778 = vmatprep.subr.bf16.mxu0 0
    %1779 = vmatpush2.bf16.msra.mxu0 0
    %1780 = vmatprep.subr.bf16.mxu0 0
    %1781 = vmatpush2.bf16.msra.mxu0 0
    %1782 = vmatprep.subr.bf16.mxu0 0
    %1783 = vmatpush2.bf16.msra.mxu0 0
    %1784 = vmatprep.subr.bf16.mxu0 0
    %1785 = vmatpush2.bf16.msra.mxu0 0
    %1786 = vmatprep.subr.bf16.mxu0 0
    %1787 = vmatpush2.bf16.msra.mxu0 0
    %1788 = vmatprep.subr.bf16.mxu0 0
    %1789 = vmatpush2.bf16.msra.mxu0 0
    %1790 = vmatprep.subr.bf16.mxu0 0
    %1791 = vmatpush2.bf16.msra.mxu0 0
    %1792 = vmatprep.subr.bf16.mxu0 0
    %1793 = vmatpush2.bf16.msra.mxu0 0
    %1794 = vmatprep.mubr.bf16.mxu0 0
    %1795 = vmatmul.mubr.bf16.gmra.mxu0 %v94
    %v1796 = vpop.f32.mrf.mxu0
    %v1797 = vadd.f32 %v1754, %v1796
    %v1798 = vpop.f32.mrf.mxu0
    %v1799 = vadd.f32 %v1756, %v1798
    %v1800 = vpop.f32.mrf.mxu0
    %v1801 = vadd.f32 %v1758, %v1800
    %v1802 = vpop.f32.mrf.mxu0
    %v1803 = vadd.f32 %v1760, %v1802
    %1804 = vdwg.mxu0
    %v1805 = vmax.f32 %v1625, 0.0
    %v1806 = vmax.f32 %v1627, 0.0
    %v1807 = vmax.f32 %v1797, 0.0
    %v1808 = vmax.f32 %v1799, 0.0
    %v1809 = vmax.f32 %v1629, 0.0
    %v1810 = vmax.f32 %v1631, 0.0
    %v1811 = vmax.f32 %v1801, 0.0
    %v1812 = vmax.f32 %v1803, 0.0
    %v1813 = vpack.c.bf16 %v1809, %v1805
    %v1814 = vpack.c.bf16 %v1810, %v1806
    %v1815 = vpack.c.bf16 %v1811, %v1807
    %v1816 = vpack.c.bf16 %v1812, %v1808
    %v1817 = vld [vmem:[#allocation4] sm:$0xff]
    %v1818 = vld [vmem:[#allocation4 + $0x8] sm:$0xff]
    %v1819 = vld [vmem:[#allocation4 + $0x10] sm:$0xff]
    %v1820 = vld [vmem:[#allocation4 + $0x18] sm:$0xff]
    %v1821 = vld [vmem:[#allocation4 + $0x20] sm:$0xff]
    %v1822 = vld [vmem:[#allocation4 + $0x28] sm:$0xff]
    %v1823 = vld [vmem:[#allocation4 + $0x30] sm:$0xff]
    %v1824 = vld [vmem:[#allocation4 + $0x38] sm:$0xff]
    %v1825 = vld [vmem:[#allocation4 + $0x40] sm:$0xff]
    %v1826 = vld [vmem:[#allocation4 + $0x48] sm:$0xff]
    %v1827 = vld [vmem:[#allocation4 + $0x50] sm:$0xff]
    %v1828 = vld [vmem:[#allocation4 + $0x58] sm:$0xff]
    %v1829 = vld [vmem:[#allocation4 + $0x60] sm:$0xff]
    %v1830 = vld [vmem:[#allocation4 + $0x68] sm:$0xff]
    %v1831 = vld [vmem:[#allocation4 + $0x70] sm:$0xff]
    %v1832 = vld [vmem:[#allocation4 + $0x78] sm:$0xff]
    %v1833 = vld [vmem:[#allocation4 + $0x80] sm:$0xff]
    %v1834 = vld [vmem:[#allocation4 + $0x88] sm:$0xff]
    %v1835 = vld [vmem:[#allocation4 + $0x90] sm:$0xff]
    %v1836 = vld [vmem:[#allocation4 + $0x98] sm:$0xff]
    %v1837 = vld [vmem:[#allocation4 + $0xa0] sm:$0xff]
    %v1838 = vld [vmem:[#allocation4 + $0xa8] sm:$0xff]
    %v1839 = vld [vmem:[#allocation4 + $0xb0] sm:$0xff]
    %v1840 = vld [vmem:[#allocation4 + $0xb8] sm:$0xff]
    %v1841 = vld [vmem:[#allocation4 + $0xc0] sm:$0xff]
    %v1842 = vld [vmem:[#allocation4 + $0xc8] sm:$0xff]
    %v1843 = vld [vmem:[#allocation4 + $0xd0] sm:$0xff]
    %v1844 = vld [vmem:[#allocation4 + $0xd8] sm:$0xff]
    %v1845 = vld [vmem:[#allocation4 + $0xe0] sm:$0xff]
    %v1846 = vld [vmem:[#allocation4 + $0xe8] sm:$0xff]
    %v1847 = vld [vmem:[#allocation4 + $0xf0] sm:$0xff]
    %v1848 = vld [vmem:[#allocation4 + $0xf8] sm:$0xff]
    %v1849 = vld [vmem:[#allocation4 + $0x100] sm:$0xff]
    %v1850 = vld [vmem:[#allocation4 + $0x108] sm:$0xff]
    %v1851 = vld [vmem:[#allocation4 + $0x110] sm:$0xff]
    %v1852 = vld [vmem:[#allocation4 + $0x118] sm:$0xff]
    %v1853 = vld [vmem:[#allocation4 + $0x120] sm:$0xff]
    %v1854 = vld [vmem:[#allocation4 + $0x128] sm:$0xff]
    %v1855 = vld [vmem:[#allocation4 + $0x130] sm:$0xff]
    %v1856 = vld [vmem:[#allocation4 + $0x138] sm:$0xff]
    %v1857 = vld [vmem:[#allocation4 + $0x140] sm:$0xff]
    %v1858 = vld [vmem:[#allocation4 + $0x148] sm:$0xff]
    %v1859 = vld [vmem:[#allocation4 + $0x150] sm:$0xff]
    %v1860 = vld [vmem:[#allocation4 + $0x158] sm:$0xff]
    %v1861 = vld [vmem:[#allocation4 + $0x160] sm:$0xff]
    %v1862 = vld [vmem:[#allocation4 + $0x168] sm:$0xff]
    %v1863 = vld [vmem:[#allocation4 + $0x170] sm:$0xff]
    %v1864 = vld [vmem:[#allocation4 + $0x178] sm:$0xff]
    %v1865 = vld [vmem:[#allocation4 + $0x180] sm:$0xff]
    %v1866 = vld [vmem:[#allocation4 + $0x188] sm:$0xff]
    %v1867 = vld [vmem:[#allocation4 + $0x190] sm:$0xff]
    %v1868 = vld [vmem:[#allocation4 + $0x198] sm:$0xff]
    %v1869 = vld [vmem:[#allocation4 + $0x1a0] sm:$0xff]
    %v1870 = vld [vmem:[#allocation4 + $0x1a8] sm:$0xff]
    %v1871 = vld [vmem:[#allocation4 + $0x1b0] sm:$0xff]
    %v1872 = vld [vmem:[#allocation4 + $0x1b8] sm:$0xff]
    %v1873 = vld [vmem:[#allocation4 + $0x1c0] sm:$0xff]
    %v1874 = vld [vmem:[#allocation4 + $0x1c8] sm:$0xff]
    %v1875 = vld [vmem:[#allocation4 + $0x1d0] sm:$0xff]
    %v1876 = vld [vmem:[#allocation4 + $0x1d8] sm:$0xff]
    %v1877 = vld [vmem:[#allocation4 + $0x1e0] sm:$0xff]
    %v1878 = vld [vmem:[#allocation4 + $0x1e8] sm:$0xff]
    %v1879 = vld [vmem:[#allocation4 + $0x1f0] sm:$0xff]
    %v1880 = vld [vmem:[#allocation4 + $0x1f8] sm:$0xff]
    %v1881 = vld [vmem:[#allocation4 + $0x200] sm:$0xff]
    %v1882 = vld [vmem:[#allocation4 + $0x208] sm:$0xff]
    %v1883 = vld [vmem:[#allocation4 + $0x210] sm:$0xff]
    %v1884 = vld [vmem:[#allocation4 + $0x218] sm:$0xff]
    %v1885 = vld [vmem:[#allocation4 + $0x220] sm:$0xff]
    %v1886 = vld [vmem:[#allocation4 + $0x228] sm:$0xff]
    %v1887 = vld [vmem:[#allocation4 + $0x230] sm:$0xff]
    %v1888 = vld [vmem:[#allocation4 + $0x238] sm:$0xff]
    %v1889 = vld [vmem:[#allocation4 + $0x240] sm:$0xff]
    %v1890 = vld [vmem:[#allocation4 + $0x248] sm:$0xff]
    %v1891 = vld [vmem:[#allocation4 + $0x250] sm:$0xff]
    %v1892 = vld [vmem:[#allocation4 + $0x258] sm:$0xff]
    %v1893 = vld [vmem:[#allocation4 + $0x260] sm:$0xff]
    %v1894 = vld [vmem:[#allocation4 + $0x268] sm:$0xff]
    %v1895 = vld [vmem:[#allocation4 + $0x270] sm:$0xff]
    %v1896 = vld [vmem:[#allocation4 + $0x278] sm:$0xff]
    %v1897 = vld [vmem:[#allocation4 + $0x280] sm:$0xff]
    %v1898 = vld [vmem:[#allocation4 + $0x288] sm:$0xff]
    %v1899 = vld [vmem:[#allocation4 + $0x290] sm:$0xff]
    %v1900 = vld [vmem:[#allocation4 + $0x298] sm:$0xff]
    %v1901 = vld [vmem:[#allocation4 + $0x2a0] sm:$0xff]
    %v1902 = vld [vmem:[#allocation4 + $0x2a8] sm:$0xff]
    %v1903 = vld [vmem:[#allocation4 + $0x2b0] sm:$0xff]
    %v1904 = vld [vmem:[#allocation4 + $0x2b8] sm:$0xff]
    %v1905 = vld [vmem:[#allocation4 + $0x2c0] sm:$0xff]
    %v1906 = vld [vmem:[#allocation4 + $0x2c8] sm:$0xff]
    %v1907 = vld [vmem:[#allocation4 + $0x2d0] sm:$0xff]
    %v1908 = vld [vmem:[#allocation4 + $0x2d8] sm:$0xff]
    %v1909 = vld [vmem:[#allocation4 + $0x2e0] sm:$0xff]
    %v1910 = vld [vmem:[#allocation4 + $0x2e8] sm:$0xff]
    %v1911 = vld [vmem:[#allocation4 + $0x2f0] sm:$0xff]
    %v1912 = vld [vmem:[#allocation4 + $0x2f8] sm:$0xff]
    %v1913 = vld [vmem:[#allocation4 + $0x300] sm:$0xff]
    %v1914 = vld [vmem:[#allocation4 + $0x308] sm:$0xff]
    %v1915 = vld [vmem:[#allocation4 + $0x310] sm:$0xff]
    %v1916 = vld [vmem:[#allocation4 + $0x318] sm:$0xff]
    %v1917 = vld [vmem:[#allocation4 + $0x320] sm:$0xff]
    %v1918 = vld [vmem:[#allocation4 + $0x328] sm:$0xff]
    %v1919 = vld [vmem:[#allocation4 + $0x330] sm:$0xff]
    %v1920 = vld [vmem:[#allocation4 + $0x338] sm:$0xff]
    %v1921 = vld [vmem:[#allocation4 + $0x340] sm:$0xff]
    %v1922 = vld [vmem:[#allocation4 + $0x348] sm:$0xff]
    %v1923 = vld [vmem:[#allocation4 + $0x350] sm:$0xff]
    %v1924 = vld [vmem:[#allocation4 + $0x358] sm:$0xff]
    %v1925 = vld [vmem:[#allocation4 + $0x360] sm:$0xff]
    %v1926 = vld [vmem:[#allocation4 + $0x368] sm:$0xff]
    %v1927 = vld [vmem:[#allocation4 + $0x370] sm:$0xff]
    %v1928 = vld [vmem:[#allocation4 + $0x378] sm:$0xff]
    %v1929 = vld [vmem:[#allocation4 + $0x380] sm:$0xff]
    %v1930 = vld [vmem:[#allocation4 + $0x388] sm:$0xff]
    %v1931 = vld [vmem:[#allocation4 + $0x390] sm:$0xff]
    %v1932 = vld [vmem:[#allocation4 + $0x398] sm:$0xff]
    %v1933 = vld [vmem:[#allocation4 + $0x3a0] sm:$0xff]
    %v1934 = vld [vmem:[#allocation4 + $0x3a8] sm:$0xff]
    %v1935 = vld [vmem:[#allocation4 + $0x3b0] sm:$0xff]
    %v1936 = vld [vmem:[#allocation4 + $0x3b8] sm:$0xff]
    %v1937 = vld [vmem:[#allocation4 + $0x3c0] sm:$0xff]
    %v1938 = vld [vmem:[#allocation4 + $0x3c8] sm:$0xff]
    %v1939 = vld [vmem:[#allocation4 + $0x3d0] sm:$0xff]
    %v1940 = vld [vmem:[#allocation4 + $0x3d8] sm:$0xff]
    %v1941 = vld [vmem:[#allocation4 + $0x3e0] sm:$0xff]
    %v1942 = vld [vmem:[#allocation4 + $0x3e8] sm:$0xff]
    %v1943 = vld [vmem:[#allocation4 + $0x3f0] sm:$0xff]
    %v1944 = vld [vmem:[#allocation4 + $0x3f8] sm:$0xff]
    %v1945 = vld [vmem:[%s4] sm:$0xf]
    %v1947 = vlaneseq
    %v1948 = vshrl.u32 %v1947, 7
    %v1949 = vsub.s32 0, %v1948
    %v1950 = vrot.slane %v1945, %v1949
    %v1951 = vlaneseq
    %v1952 = vshrl.u32 %v1951, 7
    %v1953 = vsub.s32 1, %v1952
    %v1954 = vrot.slane %v1945, %v1953
    %v1955 = vlaneseq
    %v1956 = vshrl.u32 %v1955, 7
    %v1957 = vsub.s32 2, %v1956
    %v1958 = vrot.slane %v1945, %v1957
    %v1959 = vlaneseq
    %v1960 = vshrl.u32 %v1959, 7
    %v1961 = vsub.s32 3, %v1960
    %v1962 = vrot.slane %v1945, %v1961
    %v2095 = vunpack.c.l.b16 %v1817
    %v2096 = vunpack.c.h.b16 %v1817
    %v2097 = vunpack.c.l.b16 %v1818
    %v2098 = vunpack.c.h.b16 %v1818
    %v2099 = vunpack.c.l.b16 %v1819
    %v2100 = vunpack.c.h.b16 %v1819
    %v2101 = vunpack.c.l.b16 %v1820
    %v2102 = vunpack.c.h.b16 %v1820
    %v2103 = vunpack.c.l.b16 %v1821
    %v2104 = vunpack.c.h.b16 %v1821
    %v2105 = vunpack.c.l.b16 %v1822
    %v2106 = vunpack.c.h.b16 %v1822
    %v2107 = vunpack.c.l.b16 %v1823
    %v2108 = vunpack.c.h.b16 %v1823
    %v2109 = vunpack.c.l.b16 %v1824
    %v2110 = vunpack.c.h.b16 %v1824
    %v2111 = vunpack.c.l.b16 %v1825
    %v2112 = vunpack.c.h.b16 %v1825
    %v2113 = vunpack.c.l.b16 %v1826
    %v2114 = vunpack.c.h.b16 %v1826
    %v2115 = vunpack.c.l.b16 %v1827
    %v2116 = vunpack.c.h.b16 %v1827
    %v2117 = vunpack.c.l.b16 %v1828
    %v2118 = vunpack.c.h.b16 %v1828
    %v2119 = vunpack.c.l.b16 %v1829
    %v2120 = vunpack.c.h.b16 %v1829
    %v2121 = vunpack.c.l.b16 %v1830
    %v2122 = vunpack.c.h.b16 %v1830
    %v2123 = vunpack.c.l.b16 %v1831
    %v2124 = vunpack.c.h.b16 %v1831
    %v2125 = vunpack.c.l.b16 %v1832
    %v2126 = vunpack.c.h.b16 %v1832
    %v2127 = vunpack.c.l.b16 %v1833
    %v2128 = vunpack.c.h.b16 %v1833
    %v2129 = vunpack.c.l.b16 %v1834
    %v2130 = vunpack.c.h.b16 %v1834
    %v2131 = vunpack.c.l.b16 %v1835
    %v2132 = vunpack.c.h.b16 %v1835
    %v2133 = vunpack.c.l.b16 %v1836
    %v2134 = vunpack.c.h.b16 %v1836
    %v2135 = vunpack.c.l.b16 %v1837
    %v2136 = vunpack.c.h.b16 %v1837
    %v2137 = vunpack.c.l.b16 %v1838
    %v2138 = vunpack.c.h.b16 %v1838
    %v2139 = vunpack.c.l.b16 %v1839
    %v2140 = vunpack.c.h.b16 %v1839
    %v2141 = vunpack.c.l.b16 %v1840
    %v2142 = vunpack.c.h.b16 %v1840
    %v2143 = vunpack.c.l.b16 %v1841
    %v2144 = vunpack.c.h.b16 %v1841
    %v2145 = vunpack.c.l.b16 %v1842
    %v2146 = vunpack.c.h.b16 %v1842
    %v2147 = vunpack.c.l.b16 %v1843
    %v2148 = vunpack.c.h.b16 %v1843
    %v2149 = vunpack.c.l.b16 %v1844
    %v2150 = vunpack.c.h.b16 %v1844
    %v2151 = vunpack.c.l.b16 %v1845
    %v2152 = vunpack.c.h.b16 %v1845
    %v2153 = vunpack.c.l.b16 %v1846
    %v2154 = vunpack.c.h.b16 %v1846
    %v2155 = vunpack.c.l.b16 %v1847
    %v2156 = vunpack.c.h.b16 %v1847
    %v2157 = vunpack.c.l.b16 %v1848
    %v2158 = vunpack.c.h.b16 %v1848
    %v2159 = vunpack.c.l.b16 %v1849
    %v2160 = vunpack.c.h.b16 %v1849
    %v2161 = vunpack.c.l.b16 %v1850
    %v2162 = vunpack.c.h.b16 %v1850
    %v2163 = vunpack.c.l.b16 %v1851
    %v2164 = vunpack.c.h.b16 %v1851
    %v2165 = vunpack.c.l.b16 %v1852
    %v2166 = vunpack.c.h.b16 %v1852
    %v2167 = vunpack.c.l.b16 %v1853
    %v2168 = vunpack.c.h.b16 %v1853
    %v2169 = vunpack.c.l.b16 %v1854
    %v2170 = vunpack.c.h.b16 %v1854
    %v2171 = vunpack.c.l.b16 %v1855
    %v2172 = vunpack.c.h.b16 %v1855
    %v2173 = vunpack.c.l.b16 %v1856
    %v2174 = vunpack.c.h.b16 %v1856
    %v2175 = vunpack.c.l.b16 %v1857
    %v2176 = vunpack.c.h.b16 %v1857
    %v2177 = vunpack.c.l.b16 %v1858
    %v2178 = vunpack.c.h.b16 %v1858
    %v2179 = vunpack.c.l.b16 %v1859
    %v2180 = vunpack.c.h.b16 %v1859
    %v2181 = vunpack.c.l.b16 %v1860
    %v2182 = vunpack.c.h.b16 %v1860
    %v2183 = vunpack.c.l.b16 %v1861
    %v2184 = vunpack.c.h.b16 %v1861
    %v2185 = vunpack.c.l.b16 %v1862
    %v2186 = vunpack.c.h.b16 %v1862
    %v2187 = vunpack.c.l.b16 %v1863
    %v2188 = vunpack.c.h.b16 %v1863
    %v2189 = vunpack.c.l.b16 %v1864
    %v2190 = vunpack.c.h.b16 %v1864
    %v2191 = vunpack.c.l.b16 %v1865
    %v2192 = vunpack.c.h.b16 %v1865
    %v2193 = vunpack.c.l.b16 %v1866
    %v2194 = vunpack.c.h.b16 %v1866
    %v2195 = vunpack.c.l.b16 %v1867
    %v2196 = vunpack.c.h.b16 %v1867
    %v2197 = vunpack.c.l.b16 %v1868
    %v2198 = vunpack.c.h.b16 %v1868
    %v2199 = vunpack.c.l.b16 %v1869
    %v2200 = vunpack.c.h.b16 %v1869
    %v2201 = vunpack.c.l.b16 %v1870
    %v2202 = vunpack.c.h.b16 %v1870
    %v2203 = vunpack.c.l.b16 %v1871
    %v2204 = vunpack.c.h.b16 %v1871
    %v2205 = vunpack.c.l.b16 %v1872
    %v2206 = vunpack.c.h.b16 %v1872
    %v2207 = vunpack.c.l.b16 %v1873
    %v2208 = vunpack.c.h.b16 %v1873
    %v2209 = vunpack.c.l.b16 %v1874
    %v2210 = vunpack.c.h.b16 %v1874
    %v2211 = vunpack.c.l.b16 %v1875
    %v2212 = vunpack.c.h.b16 %v1875
    %v2213 = vunpack.c.l.b16 %v1876
    %v2214 = vunpack.c.h.b16 %v1876
    %v2215 = vunpack.c.l.b16 %v1877
    %v2216 = vunpack.c.h.b16 %v1877
    %v2217 = vunpack.c.l.b16 %v1878
    %v2218 = vunpack.c.h.b16 %v1878
    %v2219 = vunpack.c.l.b16 %v1879
    %v2220 = vunpack.c.h.b16 %v1879
    %v2221 = vunpack.c.l.b16 %v1880
    %v2222 = vunpack.c.h.b16 %v1880
    %v2223 = vunpack.c.l.b16 %v1881
    %v2224 = vunpack.c.h.b16 %v1881
    %v2225 = vunpack.c.l.b16 %v1882
    %v2226 = vunpack.c.h.b16 %v1882
    %v2227 = vunpack.c.l.b16 %v1883
    %v2228 = vunpack.c.h.b16 %v1883
    %v2229 = vunpack.c.l.b16 %v1884
    %v2230 = vunpack.c.h.b16 %v1884
    %v2231 = vunpack.c.l.b16 %v1885
    %v2232 = vunpack.c.h.b16 %v1885
    %v2233 = vunpack.c.l.b16 %v1886
    %v2234 = vunpack.c.h.b16 %v1886
    %v2235 = vunpack.c.l.b16 %v1887
    %v2236 = vunpack.c.h.b16 %v1887
    %v2237 = vunpack.c.l.b16 %v1888
    %v2238 = vunpack.c.h.b16 %v1888
    %v2239 = vunpack.c.l.b16 %v1889
    %v2240 = vunpack.c.h.b16 %v1889
    %v2241 = vunpack.c.l.b16 %v1890
    %v2242 = vunpack.c.h.b16 %v1890
    %v2243 = vunpack.c.l.b16 %v1891
    %v2244 = vunpack.c.h.b16 %v1891
    %v2245 = vunpack.c.l.b16 %v1892
    %v2246 = vunpack.c.h.b16 %v1892
    %v2247 = vunpack.c.l.b16 %v1893
    %v2248 = vunpack.c.h.b16 %v1893
    %v2249 = vunpack.c.l.b16 %v1894
    %v2250 = vunpack.c.h.b16 %v1894
    %v2251 = vunpack.c.l.b16 %v1895
    %v2252 = vunpack.c.h.b16 %v1895
    %v2253 = vunpack.c.l.b16 %v1896
    %v2254 = vunpack.c.h.b16 %v1896
    %v2255 = vunpack.c.l.b16 %v1897
    %v2256 = vunpack.c.h.b16 %v1897
    %v2257 = vunpack.c.l.b16 %v1898
    %v2258 = vunpack.c.h.b16 %v1898
    %v2259 = vunpack.c.l.b16 %v1899
    %v2260 = vunpack.c.h.b16 %v1899
    %v2261 = vunpack.c.l.b16 %v1900
    %v2262 = vunpack.c.h.b16 %v1900
    %v2263 = vunpack.c.l.b16 %v1901
    %v2264 = vunpack.c.h.b16 %v1901
    %v2265 = vunpack.c.l.b16 %v1902
    %v2266 = vunpack.c.h.b16 %v1902
    %v2267 = vunpack.c.l.b16 %v1903
    %v2268 = vunpack.c.h.b16 %v1903
    %v2269 = vunpack.c.l.b16 %v1904
    %v2270 = vunpack.c.h.b16 %v1904
    %v2271 = vunpack.c.l.b16 %v1905
    %v2272 = vunpack.c.h.b16 %v1905
    %v2273 = vunpack.c.l.b16 %v1906
    %v2274 = vunpack.c.h.b16 %v1906
    %v2275 = vunpack.c.l.b16 %v1907
    %v2276 = vunpack.c.h.b16 %v1907
    %v2277 = vunpack.c.l.b16 %v1908
    %v2278 = vunpack.c.h.b16 %v1908
    %v2279 = vunpack.c.l.b16 %v1909
    %v2280 = vunpack.c.h.b16 %v1909
    %v2281 = vunpack.c.l.b16 %v1910
    %v2282 = vunpack.c.h.b16 %v1910
    %v2283 = vunpack.c.l.b16 %v1911
    %v2284 = vunpack.c.h.b16 %v1911
    %v2285 = vunpack.c.l.b16 %v1912
    %v2286 = vunpack.c.h.b16 %v1912
    %v2287 = vunpack.c.l.b16 %v1913
    %v2288 = vunpack.c.h.b16 %v1913
    %v2289 = vunpack.c.l.b16 %v1914
    %v2290 = vunpack.c.h.b16 %v1914
    %v2291 = vunpack.c.l.b16 %v1915
    %v2292 = vunpack.c.h.b16 %v1915
    %v2293 = vunpack.c.l.b16 %v1916
    %v2294 = vunpack.c.h.b16 %v1916
    %v2295 = vunpack.c.l.b16 %v1917
    %v2296 = vunpack.c.h.b16 %v1917
    %v2297 = vunpack.c.l.b16 %v1918
    %v2298 = vunpack.c.h.b16 %v1918
    %v2299 = vunpack.c.l.b16 %v1919
    %v2300 = vunpack.c.h.b16 %v1919
    %v2301 = vunpack.c.l.b16 %v1920
    %v2302 = vunpack.c.h.b16 %v1920
    %v2303 = vunpack.c.l.b16 %v1921
    %v2304 = vunpack.c.h.b16 %v1921
    %v2305 = vunpack.c.l.b16 %v1922
    %v2306 = vunpack.c.h.b16 %v1922
    %v2307 = vunpack.c.l.b16 %v1923
    %v2308 = vunpack.c.h.b16 %v1923
    %v2309 = vunpack.c.l.b16 %v1924
    %v2310 = vunpack.c.h.b16 %v1924
    %v2311 = vunpack.c.l.b16 %v1925
    %v2312 = vunpack.c.h.b16 %v1925
    %v2313 = vunpack.c.l.b16 %v1926
    %v2314 = vunpack.c.h.b16 %v1926
    %v2315 = vunpack.c.l.b16 %v1927
    %v2316 = vunpack.c.h.b16 %v1927
    %v2317 = vunpack.c.l.b16 %v1928
    %v2318 = vunpack.c.h.b16 %v1928
    %v2319 = vunpack.c.l.b16 %v1929
    %v2320 = vunpack.c.h.b16 %v1929
    %v2321 = vunpack.c.l.b16 %v1930
    %v2322 = vunpack.c.h.b16 %v1930
    %v2323 = vunpack.c.l.b16 %v1931
    %v2324 = vunpack.c.h.b16 %v1931
    %v2325 = vunpack.c.l.b16 %v1932
    %v2326 = vunpack.c.h.b16 %v1932
    %v2327 = vunpack.c.l.b16 %v1933
    %v2328 = vunpack.c.h.b16 %v1933
    %v2329 = vunpack.c.l.b16 %v1934
    %v2330 = vunpack.c.h.b16 %v1934
    %v2331 = vunpack.c.l.b16 %v1935
    %v2332 = vunpack.c.h.b16 %v1935
    %v2333 = vunpack.c.l.b16 %v1936
    %v2334 = vunpack.c.h.b16 %v1936
    %v2335 = vunpack.c.l.b16 %v1937
    %v2336 = vunpack.c.h.b16 %v1937
    %v2337 = vunpack.c.l.b16 %v1938
    %v2338 = vunpack.c.h.b16 %v1938
    %v2339 = vunpack.c.l.b16 %v1939
    %v2340 = vunpack.c.h.b16 %v1939
    %v2341 = vunpack.c.l.b16 %v1940
    %v2342 = vunpack.c.h.b16 %v1940
    %v2343 = vunpack.c.l.b16 %v1941
    %v2344 = vunpack.c.h.b16 %v1941
    %v2345 = vunpack.c.l.b16 %v1942
    %v2346 = vunpack.c.h.b16 %v1942
    %v2347 = vunpack.c.l.b16 %v1943
    %v2348 = vunpack.c.h.b16 %v1943
    %v2349 = vunpack.c.l.b16 %v1944
    %v2350 = vunpack.c.h.b16 %v1944
    %v2351 = vpack.c.b16 %v2099, %v2095
    %v2352 = vpack.c.b16 %v2100, %v2096
    %v2353 = vpack.c.b16 %v2101, %v2097
    %v2354 = vpack.c.b16 %v2102, %v2098
    %v2355 = vpack.c.b16 %v2107, %v2103
    %v2356 = vpack.c.b16 %v2108, %v2104
    %v2357 = vpack.c.b16 %v2109, %v2105
    %v2358 = vpack.c.b16 %v2110, %v2106
    %v2359 = vpack.c.b16 %v2115, %v2111
    %v2360 = vpack.c.b16 %v2116, %v2112
    %v2361 = vpack.c.b16 %v2117, %v2113
    %v2362 = vpack.c.b16 %v2118, %v2114
    %v2363 = vpack.c.b16 %v2123, %v2119
    %v2364 = vpack.c.b16 %v2124, %v2120
    %v2365 = vpack.c.b16 %v2125, %v2121
    %v2366 = vpack.c.b16 %v2126, %v2122
    %v2367 = vpack.c.b16 %v2131, %v2127
    %v2368 = vpack.c.b16 %v2132, %v2128
    %v2369 = vpack.c.b16 %v2133, %v2129
    %v2370 = vpack.c.b16 %v2134, %v2130
    %v2371 = vpack.c.b16 %v2139, %v2135
    %v2372 = vpack.c.b16 %v2140, %v2136
    %v2373 = vpack.c.b16 %v2141, %v2137
    %v2374 = vpack.c.b16 %v2142, %v2138
    %v2375 = vpack.c.b16 %v2147, %v2143
    %v2376 = vpack.c.b16 %v2148, %v2144
    %v2377 = vpack.c.b16 %v2149, %v2145
    %v2378 = vpack.c.b16 %v2150, %v2146
    %v2379 = vpack.c.b16 %v2155, %v2151
    %v2380 = vpack.c.b16 %v2156, %v2152
    %v2381 = vpack.c.b16 %v2157, %v2153
    %v2382 = vpack.c.b16 %v2158, %v2154
    %v2383 = vpack.c.b16 %v2163, %v2159
    %v2384 = vpack.c.b16 %v2164, %v2160
    %v2385 = vpack.c.b16 %v2165, %v2161
    %v2386 = vpack.c.b16 %v2166, %v2162
    %v2387 = vpack.c.b16 %v2171, %v2167
    %v2388 = vpack.c.b16 %v2172, %v2168
    %v2389 = vpack.c.b16 %v2173, %v2169
    %v2390 = vpack.c.b16 %v2174, %v2170
    %v2391 = vpack.c.b16 %v2179, %v2175
    %v2392 = vpack.c.b16 %v2180, %v2176
    %v2393 = vpack.c.b16 %v2181, %v2177
    %v2394 = vpack.c.b16 %v2182, %v2178
    %v2395 = vpack.c.b16 %v2187, %v2183
    %v2396 = vpack.c.b16 %v2188, %v2184
    %v2397 = vpack.c.b16 %v2189, %v2185
    %v2398 = vpack.c.b16 %v2190, %v2186
    %v2399 = vpack.c.b16 %v2195, %v2191
    %v2400 = vpack.c.b16 %v2196, %v2192
    %v2401 = vpack.c.b16 %v2197, %v2193
    %v2402 = vpack.c.b16 %v2198, %v2194
    %v2403 = vpack.c.b16 %v2203, %v2199
    %v2404 = vpack.c.b16 %v2204, %v2200
    %v2405 = vpack.c.b16 %v2205, %v2201
    %v2406 = vpack.c.b16 %v2206, %v2202
    %v2407 = vpack.c.b16 %v2211, %v2207
    %v2408 = vpack.c.b16 %v2212, %v2208
    %v2409 = vpack.c.b16 %v2213, %v2209
    %v2410 = vpack.c.b16 %v2214, %v2210
    %v2411 = vpack.c.b16 %v2219, %v2215
    %v2412 = vpack.c.b16 %v2220, %v2216
    %v2413 = vpack.c.b16 %v2221, %v2217
    %v2414 = vpack.c.b16 %v2222, %v2218
    %v2415 = vpack.c.b16 %v2227, %v2223
    %v2416 = vpack.c.b16 %v2228, %v2224
    %v2417 = vpack.c.b16 %v2229, %v2225
    %v2418 = vpack.c.b16 %v2230, %v2226
    %v2419 = vpack.c.b16 %v2235, %v2231
    %v2420 = vpack.c.b16 %v2236, %v2232
    %v2421 = vpack.c.b16 %v2237, %v2233
    %v2422 = vpack.c.b16 %v2238, %v2234
    %v2423 = vpack.c.b16 %v2243, %v2239
    %v2424 = vpack.c.b16 %v2244, %v2240
    %v2425 = vpack.c.b16 %v2245, %v2241
    %v2426 = vpack.c.b16 %v2246, %v2242
    %v2427 = vpack.c.b16 %v2251, %v2247
    %v2428 = vpack.c.b16 %v2252, %v2248
    %v2429 = vpack.c.b16 %v2253, %v2249
    %v2430 = vpack.c.b16 %v2254, %v2250
    %v2431 = vpack.c.b16 %v2259, %v2255
    %v2432 = vpack.c.b16 %v2260, %v2256
    %v2433 = vpack.c.b16 %v2261, %v2257
    %v2434 = vpack.c.b16 %v2262, %v2258
    %v2435 = vpack.c.b16 %v2267, %v2263
    %v2436 = vpack.c.b16 %v2268, %v2264
    %v2437 = vpack.c.b16 %v2269, %v2265
    %v2438 = vpack.c.b16 %v2270, %v2266
    %v2439 = vpack.c.b16 %v2275, %v2271
    %v2440 = vpack.c.b16 %v2276, %v2272
    %v2441 = vpack.c.b16 %v2277, %v2273
    %v2442 = vpack.c.b16 %v2278, %v2274
    %v2443 = vpack.c.b16 %v2283, %v2279
    %v2444 = vpack.c.b16 %v2284, %v2280
    %v2445 = vpack.c.b16 %v2285, %v2281
    %v2446 = vpack.c.b16 %v2286, %v2282
    %v2447 = vpack.c.b16 %v2291, %v2287
    %v2448 = vpack.c.b16 %v2292, %v2288
    %v2449 = vpack.c.b16 %v2293, %v2289
    %v2450 = vpack.c.b16 %v2294, %v2290
    %v2451 = vpack.c.b16 %v2299, %v2295
    %v2452 = vpack.c.b16 %v2300, %v2296
    %v2453 = vpack.c.b16 %v2301, %v2297
    %v2454 = vpack.c.b16 %v2302, %v2298
    %v2455 = vpack.c.b16 %v2307, %v2303
    %v2456 = vpack.c.b16 %v2308, %v2304
    %v2457 = vpack.c.b16 %v2309, %v2305
    %v2458 = vpack.c.b16 %v2310, %v2306
    %v2459 = vpack.c.b16 %v2315, %v2311
    %v2460 = vpack.c.b16 %v2316, %v2312
    %v2461 = vpack.c.b16 %v2317, %v2313
    %v2462 = vpack.c.b16 %v2318, %v2314
    %v2463 = vpack.c.b16 %v2323, %v2319
    %v2464 = vpack.c.b16 %v2324, %v2320
    %v2465 = vpack.c.b16 %v2325, %v2321
    %v2466 = vpack.c.b16 %v2326, %v2322
    %v2467 = vpack.c.b16 %v2331, %v2327
    %v2468 = vpack.c.b16 %v2332, %v2328
    %v2469 = vpack.c.b16 %v2333, %v2329
    %v2470 = vpack.c.b16 %v2334, %v2330
    %v2471 = vpack.c.b16 %v2339, %v2335
    %v2472 = vpack.c.b16 %v2340, %v2336
    %v2473 = vpack.c.b16 %v2341, %v2337
    %v2474 = vpack.c.b16 %v2342, %v2338
    %v2475 = vpack.c.b16 %v2347, %v2343
    %v2476 = vpack.c.b16 %v2348, %v2344
    %v2477 = vpack.c.b16 %v2349, %v2345
    %v2478 = vpack.c.b16 %v2350, %v2346
    %2607 = vmatprep.subr.bf16.mxu0 %v2380
    %2608 = vmatpush1.bf16.msra.mxu0 %v2379
    %2609 = vmatprep.subr.bf16.mxu0 %v2376
    %2610 = vmatpush1.bf16.msra.mxu0 %v2375
    %2611 = vmatprep.subr.bf16.mxu0 %v2372
    %2612 = vmatpush1.bf16.msra.mxu0 %v2371
    %2613 = vmatprep.subr.bf16.mxu0 %v2368
    %2614 = vmatpush1.bf16.msra.mxu0 %v2367
    %2615 = vmatprep.subr.bf16.mxu0 %v2364
    %2616 = vmatpush1.bf16.msra.mxu0 %v2363
    %2617 = vmatprep.subr.bf16.mxu0 %v2360
    %2618 = vmatpush1.bf16.msra.mxu0 %v2359
    %2619 = vmatprep.subr.bf16.mxu0 %v2356
    %2620 = vmatpush1.bf16.msra.mxu0 %v2355
    %2621 = vmatprep.subr.bf16.mxu0 %v2352
    %2622 = vmatpush1.bf16.msra.mxu0 %v2351
    %2623 = vmatprep.subr.bf16.mxu0 %v2412
    %2624 = vmatpush2.bf16.msra.mxu0 %v2411
    %2625 = vmatprep.subr.bf16.mxu0 %v2408
    %2626 = vmatpush2.bf16.msra.mxu0 %v2407
    %2627 = vmatprep.subr.bf16.mxu0 %v2404
    %2628 = vmatpush2.bf16.msra.mxu0 %v2403
    %2629 = vmatprep.subr.bf16.mxu0 %v2400
    %2630 = vmatpush2.bf16.msra.mxu0 %v2399
    %2631 = vmatprep.subr.bf16.mxu0 %v2396
    %2632 = vmatpush2.bf16.msra.mxu0 %v2395
    %2633 = vmatprep.subr.bf16.mxu0 %v2392
    %2634 = vmatpush2.bf16.msra.mxu0 %v2391
    %2635 = vmatprep.subr.bf16.mxu0 %v2388
    %2636 = vmatpush2.bf16.msra.mxu0 %v2387
    %2637 = vmatprep.subr.bf16.mxu0 %v2384
    %2638 = vmatpush2.bf16.msra.mxu0 %v2383
    %2639 = vmatprep.mubr.bf16.mxu0 %v1814
    %2640 = vmatmul.mubr.bf16.gmra.mxu0 %v1813
    %v2641 = vpop.f32.mrf.mxu0
    %v2642 = vadd.f32 %v1950, %v2641
    %v2643 = vpop.f32.mrf.mxu0
    %v2644 = vadd.f32 %v1954, %v2643
    %v2645 = vpop.f32.mrf.mxu0
    %v2646 = vadd.f32 %v1950, %v2645
    %v2647 = vpop.f32.mrf.mxu0
    %v2648 = vadd.f32 %v1954, %v2647
    %2649 = vdwg.mxu0
    %2650 = vmatprep.subr.bf16.mxu0 %v2444
    %2651 = vmatpush1.bf16.msra.mxu0 %v2443
    %2652 = vmatprep.subr.bf16.mxu0 %v2440
    %2653 = vmatpush1.bf16.msra.mxu0 %v2439
    %2654 = vmatprep.subr.bf16.mxu0 %v2436
    %2655 = vmatpush1.bf16.msra.mxu0 %v2435
    %2656 = vmatprep.subr.bf16.mxu0 %v2432
    %2657 = vmatpush1.bf16.msra.mxu0 %v2431
    %2658 = vmatprep.subr.bf16.mxu0 %v2428
    %2659 = vmatpush1.bf16.msra.mxu0 %v2427
    %2660 = vmatprep.subr.bf16.mxu0 %v2424
    %2661 = vmatpush1.bf16.msra.mxu0 %v2423
    %2662 = vmatprep.subr.bf16.mxu0 %v2420
    %2663 = vmatpush1.bf16.msra.mxu0 %v2419
    %2664 = vmatprep.subr.bf16.mxu0 %v2416
    %2665 = vmatpush1.bf16.msra.mxu0 %v2415
    %2666 = vmatprep.subr.bf16.mxu0 %v2476
    %2667 = vmatpush2.bf16.msra.mxu0 %v2475
    %2668 = vmatprep.subr.bf16.mxu0 %v2472
    %2669 = vmatpush2.bf16.msra.mxu0 %v2471
    %2670 = vmatprep.subr.bf16.mxu0 %v2468
    %2671 = vmatpush2.bf16.msra.mxu0 %v2467
    %2672 = vmatprep.subr.bf16.mxu0 %v2464
    %2673 = vmatpush2.bf16.msra.mxu0 %v2463
    %2674 = vmatprep.subr.bf16.mxu0 %v2460
    %2675 = vmatpush2.bf16.msra.mxu0 %v2459
    %2676 = vmatprep.subr.bf16.mxu0 %v2456
    %2677 = vmatpush2.bf16.msra.mxu0 %v2455
    %2678 = vmatprep.subr.bf16.mxu0 %v2452
    %2679 = vmatpush2.bf16.msra.mxu0 %v2451
    %2680 = vmatprep.subr.bf16.mxu0 %v2448
    %2681 = vmatpush2.bf16.msra.mxu0 %v2447
    %2682 = vmatprep.mubr.bf16.mxu0 %v1816
    %2683 = vmatmul.mubr.bf16.gmra.mxu0 %v1815
    %v2684 = vpop.f32.mrf.mxu0
    %v2685 = vadd.f32 %v2642, %v2684
    %v2686 = vpop.f32.mrf.mxu0
    %v2687 = vadd.f32 %v2644, %v2686
    %v2688 = vpop.f32.mrf.mxu0
    %v2689 = vadd.f32 %v2646, %v2688
    %v2690 = vpop.f32.mrf.mxu0
    %v2691 = vadd.f32 %v2648, %v2690
    %2692 = vdwg.mxu0
    %2693 = vmatprep.subr.bf16.mxu0 %v2382
    %2694 = vmatpush1.bf16.msra.mxu0 %v2381
    %2695 = vmatprep.subr.bf16.mxu0 %v2378
    %2696 = vmatpush1.bf16.msra.mxu0 %v2377
    %2697 = vmatprep.subr.bf16.mxu0 %v2374
    %2698 = vmatpush1.bf16.msra.mxu0 %v2373
    %2699 = vmatprep.subr.bf16.mxu0 %v2370
    %2700 = vmatpush1.bf16.msra.mxu0 %v2369
    %2701 = vmatprep.subr.bf16.mxu0 %v2366
    %2702 = vmatpush1.bf16.msra.mxu0 %v2365
    %2703 = vmatprep.subr.bf16.mxu0 %v2362
    %2704 = vmatpush1.bf16.msra.mxu0 %v2361
    %2705 = vmatprep.subr.bf16.mxu0 %v2358
    %2706 = vmatpush1.bf16.msra.mxu0 %v2357
    %2707 = vmatprep.subr.bf16.mxu0 %v2354
    %2708 = vmatpush1.bf16.msra.mxu0 %v2353
    %2709 = vmatprep.subr.bf16.mxu0 %v2414
    %2710 = vmatpush2.bf16.msra.mxu0 %v2413
    %2711 = vmatprep.subr.bf16.mxu0 %v2410
    %2712 = vmatpush2.bf16.msra.mxu0 %v2409
    %2713 = vmatprep.subr.bf16.mxu0 %v2406
    %2714 = vmatpush2.bf16.msra.mxu0 %v2405
    %2715 = vmatprep.subr.bf16.mxu0 %v2402
    %2716 = vmatpush2.bf16.msra.mxu0 %v2401
    %2717 = vmatprep.subr.bf16.mxu0 %v2398
    %2718 = vmatpush2.bf16.msra.mxu0 %v2397
    %2719 = vmatprep.subr.bf16.mxu0 %v2394
    %2720 = vmatpush2.bf16.msra.mxu0 %v2393
    %2721 = vmatprep.subr.bf16.mxu0 %v2390
    %2722 = vmatpush2.bf16.msra.mxu0 %v2389
    %2723 = vmatprep.subr.bf16.mxu0 %v2386
    %2724 = vmatpush2.bf16.msra.mxu0 %v2385
    %2725 = vmatprep.mubr.bf16.mxu0 %v1814
    %2726 = vmatmul.mubr.bf16.gmra.mxu0 %v1813
    %v2727 = vpop.f32.mrf.mxu0
    %v2728 = vadd.f32 %v1958, %v2727
    %v2729 = vpop.f32.mrf.mxu0
    %v2730 = vadd.f32 %v1962, %v2729
    %v2731 = vpop.f32.mrf.mxu0
    %v2732 = vadd.f32 %v1958, %v2731
    %v2733 = vpop.f32.mrf.mxu0
    %v2734 = vadd.f32 %v1962, %v2733
    %2735 = vdwg.mxu0
    %2736 = vmatprep.subr.bf16.mxu0 %v2446
    %2737 = vmatpush1.bf16.msra.mxu0 %v2445
    %2738 = vmatprep.subr.bf16.mxu0 %v2442
    %2739 = vmatpush1.bf16.msra.mxu0 %v2441
    %2740 = vmatprep.subr.bf16.mxu0 %v2438
    %2741 = vmatpush1.bf16.msra.mxu0 %v2437
    %2742 = vmatprep.subr.bf16.mxu0 %v2434
    %2743 = vmatpush1.bf16.msra.mxu0 %v2433
    %2744 = vmatprep.subr.bf16.mxu0 %v2430
    %2745 = vmatpush1.bf16.msra.mxu0 %v2429
    %2746 = vmatprep.subr.bf16.mxu0 %v2426
    %2747 = vmatpush1.bf16.msra.mxu0 %v2425
    %2748 = vmatprep.subr.bf16.mxu0 %v2422
    %2749 = vmatpush1.bf16.msra.mxu0 %v2421
    %2750 = vmatprep.subr.bf16.mxu0 %v2418
    %2751 = vmatpush1.bf16.msra.mxu0 %v2417
    %2752 = vmatprep.subr.bf16.mxu0 %v2478
    %2753 = vmatpush2.bf16.msra.mxu0 %v2477
    %2754 = vmatprep.subr.bf16.mxu0 %v2474
    %2755 = vmatpush2.bf16.msra.mxu0 %v2473
    %2756 = vmatprep.subr.bf16.mxu0 %v2470
    %2757 = vmatpush2.bf16.msra.mxu0 %v2469
    %2758 = vmatprep.subr.bf16.mxu0 %v2466
    %2759 = vmatpush2.bf16.msra.mxu0 %v2465
    %2760 = vmatprep.subr.bf16.mxu0 %v2462
    %2761 = vmatpush2.bf16.msra.mxu0 %v2461
    %2762 = vmatprep.subr.bf16.mxu0 %v2458
    %2763 = vmatpush2.bf16.msra.mxu0 %v2457
    %2764 = vmatprep.subr.bf16.mxu0 %v2454
    %2765 = vmatpush2.bf16.msra.mxu0 %v2453
    %2766 = vmatprep.subr.bf16.mxu0 %v2450
    %2767 = vmatpush2.bf16.msra.mxu0 %v2449
    %2768 = vmatprep.mubr.bf16.mxu0 %v1816
    %2769 = vmatmul.mubr.bf16.gmra.mxu0 %v1815
    %v2770 = vpop.f32.mrf.mxu0
    %v2771 = vadd.f32 %v2728, %v2770
    %v2772 = vpop.f32.mrf.mxu0
    %v2773 = vadd.f32 %v2730, %v2772
    %v2774 = vpop.f32.mrf.mxu0
    %v2775 = vadd.f32 %v2732, %v2774
    %v2776 = vpop.f32.mrf.mxu0
    %v2777 = vadd.f32 %v2734, %v2776
    %2778 = vdwg.mxu0
    %v2779 = vmax.f32 %v2685, 0.0
    %v2780 = vmax.f32 %v2687, 0.0
    %v2781 = vmax.f32 %v2771, 0.0
    %v2782 = vmax.f32 %v2773, 0.0
    %v2783 = vmax.f32 %v2689, 0.0
    %v2784 = vmax.f32 %v2691, 0.0
    %v2785 = vmax.f32 %v2775, 0.0
    %v2786 = vmax.f32 %v2777, 0.0
    %v2787 = vpack.c.bf16 %v2783, %v2779
    %v2788 = vpack.c.bf16 %v2784, %v2780
    %v2789 = vpack.c.bf16 %v2785, %v2781
    %v2790 = vpack.c.bf16 %v2786, %v2782
    %v2791 = vld [vmem:[#allocation6] sm:$0xff]
    %v2792 = vld [vmem:[#allocation6 + $0x8] sm:$0xff]
    %v2793 = vld [vmem:[#allocation6 + $0x10] sm:$0xff]
    %v2794 = vld [vmem:[#allocation6 + $0x18] sm:$0xff]
    %v2795 = vld [vmem:[#allocation6 + $0x20] sm:$0xff]
    %v2796 = vld [vmem:[#allocation6 + $0x28] sm:$0xff]
    %v2797 = vld [vmem:[#allocation6 + $0x30] sm:$0xff]
    %v2798 = vld [vmem:[#allocation6 + $0x38] sm:$0xff]
    %v2799 = vld [vmem:[#allocation6 + $0x40] sm:$0xff]
    %v2800 = vld [vmem:[#allocation6 + $0x48] sm:$0xff]
    %v2801 = vld [vmem:[#allocation6 + $0x50] sm:$0xff]
    %v2802 = vld [vmem:[#allocation6 + $0x58] sm:$0xff]
    %v2803 = vld [vmem:[#allocation6 + $0x60] sm:$0xff]
    %v2804 = vld [vmem:[#allocation6 + $0x68] sm:$0xff]
    %v2805 = vld [vmem:[#allocation6 + $0x70] sm:$0xff]
    %v2806 = vld [vmem:[#allocation6 + $0x78] sm:$0xff]
    %v2807 = vld [vmem:[#allocation6 + $0x80] sm:$0xff]
    %v2808 = vld [vmem:[#allocation6 + $0x88] sm:$0xff]
    %v2809 = vld [vmem:[#allocation6 + $0x90] sm:$0xff]
    %v2810 = vld [vmem:[#allocation6 + $0x98] sm:$0xff]
    %v2811 = vld [vmem:[#allocation6 + $0xa0] sm:$0xff]
    %v2812 = vld [vmem:[#allocation6 + $0xa8] sm:$0xff]
    %v2813 = vld [vmem:[#allocation6 + $0xb0] sm:$0xff]
    %v2814 = vld [vmem:[#allocation6 + $0xb8] sm:$0xff]
    %v2815 = vld [vmem:[#allocation6 + $0xc0] sm:$0xff]
    %v2816 = vld [vmem:[#allocation6 + $0xc8] sm:$0xff]
    %v2817 = vld [vmem:[#allocation6 + $0xd0] sm:$0xff]
    %v2818 = vld [vmem:[#allocation6 + $0xd8] sm:$0xff]
    %v2819 = vld [vmem:[#allocation6 + $0xe0] sm:$0xff]
    %v2820 = vld [vmem:[#allocation6 + $0xe8] sm:$0xff]
    %v2821 = vld [vmem:[#allocation6 + $0xf0] sm:$0xff]
    %v2822 = vld [vmem:[#allocation6 + $0xf8] sm:$0xff]
    %v2823 = vld [vmem:[#allocation6 + $0x100] sm:$0xff]
    %v2824 = vld [vmem:[#allocation6 + $0x108] sm:$0xff]
    %v2825 = vld [vmem:[#allocation6 + $0x110] sm:$0xff]
    %v2826 = vld [vmem:[#allocation6 + $0x118] sm:$0xff]
    %v2827 = vld [vmem:[#allocation6 + $0x120] sm:$0xff]
    %v2828 = vld [vmem:[#allocation6 + $0x128] sm:$0xff]
    %v2829 = vld [vmem:[#allocation6 + $0x130] sm:$0xff]
    %v2830 = vld [vmem:[#allocation6 + $0x138] sm:$0xff]
    %v2831 = vld [vmem:[#allocation6 + $0x140] sm:$0xff]
    %v2832 = vld [vmem:[#allocation6 + $0x148] sm:$0xff]
    %v2833 = vld [vmem:[#allocation6 + $0x150] sm:$0xff]
    %v2834 = vld [vmem:[#allocation6 + $0x158] sm:$0xff]
    %v2835 = vld [vmem:[#allocation6 + $0x160] sm:$0xff]
    %v2836 = vld [vmem:[#allocation6 + $0x168] sm:$0xff]
    %v2837 = vld [vmem:[#allocation6 + $0x170] sm:$0xff]
    %v2838 = vld [vmem:[#allocation6 + $0x178] sm:$0xff]
    %v2839 = vld [vmem:[#allocation6 + $0x180] sm:$0xff]
    %v2840 = vld [vmem:[#allocation6 + $0x188] sm:$0xff]
    %v2841 = vld [vmem:[#allocation6 + $0x190] sm:$0xff]
    %v2842 = vld [vmem:[#allocation6 + $0x198] sm:$0xff]
    %v2843 = vld [vmem:[#allocation6 + $0x1a0] sm:$0xff]
    %v2844 = vld [vmem:[#allocation6 + $0x1a8] sm:$0xff]
    %v2845 = vld [vmem:[#allocation6 + $0x1b0] sm:$0xff]
    %v2846 = vld [vmem:[#allocation6 + $0x1b8] sm:$0xff]
    %v2847 = vld [vmem:[#allocation6 + $0x1c0] sm:$0xff]
    %v2848 = vld [vmem:[#allocation6 + $0x1c8] sm:$0xff]
    %v2849 = vld [vmem:[#allocation6 + $0x1d0] sm:$0xff]
    %v2850 = vld [vmem:[#allocation6 + $0x1d8] sm:$0xff]
    %v2851 = vld [vmem:[#allocation6 + $0x1e0] sm:$0xff]
    %v2852 = vld [vmem:[#allocation6 + $0x1e8] sm:$0xff]
    %v2853 = vld [vmem:[#allocation6 + $0x1f0] sm:$0xff]
    %v2854 = vld [vmem:[#allocation6 + $0x1f8] sm:$0xff]
    %v2855 = vld [vmem:[#allocation6 + $0x200] sm:$0xff]
    %v2856 = vld [vmem:[#allocation6 + $0x208] sm:$0xff]
    %v2857 = vld [vmem:[#allocation6 + $0x210] sm:$0xff]
    %v2858 = vld [vmem:[#allocation6 + $0x218] sm:$0xff]
    %v2859 = vld [vmem:[#allocation6 + $0x220] sm:$0xff]
    %v2860 = vld [vmem:[#allocation6 + $0x228] sm:$0xff]
    %v2861 = vld [vmem:[#allocation6 + $0x230] sm:$0xff]
    %v2862 = vld [vmem:[#allocation6 + $0x238] sm:$0xff]
    %v2863 = vld [vmem:[#allocation6 + $0x240] sm:$0xff]
    %v2864 = vld [vmem:[#allocation6 + $0x248] sm:$0xff]
    %v2865 = vld [vmem:[#allocation6 + $0x250] sm:$0xff]
    %v2866 = vld [vmem:[#allocation6 + $0x258] sm:$0xff]
    %v2867 = vld [vmem:[#allocation6 + $0x260] sm:$0xff]
    %v2868 = vld [vmem:[#allocation6 + $0x268] sm:$0xff]
    %v2869 = vld [vmem:[#allocation6 + $0x270] sm:$0xff]
    %v2870 = vld [vmem:[#allocation6 + $0x278] sm:$0xff]
    %v2871 = vld [vmem:[#allocation6 + $0x280] sm:$0xff]
    %v2872 = vld [vmem:[#allocation6 + $0x288] sm:$0xff]
    %v2873 = vld [vmem:[#allocation6 + $0x290] sm:$0xff]
    %v2874 = vld [vmem:[#allocation6 + $0x298] sm:$0xff]
    %v2875 = vld [vmem:[#allocation6 + $0x2a0] sm:$0xff]
    %v2876 = vld [vmem:[#allocation6 + $0x2a8] sm:$0xff]
    %v2877 = vld [vmem:[#allocation6 + $0x2b0] sm:$0xff]
    %v2878 = vld [vmem:[#allocation6 + $0x2b8] sm:$0xff]
    %v2879 = vld [vmem:[#allocation6 + $0x2c0] sm:$0xff]
    %v2880 = vld [vmem:[#allocation6 + $0x2c8] sm:$0xff]
    %v2881 = vld [vmem:[#allocation6 + $0x2d0] sm:$0xff]
    %v2882 = vld [vmem:[#allocation6 + $0x2d8] sm:$0xff]
    %v2883 = vld [vmem:[#allocation6 + $0x2e0] sm:$0xff]
    %v2884 = vld [vmem:[#allocation6 + $0x2e8] sm:$0xff]
    %v2885 = vld [vmem:[#allocation6 + $0x2f0] sm:$0xff]
    %v2886 = vld [vmem:[#allocation6 + $0x2f8] sm:$0xff]
    %v2887 = vld [vmem:[#allocation6 + $0x300] sm:$0xff]
    %v2888 = vld [vmem:[#allocation6 + $0x308] sm:$0xff]
    %v2889 = vld [vmem:[#allocation6 + $0x310] sm:$0xff]
    %v2890 = vld [vmem:[#allocation6 + $0x318] sm:$0xff]
    %v2891 = vld [vmem:[#allocation6 + $0x320] sm:$0xff]
    %v2892 = vld [vmem:[#allocation6 + $0x328] sm:$0xff]
    %v2893 = vld [vmem:[#allocation6 + $0x330] sm:$0xff]
    %v2894 = vld [vmem:[#allocation6 + $0x338] sm:$0xff]
    %v2895 = vld [vmem:[#allocation6 + $0x340] sm:$0xff]
    %v2896 = vld [vmem:[#allocation6 + $0x348] sm:$0xff]
    %v2897 = vld [vmem:[#allocation6 + $0x350] sm:$0xff]
    %v2898 = vld [vmem:[#allocation6 + $0x358] sm:$0xff]
    %v2899 = vld [vmem:[#allocation6 + $0x360] sm:$0xff]
    %v2900 = vld [vmem:[#allocation6 + $0x368] sm:$0xff]
    %v2901 = vld [vmem:[#allocation6 + $0x370] sm:$0xff]
    %v2902 = vld [vmem:[#allocation6 + $0x378] sm:$0xff]
    %v2903 = vld [vmem:[#allocation6 + $0x380] sm:$0xff]
    %v2904 = vld [vmem:[#allocation6 + $0x388] sm:$0xff]
    %v2905 = vld [vmem:[#allocation6 + $0x390] sm:$0xff]
    %v2906 = vld [vmem:[#allocation6 + $0x398] sm:$0xff]
    %v2907 = vld [vmem:[#allocation6 + $0x3a0] sm:$0xff]
    %v2908 = vld [vmem:[#allocation6 + $0x3a8] sm:$0xff]
    %v2909 = vld [vmem:[#allocation6 + $0x3b0] sm:$0xff]
    %v2910 = vld [vmem:[#allocation6 + $0x3b8] sm:$0xff]
    %v2911 = vld [vmem:[#allocation6 + $0x3c0] sm:$0xff]
    %v2912 = vld [vmem:[#allocation6 + $0x3c8] sm:$0xff]
    %v2913 = vld [vmem:[#allocation6 + $0x3d0] sm:$0xff]
    %v2914 = vld [vmem:[#allocation6 + $0x3d8] sm:$0xff]
    %v2915 = vld [vmem:[#allocation6 + $0x3e0] sm:$0xff]
    %v2916 = vld [vmem:[#allocation6 + $0x3e8] sm:$0xff]
    %v2917 = vld [vmem:[#allocation6 + $0x3f0] sm:$0xff]
    %v2918 = vld [vmem:[#allocation6 + $0x3f8] sm:$0xff]
    %v2919 = vld [vmem:[%s6] sm:$0xf]
    %v2921 = vlaneseq
    %v2922 = vshrl.u32 %v2921, 7
    %v2923 = vsub.s32 0, %v2922
    %v2924 = vrot.slane %v2919, %v2923
    %v2925 = vlaneseq
    %v2926 = vshrl.u32 %v2925, 7
    %v2927 = vsub.s32 1, %v2926
    %v2928 = vrot.slane %v2919, %v2927
    %v2929 = vlaneseq
    %v2930 = vshrl.u32 %v2929, 7
    %v2931 = vsub.s32 2, %v2930
    %v2932 = vrot.slane %v2919, %v2931
    %v2933 = vlaneseq
    %v2934 = vshrl.u32 %v2933, 7
    %v2935 = vsub.s32 3, %v2934
    %v2936 = vrot.slane %v2919, %v2935
    %v3069 = vunpack.c.l.b16 %v2791
    %v3070 = vunpack.c.h.b16 %v2791
    %v3071 = vunpack.c.l.b16 %v2792
    %v3072 = vunpack.c.h.b16 %v2792
    %v3073 = vunpack.c.l.b16 %v2793
    %v3074 = vunpack.c.h.b16 %v2793
    %v3075 = vunpack.c.l.b16 %v2794
    %v3076 = vunpack.c.h.b16 %v2794
    %v3077 = vunpack.c.l.b16 %v2795
    %v3078 = vunpack.c.h.b16 %v2795
    %v3079 = vunpack.c.l.b16 %v2796
    %v3080 = vunpack.c.h.b16 %v2796
    %v3081 = vunpack.c.l.b16 %v2797
    %v3082 = vunpack.c.h.b16 %v2797
    %v3083 = vunpack.c.l.b16 %v2798
    %v3084 = vunpack.c.h.b16 %v2798
    %v3085 = vunpack.c.l.b16 %v2799
    %v3086 = vunpack.c.h.b16 %v2799
    %v3087 = vunpack.c.l.b16 %v2800
    %v3088 = vunpack.c.h.b16 %v2800
    %v3089 = vunpack.c.l.b16 %v2801
    %v3090 = vunpack.c.h.b16 %v2801
    %v3091 = vunpack.c.l.b16 %v2802
    %v3092 = vunpack.c.h.b16 %v2802
    %v3093 = vunpack.c.l.b16 %v2803
    %v3094 = vunpack.c.h.b16 %v2803
    %v3095 = vunpack.c.l.b16 %v2804
    %v3096 = vunpack.c.h.b16 %v2804
    %v3097 = vunpack.c.l.b16 %v2805
    %v3098 = vunpack.c.h.b16 %v2805
    %v3099 = vunpack.c.l.b16 %v2806
    %v3100 = vunpack.c.h.b16 %v2806
    %v3101 = vunpack.c.l.b16 %v2807
    %v3102 = vunpack.c.h.b16 %v2807
    %v3103 = vunpack.c.l.b16 %v2808
    %v3104 = vunpack.c.h.b16 %v2808
    %v3105 = vunpack.c.l.b16 %v2809
    %v3106 = vunpack.c.h.b16 %v2809
    %v3107 = vunpack.c.l.b16 %v2810
    %v3108 = vunpack.c.h.b16 %v2810
    %v3109 = vunpack.c.l.b16 %v2811
    %v3110 = vunpack.c.h.b16 %v2811
    %v3111 = vunpack.c.l.b16 %v2812
    %v3112 = vunpack.c.h.b16 %v2812
    %v3113 = vunpack.c.l.b16 %v2813
    %v3114 = vunpack.c.h.b16 %v2813
    %v3115 = vunpack.c.l.b16 %v2814
    %v3116 = vunpack.c.h.b16 %v2814
    %v3117 = vunpack.c.l.b16 %v2815
    %v3118 = vunpack.c.h.b16 %v2815
    %v3119 = vunpack.c.l.b16 %v2816
    %v3120 = vunpack.c.h.b16 %v2816
    %v3121 = vunpack.c.l.b16 %v2817
    %v3122 = vunpack.c.h.b16 %v2817
    %v3123 = vunpack.c.l.b16 %v2818
    %v3124 = vunpack.c.h.b16 %v2818
    %v3125 = vunpack.c.l.b16 %v2819
    %v3126 = vunpack.c.h.b16 %v2819
    %v3127 = vunpack.c.l.b16 %v2820
    %v3128 = vunpack.c.h.b16 %v2820
    %v3129 = vunpack.c.l.b16 %v2821
    %v3130 = vunpack.c.h.b16 %v2821
    %v3131 = vunpack.c.l.b16 %v2822
    %v3132 = vunpack.c.h.b16 %v2822
    %v3133 = vunpack.c.l.b16 %v2823
    %v3134 = vunpack.c.h.b16 %v2823
    %v3135 = vunpack.c.l.b16 %v2824
    %v3136 = vunpack.c.h.b16 %v2824
    %v3137 = vunpack.c.l.b16 %v2825
    %v3138 = vunpack.c.h.b16 %v2825
    %v3139 = vunpack.c.l.b16 %v2826
    %v3140 = vunpack.c.h.b16 %v2826
    %v3141 = vunpack.c.l.b16 %v2827
    %v3142 = vunpack.c.h.b16 %v2827
    %v3143 = vunpack.c.l.b16 %v2828
    %v3144 = vunpack.c.h.b16 %v2828
    %v3145 = vunpack.c.l.b16 %v2829
    %v3146 = vunpack.c.h.b16 %v2829
    %v3147 = vunpack.c.l.b16 %v2830
    %v3148 = vunpack.c.h.b16 %v2830
    %v3149 = vunpack.c.l.b16 %v2831
    %v3150 = vunpack.c.h.b16 %v2831
    %v3151 = vunpack.c.l.b16 %v2832
    %v3152 = vunpack.c.h.b16 %v2832
    %v3153 = vunpack.c.l.b16 %v2833
    %v3154 = vunpack.c.h.b16 %v2833
    %v3155 = vunpack.c.l.b16 %v2834
    %v3156 = vunpack.c.h.b16 %v2834
    %v3157 = vunpack.c.l.b16 %v2835
    %v3158 = vunpack.c.h.b16 %v2835
    %v3159 = vunpack.c.l.b16 %v2836
    %v3160 = vunpack.c.h.b16 %v2836
    %v3161 = vunpack.c.l.b16 %v2837
    %v3162 = vunpack.c.h.b16 %v2837
    %v3163 = vunpack.c.l.b16 %v2838
    %v3164 = vunpack.c.h.b16 %v2838
    %v3165 = vunpack.c.l.b16 %v2839
    %v3166 = vunpack.c.h.b16 %v2839
    %v3167 = vunpack.c.l.b16 %v2840
    %v3168 = vunpack.c.h.b16 %v2840
    %v3169 = vunpack.c.l.b16 %v2841
    %v3170 = vunpack.c.h.b16 %v2841
    %v3171 = vunpack.c.l.b16 %v2842
    %v3172 = vunpack.c.h.b16 %v2842
    %v3173 = vunpack.c.l.b16 %v2843
    %v3174 = vunpack.c.h.b16 %v2843
    %v3175 = vunpack.c.l.b16 %v2844
    %v3176 = vunpack.c.h.b16 %v2844
    %v3177 = vunpack.c.l.b16 %v2845
    %v3178 = vunpack.c.h.b16 %v2845
    %v3179 = vunpack.c.l.b16 %v2846
    %v3180 = vunpack.c.h.b16 %v2846
    %v3181 = vunpack.c.l.b16 %v2847
    %v3182 = vunpack.c.h.b16 %v2847
    %v3183 = vunpack.c.l.b16 %v2848
    %v3184 = vunpack.c.h.b16 %v2848
    %v3185 = vunpack.c.l.b16 %v2849
    %v3186 = vunpack.c.h.b16 %v2849
    %v3187 = vunpack.c.l.b16 %v2850
    %v3188 = vunpack.c.h.b16 %v2850
    %v3189 = vunpack.c.l.b16 %v2851
    %v3190 = vunpack.c.h.b16 %v2851
    %v3191 = vunpack.c.l.b16 %v2852
    %v3192 = vunpack.c.h.b16 %v2852
    %v3193 = vunpack.c.l.b16 %v2853
    %v3194 = vunpack.c.h.b16 %v2853
    %v3195 = vunpack.c.l.b16 %v2854
    %v3196 = vunpack.c.h.b16 %v2854
    %v3197 = vunpack.c.l.b16 %v2855
    %v3198 = vunpack.c.h.b16 %v2855
    %v3199 = vunpack.c.l.b16 %v2856
    %v3200 = vunpack.c.h.b16 %v2856
    %v3201 = vunpack.c.l.b16 %v2857
    %v3202 = vunpack.c.h.b16 %v2857
    %v3203 = vunpack.c.l.b16 %v2858
    %v3204 = vunpack.c.h.b16 %v2858
    %v3205 = vunpack.c.l.b16 %v2859
    %v3206 = vunpack.c.h.b16 %v2859
    %v3207 = vunpack.c.l.b16 %v2860
    %v3208 = vunpack.c.h.b16 %v2860
    %v3209 = vunpack.c.l.b16 %v2861
    %v3210 = vunpack.c.h.b16 %v2861
    %v3211 = vunpack.c.l.b16 %v2862
    %v3212 = vunpack.c.h.b16 %v2862
    %v3213 = vunpack.c.l.b16 %v2863
    %v3214 = vunpack.c.h.b16 %v2863
    %v3215 = vunpack.c.l.b16 %v2864
    %v3216 = vunpack.c.h.b16 %v2864
    %v3217 = vunpack.c.l.b16 %v2865
    %v3218 = vunpack.c.h.b16 %v2865
    %v3219 = vunpack.c.l.b16 %v2866
    %v3220 = vunpack.c.h.b16 %v2866
    %v3221 = vunpack.c.l.b16 %v2867
    %v3222 = vunpack.c.h.b16 %v2867
    %v3223 = vunpack.c.l.b16 %v2868
    %v3224 = vunpack.c.h.b16 %v2868
    %v3225 = vunpack.c.l.b16 %v2869
    %v3226 = vunpack.c.h.b16 %v2869
    %v3227 = vunpack.c.l.b16 %v2870
    %v3228 = vunpack.c.h.b16 %v2870
    %v3229 = vunpack.c.l.b16 %v2871
    %v3230 = vunpack.c.h.b16 %v2871
    %v3231 = vunpack.c.l.b16 %v2872
    %v3232 = vunpack.c.h.b16 %v2872
    %v3233 = vunpack.c.l.b16 %v2873
    %v3234 = vunpack.c.h.b16 %v2873
    %v3235 = vunpack.c.l.b16 %v2874
    %v3236 = vunpack.c.h.b16 %v2874
    %v3237 = vunpack.c.l.b16 %v2875
    %v3238 = vunpack.c.h.b16 %v2875
    %v3239 = vunpack.c.l.b16 %v2876
    %v3240 = vunpack.c.h.b16 %v2876
    %v3241 = vunpack.c.l.b16 %v2877
    %v3242 = vunpack.c.h.b16 %v2877
    %v3243 = vunpack.c.l.b16 %v2878
    %v3244 = vunpack.c.h.b16 %v2878
    %v3245 = vunpack.c.l.b16 %v2879
    %v3246 = vunpack.c.h.b16 %v2879
    %v3247 = vunpack.c.l.b16 %v2880
    %v3248 = vunpack.c.h.b16 %v2880
    %v3249 = vunpack.c.l.b16 %v2881
    %v3250 = vunpack.c.h.b16 %v2881
    %v3251 = vunpack.c.l.b16 %v2882
    %v3252 = vunpack.c.h.b16 %v2882
    %v3253 = vunpack.c.l.b16 %v2883
    %v3254 = vunpack.c.h.b16 %v2883
    %v3255 = vunpack.c.l.b16 %v2884
    %v3256 = vunpack.c.h.b16 %v2884
    %v3257 = vunpack.c.l.b16 %v2885
    %v3258 = vunpack.c.h.b16 %v2885
    %v3259 = vunpack.c.l.b16 %v2886
    %v3260 = vunpack.c.h.b16 %v2886
    %v3261 = vunpack.c.l.b16 %v2887
    %v3262 = vunpack.c.h.b16 %v2887
    %v3263 = vunpack.c.l.b16 %v2888
    %v3264 = vunpack.c.h.b16 %v2888
    %v3265 = vunpack.c.l.b16 %v2889
    %v3266 = vunpack.c.h.b16 %v2889
    %v3267 = vunpack.c.l.b16 %v2890
    %v3268 = vunpack.c.h.b16 %v2890
    %v3269 = vunpack.c.l.b16 %v2891
    %v3270 = vunpack.c.h.b16 %v2891
    %v3271 = vunpack.c.l.b16 %v2892
    %v3272 = vunpack.c.h.b16 %v2892
    %v3273 = vunpack.c.l.b16 %v2893
    %v3274 = vunpack.c.h.b16 %v2893
    %v3275 = vunpack.c.l.b16 %v2894
    %v3276 = vunpack.c.h.b16 %v2894
    %v3277 = vunpack.c.l.b16 %v2895
    %v3278 = vunpack.c.h.b16 %v2895
    %v3279 = vunpack.c.l.b16 %v2896
    %v3280 = vunpack.c.h.b16 %v2896
    %v3281 = vunpack.c.l.b16 %v2897
    %v3282 = vunpack.c.h.b16 %v2897
    %v3283 = vunpack.c.l.b16 %v2898
    %v3284 = vunpack.c.h.b16 %v2898
    %v3285 = vunpack.c.l.b16 %v2899
    %v3286 = vunpack.c.h.b16 %v2899
    %v3287 = vunpack.c.l.b16 %v2900
    %v3288 = vunpack.c.h.b16 %v2900
    %v3289 = vunpack.c.l.b16 %v2901
    %v3290 = vunpack.c.h.b16 %v2901
    %v3291 = vunpack.c.l.b16 %v2902
    %v3292 = vunpack.c.h.b16 %v2902
    %v3293 = vunpack.c.l.b16 %v2903
    %v3294 = vunpack.c.h.b16 %v2903
    %v3295 = vunpack.c.l.b16 %v2904
    %v3296 = vunpack.c.h.b16 %v2904
    %v3297 = vunpack.c.l.b16 %v2905
    %v3298 = vunpack.c.h.b16 %v2905
    %v3299 = vunpack.c.l.b16 %v2906
    %v3300 = vunpack.c.h.b16 %v2906
    %v3301 = vunpack.c.l.b16 %v2907
    %v3302 = vunpack.c.h.b16 %v2907
    %v3303 = vunpack.c.l.b16 %v2908
    %v3304 = vunpack.c.h.b16 %v2908
    %v3305 = vunpack.c.l.b16 %v2909
    %v3306 = vunpack.c.h.b16 %v2909
    %v3307 = vunpack.c.l.b16 %v2910
    %v3308 = vunpack.c.h.b16 %v2910
    %v3309 = vunpack.c.l.b16 %v2911
    %v3310 = vunpack.c.h.b16 %v2911
    %v3311 = vunpack.c.l.b16 %v2912
    %v3312 = vunpack.c.h.b16 %v2912
    %v3313 = vunpack.c.l.b16 %v2913
    %v3314 = vunpack.c.h.b16 %v2913
    %v3315 = vunpack.c.l.b16 %v2914
    %v3316 = vunpack.c.h.b16 %v2914
    %v3317 = vunpack.c.l.b16 %v2915
    %v3318 = vunpack.c.h.b16 %v2915
    %v3319 = vunpack.c.l.b16 %v2916
    %v3320 = vunpack.c.h.b16 %v2916
    %v3321 = vunpack.c.l.b16 %v2917
    %v3322 = vunpack.c.h.b16 %v2917
    %v3323 = vunpack.c.l.b16 %v2918
    %v3324 = vunpack.c.h.b16 %v2918
    %v3325 = vpack.c.b16 %v3073, %v3069
    %v3326 = vpack.c.b16 %v3074, %v3070
    %v3327 = vpack.c.b16 %v3075, %v3071
    %v3328 = vpack.c.b16 %v3076, %v3072
    %v3329 = vpack.c.b16 %v3081, %v3077
    %v3330 = vpack.c.b16 %v3082, %v3078
    %v3331 = vpack.c.b16 %v3083, %v3079
    %v3332 = vpack.c.b16 %v3084, %v3080
    %v3333 = vpack.c.b16 %v3089, %v3085
    %v3334 = vpack.c.b16 %v3090, %v3086
    %v3335 = vpack.c.b16 %v3091, %v3087
    %v3336 = vpack.c.b16 %v3092, %v3088
    %v3337 = vpack.c.b16 %v3097, %v3093
    %v3338 = vpack.c.b16 %v3098, %v3094
    %v3339 = vpack.c.b16 %v3099, %v3095
    %v3340 = vpack.c.b16 %v3100, %v3096
    %v3341 = vpack.c.b16 %v3105, %v3101
    %v3342 = vpack.c.b16 %v3106, %v3102
    %v3343 = vpack.c.b16 %v3107, %v3103
    %v3344 = vpack.c.b16 %v3108, %v3104
    %v3345 = vpack.c.b16 %v3113, %v3109
    %v3346 = vpack.c.b16 %v3114, %v3110
    %v3347 = vpack.c.b16 %v3115, %v3111
    %v3348 = vpack.c.b16 %v3116, %v3112
    %v3349 = vpack.c.b16 %v3121, %v3117
    %v3350 = vpack.c.b16 %v3122, %v3118
    %v3351 = vpack.c.b16 %v3123, %v3119
    %v3352 = vpack.c.b16 %v3124, %v3120
    %v3353 = vpack.c.b16 %v3129, %v3125
    %v3354 = vpack.c.b16 %v3130, %v3126
    %v3355 = vpack.c.b16 %v3131, %v3127
    %v3356 = vpack.c.b16 %v3132, %v3128
    %v3357 = vpack.c.b16 %v3137, %v3133
    %v3358 = vpack.c.b16 %v3138, %v3134
    %v3359 = vpack.c.b16 %v3139, %v3135
    %v3360 = vpack.c.b16 %v3140, %v3136
    %v3361 = vpack.c.b16 %v3145, %v3141
    %v3362 = vpack.c.b16 %v3146, %v3142
    %v3363 = vpack.c.b16 %v3147, %v3143
    %v3364 = vpack.c.b16 %v3148, %v3144
    %v3365 = vpack.c.b16 %v3153, %v3149
    %v3366 = vpack.c.b16 %v3154, %v3150
    %v3367 = vpack.c.b16 %v3155, %v3151
    %v3368 = vpack.c.b16 %v3156, %v3152
    %v3369 = vpack.c.b16 %v3161, %v3157
    %v3370 = vpack.c.b16 %v3162, %v3158
    %v3371 = vpack.c.b16 %v3163, %v3159
    %v3372 = vpack.c.b16 %v3164, %v3160
    %v3373 = vpack.c.b16 %v3169, %v3165
    %v3374 = vpack.c.b16 %v3170, %v3166
    %v3375 = vpack.c.b16 %v3171, %v3167
    %v3376 = vpack.c.b16 %v3172, %v3168
    %v3377 = vpack.c.b16 %v3177, %v3173
    %v3378 = vpack.c.b16 %v3178, %v3174
    %v3379 = vpack.c.b16 %v3179, %v3175
    %v3380 = vpack.c.b16 %v3180, %v3176
    %v3381 = vpack.c.b16 %v3185, %v3181
    %v3382 = vpack.c.b16 %v3186, %v3182
    %v3383 = vpack.c.b16 %v3187, %v3183
    %v3384 = vpack.c.b16 %v3188, %v3184
    %v3385 = vpack.c.b16 %v3193, %v3189
    %v3386 = vpack.c.b16 %v3194, %v3190
    %v3387 = vpack.c.b16 %v3195, %v3191
    %v3388 = vpack.c.b16 %v3196, %v3192
    %v3389 = vpack.c.b16 %v3201, %v3197
    %v3390 = vpack.c.b16 %v3202, %v3198
    %v3391 = vpack.c.b16 %v3203, %v3199
    %v3392 = vpack.c.b16 %v3204, %v3200
    %v3393 = vpack.c.b16 %v3209, %v3205
    %v3394 = vpack.c.b16 %v3210, %v3206
    %v3395 = vpack.c.b16 %v3211, %v3207
    %v3396 = vpack.c.b16 %v3212, %v3208
    %v3397 = vpack.c.b16 %v3217, %v3213
    %v3398 = vpack.c.b16 %v3218, %v3214
    %v3399 = vpack.c.b16 %v3219, %v3215
    %v3400 = vpack.c.b16 %v3220, %v3216
    %v3401 = vpack.c.b16 %v3225, %v3221
    %v3402 = vpack.c.b16 %v3226, %v3222
    %v3403 = vpack.c.b16 %v3227, %v3223
    %v3404 = vpack.c.b16 %v3228, %v3224
    %v3405 = vpack.c.b16 %v3233, %v3229
    %v3406 = vpack.c.b16 %v3234, %v3230
    %v3407 = vpack.c.b16 %v3235, %v3231
    %v3408 = vpack.c.b16 %v3236, %v3232
    %v3409 = vpack.c.b16 %v3241, %v3237
    %v3410 = vpack.c.b16 %v3242, %v3238
    %v3411 = vpack.c.b16 %v3243, %v3239
    %v3412 = vpack.c.b16 %v3244, %v3240
    %v3413 = vpack.c.b16 %v3249, %v3245
    %v3414 = vpack.c.b16 %v3250, %v3246
    %v3415 = vpack.c.b16 %v3251, %v3247
    %v3416 = vpack.c.b16 %v3252, %v3248
    %v3417 = vpack.c.b16 %v3257, %v3253
    %v3418 = vpack.c.b16 %v3258, %v3254
    %v3419 = vpack.c.b16 %v3259, %v3255
    %v3420 = vpack.c.b16 %v3260, %v3256
    %v3421 = vpack.c.b16 %v3265, %v3261
    %v3422 = vpack.c.b16 %v3266, %v3262
    %v3423 = vpack.c.b16 %v3267, %v3263
    %v3424 = vpack.c.b16 %v3268, %v3264
    %v3425 = vpack.c.b16 %v3273, %v3269
    %v3426 = vpack.c.b16 %v3274, %v3270
    %v3427 = vpack.c.b16 %v3275, %v3271
    %v3428 = vpack.c.b16 %v3276, %v3272
    %v3429 = vpack.c.b16 %v3281, %v3277
    %v3430 = vpack.c.b16 %v3282, %v3278
    %v3431 = vpack.c.b16 %v3283, %v3279
    %v3432 = vpack.c.b16 %v3284, %v3280
    %v3433 = vpack.c.b16 %v3289, %v3285
    %v3434 = vpack.c.b16 %v3290, %v3286
    %v3435 = vpack.c.b16 %v3291, %v3287
    %v3436 = vpack.c.b16 %v3292, %v3288
    %v3437 = vpack.c.b16 %v3297, %v3293
    %v3438 = vpack.c.b16 %v3298, %v3294
    %v3439 = vpack.c.b16 %v3299, %v3295
    %v3440 = vpack.c.b16 %v3300, %v3296
    %v3441 = vpack.c.b16 %v3305, %v3301
    %v3442 = vpack.c.b16 %v3306, %v3302
    %v3443 = vpack.c.b16 %v3307, %v3303
    %v3444 = vpack.c.b16 %v3308, %v3304
    %v3445 = vpack.c.b16 %v3313, %v3309
    %v3446 = vpack.c.b16 %v3314, %v3310
    %v3447 = vpack.c.b16 %v3315, %v3311
    %v3448 = vpack.c.b16 %v3316, %v3312
    %v3449 = vpack.c.b16 %v3321, %v3317
    %v3450 = vpack.c.b16 %v3322, %v3318
    %v3451 = vpack.c.b16 %v3323, %v3319
    %v3452 = vpack.c.b16 %v3324, %v3320
    %3581 = vmatprep.subr.bf16.mxu0 %v3354
    %3582 = vmatpush1.bf16.msra.mxu0 %v3353
    %3583 = vmatprep.subr.bf16.mxu0 %v3350
    %3584 = vmatpush1.bf16.msra.mxu0 %v3349
    %3585 = vmatprep.subr.bf16.mxu0 %v3346
    %3586 = vmatpush1.bf16.msra.mxu0 %v3345
    %3587 = vmatprep.subr.bf16.mxu0 %v3342
    %3588 = vmatpush1.bf16.msra.mxu0 %v3341
    %3589 = vmatprep.subr.bf16.mxu0 %v3338
    %3590 = vmatpush1.bf16.msra.mxu0 %v3337
    %3591 = vmatprep.subr.bf16.mxu0 %v3334
    %3592 = vmatpush1.bf16.msra.mxu0 %v3333
    %3593 = vmatprep.subr.bf16.mxu0 %v3330
    %3594 = vmatpush1.bf16.msra.mxu0 %v3329
    %3595 = vmatprep.subr.bf16.mxu0 %v3326
    %3596 = vmatpush1.bf16.msra.mxu0 %v3325
    %3597 = vmatprep.subr.bf16.mxu0 %v3386
    %3598 = vmatpush2.bf16.msra.mxu0 %v3385
    %3599 = vmatprep.subr.bf16.mxu0 %v3382
    %3600 = vmatpush2.bf16.msra.mxu0 %v3381
    %3601 = vmatprep.subr.bf16.mxu0 %v3378
    %3602 = vmatpush2.bf16.msra.mxu0 %v3377
    %3603 = vmatprep.subr.bf16.mxu0 %v3374
    %3604 = vmatpush2.bf16.msra.mxu0 %v3373
    %3605 = vmatprep.subr.bf16.mxu0 %v3370
    %3606 = vmatpush2.bf16.msra.mxu0 %v3369
    %3607 = vmatprep.subr.bf16.mxu0 %v3366
    %3608 = vmatpush2.bf16.msra.mxu0 %v3365
    %3609 = vmatprep.subr.bf16.mxu0 %v3362
    %3610 = vmatpush2.bf16.msra.mxu0 %v3361
    %3611 = vmatprep.subr.bf16.mxu0 %v3358
    %3612 = vmatpush2.bf16.msra.mxu0 %v3357
    %3613 = vmatprep.mubr.bf16.mxu0 %v2788
    %3614 = vmatmul.mubr.bf16.gmra.mxu0 %v2787
    %v3615 = vpop.f32.mrf.mxu0
    %v3616 = vadd.f32 %v2924, %v3615
    %v3617 = vpop.f32.mrf.mxu0
    %v3618 = vadd.f32 %v2928, %v3617
    %v3619 = vpop.f32.mrf.mxu0
    %v3620 = vadd.f32 %v2924, %v3619
    %v3621 = vpop.f32.mrf.mxu0
    %v3622 = vadd.f32 %v2928, %v3621
    %3623 = vdwg.mxu0
    %3624 = vmatprep.subr.bf16.mxu0 %v3418
    %3625 = vmatpush1.bf16.msra.mxu0 %v3417
    %3626 = vmatprep.subr.bf16.mxu0 %v3414
    %3627 = vmatpush1.bf16.msra.mxu0 %v3413
    %3628 = vmatprep.subr.bf16.mxu0 %v3410
    %3629 = vmatpush1.bf16.msra.mxu0 %v3409
    %3630 = vmatprep.subr.bf16.mxu0 %v3406
    %3631 = vmatpush1.bf16.msra.mxu0 %v3405
    %3632 = vmatprep.subr.bf16.mxu0 %v3402
    %3633 = vmatpush1.bf16.msra.mxu0 %v3401
    %3634 = vmatprep.subr.bf16.mxu0 %v3398
    %3635 = vmatpush1.bf16.msra.mxu0 %v3397
    %3636 = vmatprep.subr.bf16.mxu0 %v3394
    %3637 = vmatpush1.bf16.msra.mxu0 %v3393
    %3638 = vmatprep.subr.bf16.mxu0 %v3390
    %3639 = vmatpush1.bf16.msra.mxu0 %v3389
    %3640 = vmatprep.subr.bf16.mxu0 %v3450
    %3641 = vmatpush2.bf16.msra.mxu0 %v3449
    %3642 = vmatprep.subr.bf16.mxu0 %v3446
    %3643 = vmatpush2.bf16.msra.mxu0 %v3445
    %3644 = vmatprep.subr.bf16.mxu0 %v3442
    %3645 = vmatpush2.bf16.msra.mxu0 %v3441
    %3646 = vmatprep.subr.bf16.mxu0 %v3438
    %3647 = vmatpush2.bf16.msra.mxu0 %v3437
    %3648 = vmatprep.subr.bf16.mxu0 %v3434
    %3649 = vmatpush2.bf16.msra.mxu0 %v3433
    %3650 = vmatprep.subr.bf16.mxu0 %v3430
    %3651 = vmatpush2.bf16.msra.mxu0 %v3429
    %3652 = vmatprep.subr.bf16.mxu0 %v3426
    %3653 = vmatpush2.bf16.msra.mxu0 %v3425
    %3654 = vmatprep.subr.bf16.mxu0 %v3422
    %3655 = vmatpush2.bf16.msra.mxu0 %v3421
    %3656 = vmatprep.mubr.bf16.mxu0 %v2790
    %3657 = vmatmul.mubr.bf16.gmra.mxu0 %v2789
    %v3658 = vpop.f32.mrf.mxu0
    %v3659 = vadd.f32 %v3616, %v3658
    %v3660 = vpop.f32.mrf.mxu0
    %v3661 = vadd.f32 %v3618, %v3660
    %v3662 = vpop.f32.mrf.mxu0
    %v3663 = vadd.f32 %v3620, %v3662
    %v3664 = vpop.f32.mrf.mxu0
    %v3665 = vadd.f32 %v3622, %v3664
    %3666 = vdwg.mxu0
    %3667 = vmatprep.subr.bf16.mxu0 %v3356
    %3668 = vmatpush1.bf16.msra.mxu0 %v3355
    %3669 = vmatprep.subr.bf16.mxu0 %v3352
    %3670 = vmatpush1.bf16.msra.mxu0 %v3351
    %3671 = vmatprep.subr.bf16.mxu0 %v3348
    %3672 = vmatpush1.bf16.msra.mxu0 %v3347
    %3673 = vmatprep.subr.bf16.mxu0 %v3344
    %3674 = vmatpush1.bf16.msra.mxu0 %v3343
    %3675 = vmatprep.subr.bf16.mxu0 %v3340
    %3676 = vmatpush1.bf16.msra.mxu0 %v3339
    %3677 = vmatprep.subr.bf16.mxu0 %v3336
    %3678 = vmatpush1.bf16.msra.mxu0 %v3335
    %3679 = vmatprep.subr.bf16.mxu0 %v3332
    %3680 = vmatpush1.bf16.msra.mxu0 %v3331
    %3681 = vmatprep.subr.bf16.mxu0 %v3328
    %3682 = vmatpush1.bf16.msra.mxu0 %v3327
    %3683 = vmatprep.subr.bf16.mxu0 %v3388
    %3684 = vmatpush2.bf16.msra.mxu0 %v3387
    %3685 = vmatprep.subr.bf16.mxu0 %v3384
    %3686 = vmatpush2.bf16.msra.mxu0 %v3383
    %3687 = vmatprep.subr.bf16.mxu0 %v3380
    %3688 = vmatpush2.bf16.msra.mxu0 %v3379
    %3689 = vmatprep.subr.bf16.mxu0 %v3376
    %3690 = vmatpush2.bf16.msra.mxu0 %v3375
    %3691 = vmatprep.subr.bf16.mxu0 %v3372
    %3692 = vmatpush2.bf16.msra.mxu0 %v3371
    %3693 = vmatprep.subr.bf16.mxu0 %v3368
    %3694 = vmatpush2.bf16.msra.mxu0 %v3367
    %3695 = vmatprep.subr.bf16.mxu0 %v3364
    %3696 = vmatpush2.bf16.msra.mxu0 %v3363
    %3697 = vmatprep.subr.bf16.mxu0 %v3360
    %3698 = vmatpush2.bf16.msra.mxu0 %v3359
    %3699 = vmatprep.mubr.bf16.mxu0 %v2788
    %3700 = vmatmul.mubr.bf16.gmra.mxu0 %v2787
    %v3701 = vpop.f32.mrf.mxu0
    %v3702 = vadd.f32 %v2932, %v3701
    %v3703 = vpop.f32.mrf.mxu0
    %v3704 = vadd.f32 %v2936, %v3703
    %v3705 = vpop.f32.mrf.mxu0
    %v3706 = vadd.f32 %v2932, %v3705
    %v3707 = vpop.f32.mrf.mxu0
    %v3708 = vadd.f32 %v2936, %v3707
    %3709 = vdwg.mxu0
    %3710 = vmatprep.subr.bf16.mxu0 %v3420
    %3711 = vmatpush1.bf16.msra.mxu0 %v3419
    %3712 = vmatprep.subr.bf16.mxu0 %v3416
    %3713 = vmatpush1.bf16.msra.mxu0 %v3415
    %3714 = vmatprep.subr.bf16.mxu0 %v3412
    %3715 = vmatpush1.bf16.msra.mxu0 %v3411
    %3716 = vmatprep.subr.bf16.mxu0 %v3408
    %3717 = vmatpush1.bf16.msra.mxu0 %v3407
    %3718 = vmatprep.subr.bf16.mxu0 %v3404
    %3719 = vmatpush1.bf16.msra.mxu0 %v3403
    %3720 = vmatprep.subr.bf16.mxu0 %v3400
    %3721 = vmatpush1.bf16.msra.mxu0 %v3399
    %3722 = vmatprep.subr.bf16.mxu0 %v3396
    %3723 = vmatpush1.bf16.msra.mxu0 %v3395
    %3724 = vmatprep.subr.bf16.mxu0 %v3392
    %3725 = vmatpush1.bf16.msra.mxu0 %v3391
    %3726 = vmatprep.subr.bf16.mxu0 %v3452
    %3727 = vmatpush2.bf16.msra.mxu0 %v3451
    %3728 = vmatprep.subr.bf16.mxu0 %v3448
    %3729 = vmatpush2.bf16.msra.mxu0 %v3447
    %3730 = vmatprep.subr.bf16.mxu0 %v3444
    %3731 = vmatpush2.bf16.msra.mxu0 %v3443
    %3732 = vmatprep.subr.bf16.mxu0 %v3440
    %3733 = vmatpush2.bf16.msra.mxu0 %v3439
    %3734 = vmatprep.subr.bf16.mxu0 %v3436
    %3735 = vmatpush2.bf16.msra.mxu0 %v3435
    %3736 = vmatprep.subr.bf16.mxu0 %v3432
    %3737 = vmatpush2.bf16.msra.mxu0 %v3431
    %3738 = vmatprep.subr.bf16.mxu0 %v3428
    %3739 = vmatpush2.bf16.msra.mxu0 %v3427
    %3740 = vmatprep.subr.bf16.mxu0 %v3424
    %3741 = vmatpush2.bf16.msra.mxu0 %v3423
    %3742 = vmatprep.mubr.bf16.mxu0 %v2790
    %3743 = vmatmul.mubr.bf16.gmra.mxu0 %v2789
    %v3744 = vpop.f32.mrf.mxu0
    %v3745 = vadd.f32 %v3702, %v3744
    %v3746 = vpop.f32.mrf.mxu0
    %v3747 = vadd.f32 %v3704, %v3746
    %v3748 = vpop.f32.mrf.mxu0
    %v3749 = vadd.f32 %v3706, %v3748
    %v3750 = vpop.f32.mrf.mxu0
    %v3751 = vadd.f32 %v3708, %v3750
    %3752 = vdwg.mxu0
    %v3753 = vmax.f32 %v3659, 0.0
    %v3754 = vmax.f32 %v3661, 0.0
    %v3755 = vmax.f32 %v3745, 0.0
    %v3756 = vmax.f32 %v3747, 0.0
    %v3757 = vmax.f32 %v3663, 0.0
    %v3758 = vmax.f32 %v3665, 0.0
    %v3759 = vmax.f32 %v3749, 0.0
    %v3760 = vmax.f32 %v3751, 0.0
    %v3761 = vpack.c.bf16 %v3757, %v3753
    %v3762 = vpack.c.bf16 %v3758, %v3754
    %v3763 = vpack.c.bf16 %v3759, %v3755
    %v3764 = vpack.c.bf16 %v3760, %v3756
    %v3765 = vld [vmem:[%s7] sm:$0xf]
    %v3766 = vld [vmem:[%s7 + $0x4] sm:$0xf]
    %v3767 = vld [vmem:[%s7 + $0x8] sm:$0xf]
    %v3768 = vld [vmem:[%s7 + $0xc] sm:$0xf]
    %v3769 = vld [vmem:[%s7 + $0x10] sm:$0xf]
    %v3770 = vld [vmem:[%s7 + $0x14] sm:$0xf]
    %v3771 = vld [vmem:[%s7 + $0x18] sm:$0xf]
    %v3772 = vld [vmem:[%s7 + $0x1c] sm:$0xf]
    %v3773 = vld [vmem:[%s7 + $0x20] sm:$0xf]
    %v3774 = vld [vmem:[%s7 + $0x24] sm:$0xf]
    %v3775 = vld [vmem:[%s7 + $0x28] sm:$0xf]
    %v3776 = vld [vmem:[%s7 + $0x2c] sm:$0xf]
    %v3777 = vld [vmem:[%s7 + $0x30] sm:$0xf]
    %v3778 = vld [vmem:[%s7 + $0x34] sm:$0xf]
    %v3779 = vld [vmem:[%s7 + $0x38] sm:$0xf]
    %v3780 = vld [vmem:[%s7 + $0x3c] sm:$0xf]
    %v3781 = vld [vmem:[%s7 + $0x40] sm:$0xf]
    %v3782 = vld [vmem:[%s7 + $0x44] sm:$0xf]
    %v3783 = vld [vmem:[%s7 + $0x48] sm:$0xf]
    %v3784 = vld [vmem:[%s7 + $0x4c] sm:$0xf]
    %v3785 = vld [vmem:[%s7 + $0x50] sm:$0xf]
    %v3786 = vld [vmem:[%s7 + $0x54] sm:$0xf]
    %v3787 = vld [vmem:[%s7 + $0x58] sm:$0xf]
    %v3788 = vld [vmem:[%s7 + $0x5c] sm:$0xf]
    %v3789 = vld [vmem:[%s7 + $0x60] sm:$0xf]
    %v3790 = vld [vmem:[%s7 + $0x64] sm:$0xf]
    %v3791 = vld [vmem:[%s7 + $0x68] sm:$0xf]
    %v3792 = vld [vmem:[%s7 + $0x6c] sm:$0xf]
    %v3793 = vld [vmem:[%s7 + $0x70] sm:$0xf]
    %v3794 = vld [vmem:[%s7 + $0x74] sm:$0xf]
    %v3795 = vld [vmem:[%s7 + $0x78] sm:$0xf]
    %v3796 = vld [vmem:[%s7 + $0x7c] sm:$0xf]
    %v3797 = vld [vmem:[%s7 + $0x80] sm:$0xf]
    %v3798 = vld [vmem:[%s7 + $0x84] sm:$0xf]
    %v3799 = vld [vmem:[%s7 + $0x88] sm:$0xf]
    %v3800 = vld [vmem:[%s7 + $0x8c] sm:$0xf]
    %v3801 = vld [vmem:[%s7 + $0x90] sm:$0xf]
    %v3802 = vld [vmem:[%s7 + $0x94] sm:$0xf]
    %v3803 = vld [vmem:[%s7 + $0x98] sm:$0xf]
    %v3804 = vld [vmem:[%s7 + $0x9c] sm:$0xf]
    %v3805 = vld [vmem:[%s7 + $0xa0] sm:$0xf]
    %v3806 = vld [vmem:[%s7 + $0xa4] sm:$0xf]
    %v3807 = vld [vmem:[%s7 + $0xa8] sm:$0xf]
    %v3808 = vld [vmem:[%s7 + $0xac] sm:$0xf]
    %v3809 = vld [vmem:[%s7 + $0xb0] sm:$0xf]
    %v3810 = vld [vmem:[%s7 + $0xb4] sm:$0xf]
    %v3811 = vld [vmem:[%s7 + $0xb8] sm:$0xf]
    %v3812 = vld [vmem:[%s7 + $0xbc] sm:$0xf]
    %v3813 = vld [vmem:[%s7 + $0xc0] sm:$0xf]
    %v3814 = vld [vmem:[%s7 + $0xc4] sm:$0xf]
    %v3815 = vld [vmem:[%s7 + $0xc8] sm:$0xf]
    %v3816 = vld [vmem:[%s7 + $0xcc] sm:$0xf]
    %v3817 = vld [vmem:[%s7 + $0xd0] sm:$0xf]
    %v3818 = vld [vmem:[%s7 + $0xd4] sm:$0xf]
    %v3819 = vld [vmem:[%s7 + $0xd8] sm:$0xf]
    %v3820 = vld [vmem:[%s7 + $0xdc] sm:$0xf]
    %v3821 = vld [vmem:[%s7 + $0xe0] sm:$0xf]
    %v3822 = vld [vmem:[%s7 + $0xe4] sm:$0xf]
    %v3823 = vld [vmem:[%s7 + $0xe8] sm:$0xf]
    %v3824 = vld [vmem:[%s7 + $0xec] sm:$0xf]
    %v3825 = vld [vmem:[%s7 + $0xf0] sm:$0xf]
    %v3826 = vld [vmem:[%s7 + $0xf4] sm:$0xf]
    %v3827 = vld [vmem:[%s7 + $0xf8] sm:$0xf]
    %v3828 = vld [vmem:[%s7 + $0xfc] sm:$0xf]
    %v3829 = vld [vmem:[%s8] sm:$0x1]
    %v3831 = vlaneseq
    %v3832 = vshrl.u32 %v3831, 7
    %v3833 = vsub.s32 0, %v3832
    %v3834 = vrot.slane %v3829, %v3833
    %v3900 = vunpack.c.l.b16 %v3765
    %v3901 = vunpack.c.l.b16 %v3766
    %v3902 = vunpack.c.l.b16 %v3767
    %v3903 = vunpack.c.l.b16 %v3768
    %v3904 = vunpack.c.l.b16 %v3769
    %v3905 = vunpack.c.l.b16 %v3770
    %v3906 = vunpack.c.l.b16 %v3771
    %v3907 = vunpack.c.l.b16 %v3772
    %v3908 = vunpack.c.l.b16 %v3773
    %v3909 = vunpack.c.l.b16 %v3774
    %v3910 = vunpack.c.l.b16 %v3775
    %v3911 = vunpack.c.l.b16 %v3776
    %v3912 = vunpack.c.l.b16 %v3777
    %v3913 = vunpack.c.l.b16 %v3778
    %v3914 = vunpack.c.l.b16 %v3779
    %v3915 = vunpack.c.l.b16 %v3780
    %v3916 = vunpack.c.l.b16 %v3781
    %v3917 = vunpack.c.l.b16 %v3782
    %v3918 = vunpack.c.l.b16 %v3783
    %v3919 = vunpack.c.l.b16 %v3784
    %v3920 = vunpack.c.l.b16 %v3785
    %v3921 = vunpack.c.l.b16 %v3786
    %v3922 = vunpack.c.l.b16 %v3787
    %v3923 = vunpack.c.l.b16 %v3788
    %v3924 = vunpack.c.l.b16 %v3789
    %v3925 = vunpack.c.l.b16 %v3790
    %v3926 = vunpack.c.l.b16 %v3791
    %v3927 = vunpack.c.l.b16 %v3792
    %v3928 = vunpack.c.l.b16 %v3793
    %v3929 = vunpack.c.l.b16 %v3794
    %v3930 = vunpack.c.l.b16 %v3795
    %v3931 = vunpack.c.l.b16 %v3796
    %v3932 = vunpack.c.l.b16 %v3797
    %v3933 = vunpack.c.l.b16 %v3798
    %v3934 = vunpack.c.l.b16 %v3799
    %v3935 = vunpack.c.l.b16 %v3800
    %v3936 = vunpack.c.l.b16 %v3801
    %v3937 = vunpack.c.l.b16 %v3802
    %v3938 = vunpack.c.l.b16 %v3803
    %v3939 = vunpack.c.l.b16 %v3804
    %v3940 = vunpack.c.l.b16 %v3805
    %v3941 = vunpack.c.l.b16 %v3806
    %v3942 = vunpack.c.l.b16 %v3807
    %v3943 = vunpack.c.l.b16 %v3808
    %v3944 = vunpack.c.l.b16 %v3809
    %v3945 = vunpack.c.l.b16 %v3810
    %v3946 = vunpack.c.l.b16 %v3811
    %v3947 = vunpack.c.l.b16 %v3812
    %v3948 = vunpack.c.l.b16 %v3813
    %v3949 = vunpack.c.l.b16 %v3814
    %v3950 = vunpack.c.l.b16 %v3815
    %v3951 = vunpack.c.l.b16 %v3816
    %v3952 = vunpack.c.l.b16 %v3817
    %v3953 = vunpack.c.l.b16 %v3818
    %v3954 = vunpack.c.l.b16 %v3819
    %v3955 = vunpack.c.l.b16 %v3820
    %v3956 = vunpack.c.l.b16 %v3821
    %v3957 = vunpack.c.l.b16 %v3822
    %v3958 = vunpack.c.l.b16 %v3823
    %v3959 = vunpack.c.l.b16 %v3824
    %v3960 = vunpack.c.l.b16 %v3825
    %v3961 = vunpack.c.l.b16 %v3826
    %v3962 = vunpack.c.l.b16 %v3827
    %v3963 = vunpack.c.l.b16 %v3828
    %v3964 = vpack.c.b16 %v3901, %v3900
    %v3965 = vpack.c.b16 %v3903, %v3902
    %v3966 = vpack.c.b16 %v3905, %v3904
    %v3967 = vpack.c.b16 %v3907, %v3906
    %v3968 = vpack.c.b16 %v3909, %v3908
    %v3969 = vpack.c.b16 %v3911, %v3910
    %v3970 = vpack.c.b16 %v3913, %v3912
    %v3971 = vpack.c.b16 %v3915, %v3914
    %v3972 = vpack.c.b16 %v3917, %v3916
    %v3973 = vpack.c.b16 %v3919, %v3918
    %v3974 = vpack.c.b16 %v3921, %v3920
    %v3975 = vpack.c.b16 %v3923, %v3922
    %v3976 = vpack.c.b16 %v3925, %v3924
    %v3977 = vpack.c.b16 %v3927, %v3926
    %v3978 = vpack.c.b16 %v3929, %v3928
    %v3979 = vpack.c.b16 %v3931, %v3930
    %v3980 = vpack.c.b16 %v3933, %v3932
    %v3981 = vpack.c.b16 %v3935, %v3934
    %v3982 = vpack.c.b16 %v3937, %v3936
    %v3983 = vpack.c.b16 %v3939, %v3938
    %v3984 = vpack.c.b16 %v3941, %v3940
    %v3985 = vpack.c.b16 %v3943, %v3942
    %v3986 = vpack.c.b16 %v3945, %v3944
    %v3987 = vpack.c.b16 %v3947, %v3946
    %v3988 = vpack.c.b16 %v3949, %v3948
    %v3989 = vpack.c.b16 %v3951, %v3950
    %v3990 = vpack.c.b16 %v3953, %v3952
    %v3991 = vpack.c.b16 %v3955, %v3954
    %v3992 = vpack.c.b16 %v3957, %v3956
    %v3993 = vpack.c.b16 %v3959, %v3958
    %v3994 = vpack.c.b16 %v3961, %v3960
    %v3995 = vpack.c.b16 %v3963, %v3962
    %4028 = vmatprep.subr.bf16.mxu0 0
    %4029 = vmatpush1.bf16.msra.mxu0 %v3971
    %4030 = vmatprep.subr.bf16.mxu0 0
    %4031 = vmatpush1.bf16.msra.mxu0 %v3970
    %4032 = vmatprep.subr.bf16.mxu0 0
    %4033 = vmatpush1.bf16.msra.mxu0 %v3969
    %4034 = vmatprep.subr.bf16.mxu0 0
    %4035 = vmatpush1.bf16.msra.mxu0 %v3968
    %4036 = vmatprep.subr.bf16.mxu0 0
    %4037 = vmatpush1.bf16.msra.mxu0 %v3967
    %4038 = vmatprep.subr.bf16.mxu0 0
    %4039 = vmatpush1.bf16.msra.mxu0 %v3966
    %4040 = vmatprep.subr.bf16.mxu0 0
    %4041 = vmatpush1.bf16.msra.mxu0 %v3965
    %4042 = vmatprep.subr.bf16.mxu0 0
    %4043 = vmatpush1.bf16.msra.mxu0 %v3964
    %4044 = vmatprep.subr.bf16.mxu0 0
    %4045 = vmatpush2.bf16.msra.mxu0 %v3979
    %4046 = vmatprep.subr.bf16.mxu0 0
    %4047 = vmatpush2.bf16.msra.mxu0 %v3978
    %4048 = vmatprep.subr.bf16.mxu0 0
    %4049 = vmatpush2.bf16.msra.mxu0 %v3977
    %4050 = vmatprep.subr.bf16.mxu0 0
    %4051 = vmatpush2.bf16.msra.mxu0 %v3976
    %4052 = vmatprep.subr.bf16.mxu0 0
    %4053 = vmatpush2.bf16.msra.mxu0 %v3975
    %4054 = vmatprep.subr.bf16.mxu0 0
    %4055 = vmatpush2.bf16.msra.mxu0 %v3974
    %4056 = vmatprep.subr.bf16.mxu0 0
    %4057 = vmatpush2.bf16.msra.mxu0 %v3973
    %4058 = vmatprep.subr.bf16.mxu0 0
    %4059 = vmatpush2.bf16.msra.mxu0 %v3972
    %4060 = vmatprep.mubr.bf16.mxu0 %v3762
    %4061 = vmatmul.mubr.bf16.gmra.mxu0 %v3761
    %v4062 = vpop.f32.mrf.mxu0
    %v4063 = vadd.f32 %v3834, %v4062
    %v4064 = vpop.f32.mrf.mxu0
    %v4065 = vpop.f32.mrf.mxu0
    %v4066 = vadd.f32 %v3834, %v4065
    %v4067 = vpop.f32.mrf.mxu0
    %4068 = vdwg.mxu0
    %4069 = vmatprep.subr.bf16.mxu0 0
    %4070 = vmatpush1.bf16.msra.mxu0 %v3987
    %4071 = vmatprep.subr.bf16.mxu0 0
    %4072 = vmatpush1.bf16.msra.mxu0 %v3986
    %4073 = vmatprep.subr.bf16.mxu0 0
    %4074 = vmatpush1.bf16.msra.mxu0 %v3985
    %4075 = vmatprep.subr.bf16.mxu0 0
    %4076 = vmatpush1.bf16.msra.mxu0 %v3984
    %4077 = vmatprep.subr.bf16.mxu0 0
    %4078 = vmatpush1.bf16.msra.mxu0 %v3983
    %4079 = vmatprep.subr.bf16.mxu0 0
    %4080 = vmatpush1.bf16.msra.mxu0 %v3982
    %4081 = vmatprep.subr.bf16.mxu0 0
    %4082 = vmatpush1.bf16.msra.mxu0 %v3981
    %4083 = vmatprep.subr.bf16.mxu0 0
    %4084 = vmatpush1.bf16.msra.mxu0 %v3980
    %4085 = vmatprep.subr.bf16.mxu0 0
    %4086 = vmatpush2.bf16.msra.mxu0 %v3995
    %4087 = vmatprep.subr.bf16.mxu0 0
    %4088 = vmatpush2.bf16.msra.mxu0 %v3994
    %4089 = vmatprep.subr.bf16.mxu0 0
    %4090 = vmatpush2.bf16.msra.mxu0 %v3993
    %4091 = vmatprep.subr.bf16.mxu0 0
    %4092 = vmatpush2.bf16.msra.mxu0 %v3992
    %4093 = vmatprep.subr.bf16.mxu0 0
    %4094 = vmatpush2.bf16.msra.mxu0 %v3991
    %4095 = vmatprep.subr.bf16.mxu0 0
    %4096 = vmatpush2.bf16.msra.mxu0 %v3990
    %4097 = vmatprep.subr.bf16.mxu0 0
    %4098 = vmatpush2.bf16.msra.mxu0 %v3989
    %4099 = vmatprep.subr.bf16.mxu0 0
    %4100 = vmatpush2.bf16.msra.mxu0 %v3988
    %4101 = vmatprep.mubr.bf16.mxu0 %v3764
    %4102 = vmatmul.mubr.bf16.gmra.mxu0 %v3763
    %v4103 = vpop.f32.mrf.mxu0
    %v4104 = vadd.f32 %v4063, %v4103
    %v4105 = vpop.f32.mrf.mxu0
    %v4106 = vpop.f32.mrf.mxu0
    %v4107 = vadd.f32 %v4066, %v4106
    %v4108 = vpop.f32.mrf.mxu0
    %4109 = vdwg.mxu0
    %4110 = vst [vmem:[%s9] sm:$0xff] %v4104
    %4111 = vst [vmem:[%s9 + $0x8] sm:$0xff] %v4107
    // Predicated region
    $region50: #{mnist_mlp_forward.1} parent=1 // pred_check
      _
    $region51: #{mnist_mlp_forward.1} parent=1 // pred_check_branch
      %4113 = sbr.rel (0) target = $region53
    $region52: #{mnist_mlp_forward.1} parent=1 // pred_region
      _
    $region53: #{mnist_mlp_forward.1} parent=1 // pred_fallthru
      _
    // Predicated region
    $region54: #{mnist_mlp_forward.1} parent=1 // pred_check
      _
    $region55: #{mnist_mlp_forward.1} parent=1 // pred_check_branch
      %4115 = sbr.rel (0) target = $region57
    $region56: #{mnist_mlp_forward.1} parent=1 // pred_region
      _
    $region57: #{mnist_mlp_forward.1} parent=1 // pred_fallthru
      _
    %4116 = vsyncpa [#allocation3], 1
    %4117 = vsyncpa [#allocation5], 1

</llo_original>
